<compile_context>
chip_gen: v7x
topology: tpu7x:2x2x1
jax: 0.10.0
libtpu: 0.0.40
codegen_flags: <defaults>
</compile_context>

<pallas_src>
import jax
import jax.numpy as jnp
from jax.experimental import pallas as pl
from jax.experimental.pallas import tpu as pltpu


# ------------------------------- small helpers -------------------------------
def _round_up(x, m):
    return ((x + m - 1) // m) * m


def _pad_axis(x, axis, new_size):
    pad = new_size - x.shape[axis]
    if pad <= 0:
        return x
    widths = [(0, 0)] * x.ndim
    widths[axis] = (0, pad)
    return jnp.pad(x, widths)


def _pick_tile(n, candidates=(512, 256, 128)):
    for c in candidates:
        if n % c == 0:
            return c
    return n  # small / irregular -> single full-extent block


def _pick_time_block(T, cap=32):
    tt = min(T, cap)
    while T % tt:
        tt -= 1
    return tt


# ------------- batched (per-direction) GEMM + bias:  gx[d] = x[d] @ w[d] + b[d] -------------
def _bmatmul_bias_kernel(x_ref, w_ref, b_ref, o_ref):
    acc = jnp.dot(x_ref[0].astype(jnp.bfloat16),
                  w_ref[0].astype(jnp.bfloat16),
                  preferred_element_type=jnp.float32)
    o_ref[0] = (acc + b_ref[0].astype(jnp.float32)).astype(o_ref.dtype)


def matmul_bias_batched(x, w, b, out_dtype=jnp.float32):
    """x: (D, M, K) @ w: (D, K, N) + b: (D, 1, N) -> (D, M, N). bf16 operands, f32 accum."""
    D, M, K = x.shape
    _, _, N = w.shape
    tm = _pick_tile(M)
    tn = _pick_tile(N)
    grid_spec = pltpu.PrefetchScalarGridSpec(
        num_scalar_prefetch=0,
        grid=(D, M // tm, N // tn),
        in_specs=[
            pl.BlockSpec((1, tm, K), lambda d, i, j: (d, i, 0)),
            pl.BlockSpec((1, K, tn), lambda d, i, j: (d, 0, j)),
            pl.BlockSpec((1, 1, tn), lambda d, i, j: (d, 0, j)),
        ],
        out_specs=pl.BlockSpec((1, tm, tn), lambda d, i, j: (d, i, j)),
    )
    return pl.pallas_call(
        _bmatmul_bias_kernel,
        grid_spec=grid_spec,
        out_shape=jax.ShapeDtypeStruct((D, M, N), out_dtype),
        compiler_params=pltpu.CompilerParams(
            dimension_semantics=("parallel", "parallel", "parallel")),
    )(x, w, b)


# ---------------------- K-blocked GEMM + bias (decoder) ----------------------
def _matmul_bias_kernel(x_ref, w_ref, b_ref, o_ref, acc_ref):
    @pl.when(pl.program_id(2) == 0)
    def _():
        acc_ref[...] = jnp.zeros_like(acc_ref)

    acc_ref[...] += jnp.dot(x_ref[...].astype(jnp.bfloat16),
                            w_ref[...].astype(jnp.bfloat16),
                            preferred_element_type=jnp.float32)

    @pl.when(pl.program_id(2) == pl.num_programs(2) - 1)
    def _():
        o_ref[...] = (acc_ref[...] + b_ref[...].astype(jnp.float32)).astype(o_ref.dtype)


def matmul_bias(x, w, b, out_dtype=jnp.float32):
    """x: (M, K) @ w: (K, N) + b: (1, N) -> (M, N) with K-axis blocking + f32 accumulator."""
    M, K = x.shape
    _, N = w.shape
    tm = _pick_tile(M)
    tn = _pick_tile(N)
    tk = _pick_tile(K)
    grid_spec = pltpu.PrefetchScalarGridSpec(
        num_scalar_prefetch=0,
        grid=(M // tm, N // tn, K // tk),
        in_specs=[
            pl.BlockSpec((tm, tk), lambda i, j, k: (i, k)),
            pl.BlockSpec((tk, tn), lambda i, j, k: (k, j)),
            pl.BlockSpec((1, tn), lambda i, j, k: (0, j)),
        ],
        out_specs=pl.BlockSpec((tm, tn), lambda i, j, k: (i, j)),
        scratch_shapes=[pltpu.VMEM((tm, tn), jnp.float32)],
    )
    return pl.pallas_call(
        _matmul_bias_kernel,
        grid_spec=grid_spec,
        out_shape=jax.ShapeDtypeStruct((M, N), out_dtype),
        compiler_params=pltpu.CompilerParams(
            dimension_semantics=("parallel", "parallel", "arbitrary")),
    )(x, w, b)


# -------------------- fused bidirectional LSTM recurrence kernel --------------------
def _bilstm_layer_kernel(gx_ref, whh_ref, h0_ref, c0_ref,
                         y_ref, hN_ref, cN_ref, h_scr, c_scr):
    t = pl.program_id(1)

    @pl.when(t == 0)
    def _():
        h_scr[...] = h0_ref[0].astype(jnp.float32)
        c_scr[...] = c0_ref[0].astype(jnp.float32)

    Hp = h_scr.shape[-1]
    Tt = y_ref.shape[1]
    whh = whh_ref[0]                       # (Hp, 4*Hp) bf16, loaded once per grid step

    # Static Python loop == fully unrolled recurrence over the Tt timesteps of this
    # block; h/c live in f32 VMEM scratch across grid steps.
    for i in range(Tt):
        gates = gx_ref[0, i].astype(jnp.float32) + jnp.dot(
            h_scr[...].astype(jnp.bfloat16), whh,
            preferred_element_type=jnp.float32)                     # (B, 4*Hp)
        # PyTorch gate order: input, forget, cell(g), output -- each Hp wide (vreg aligned)
        i_g = jax.nn.sigmoid(gates[:, 0:Hp])
        f_g = jax.nn.sigmoid(gates[:, Hp:2 * Hp])
        g_g = jnp.tanh(gates[:, 2 * Hp:3 * Hp])
        o_g = jax.nn.sigmoid(gates[:, 3 * Hp:4 * Hp])
        c_new = f_g * c_scr[...] + i_g * g_g
        h_new = o_g * jnp.tanh(c_new)
        c_scr[...] = c_new
        h_scr[...] = h_new
        y_ref[0, i] = h_new.astype(y_ref.dtype)

    @pl.when(t == pl.num_programs(1) - 1)
    def _():
        hN_ref[0] = h_scr[...].astype(hN_ref.dtype)
        cN_ref[0] = c_scr[...].astype(cN_ref.dtype)


def bilstm_layer(gx, w_hh, h0, c0, time_block_cap=32):
    """Fused fwd+bwd LSTM layer (precomputed input gates).
    gx:   (2, T, B, 4*Hp) f32   -- x @ W_ih + b per direction (padded, gate blocks Hp wide)
    w_hh: (2, Hp, 4*Hp)   bf16  -- recurrent weights per direction (padded)
    h0, c0: (2, B, Hp)    f32
    -> y: (2, T, B, Hp), hN: (2, B, Hp), cN: (2, B, Hp)"""
    _, T, B, fourHp = gx.shape
    Hp = fourHp // 4
    Tt = _pick_time_block(T, time_block_cap)
    nT = T // Tt
    grid_spec = pltpu.PrefetchScalarGridSpec(
        num_scalar_prefetch=0,
        grid=(2, nT),                                   # (direction, time-block)
        in_specs=[
            pl.BlockSpec((1, Tt, B, fourHp), lambda d, t: (d, t, 0, 0)),
            pl.BlockSpec((1, Hp, fourHp), lambda d, t: (d, 0, 0)),
            pl.BlockSpec((1, B, Hp), lambda d, t: (d, 0, 0)),
            pl.BlockSpec((1, B, Hp), lambda d, t: (d, 0, 0)),
        ],
        out_specs=[
            pl.BlockSpec((1, Tt, B, Hp), lambda d, t: (d, t, 0, 0)),
            pl.BlockSpec((1, B, Hp), lambda d, t: (d, 0, 0)),
            pl.BlockSpec((1, B, Hp), lambda d, t: (d, 0, 0)),
        ],
        scratch_shapes=[pltpu.VMEM((B, Hp), jnp.float32),
                        pltpu.VMEM((B, Hp), jnp.float32)],
    )
    # Direction axis is "parallel" (independent recurrences -> 2 TCs on v7x);
    # the sequential time axis is "arbitrary".
    return pl.pallas_call(
        _bilstm_layer_kernel,
        grid_spec=grid_spec,
        out_shape=[
            jax.ShapeDtypeStruct((2, T, B, Hp), jnp.float32),
            jax.ShapeDtypeStruct((2, B, Hp), jnp.float32),
            jax.ShapeDtypeStruct((2, B, Hp), jnp.float32),
        ],
        compiler_params=pltpu.CompilerParams(
            dimension_semantics=("parallel", "arbitrary")),
    )(gx, w_hh, h0, c0)


# ----------------- combined = out_f + flip(out_b, time) (lane-dense) -----------------
def _combine_kernel(yf_ref, yb_ref, comb_ref):
    Tt = yf_ref.shape[0]
    for i in range(Tt):                                  # static in-block time flip
        comb_ref[i] = yf_ref[i] + yb_ref[Tt - 1 - i]


def combine_flip_add(out_f, out_b, time_block_cap=32):
    """out_f, out_b: (T, B, Hp) f32 -> out_f + flip(out_b, axis=0), (T, B, Hp)."""
    T, B, Hp = out_f.shape
    Tt = _pick_time_block(T, time_block_cap)
    nT = T // Tt
    grid_spec = pltpu.PrefetchScalarGridSpec(
        num_scalar_prefetch=0,
        grid=(nT,),
        in_specs=[
            pl.BlockSpec((Tt, B, Hp), lambda t: (t, 0, 0)),
            pl.BlockSpec((Tt, B, Hp), lambda t: (nT - 1 - t, 0, 0)),  # block-level flip
        ],
        out_specs=pl.BlockSpec((Tt, B, Hp), lambda t: (t, 0, 0)),
    )
    return pl.pallas_call(
        _combine_kernel,
        grid_spec=grid_spec,
        out_shape=jax.ShapeDtypeStruct((T, B, Hp), jnp.float32),
        compiler_params=pltpu.CompilerParams(dimension_semantics=("parallel",)),
    )(out_f, out_b)


# ----------------------------- parameter preparation -----------------------------
def _prep_lstm_weights(w_ih, w_hh, b, d_in_pad, Hp):
    """Pad each i/f/g/o gate block from H -> Hp (and input rows to d_in_pad) with zeros."""
    Din, fourH = w_ih.shape
    H = fourH // 4
    w_ih_p = _pad_axis(_pad_axis(w_ih.reshape(Din, 4, H), 2, Hp), 0, d_in_pad)
    w_ih_p = w_ih_p.reshape(d_in_pad, 4 * Hp)
    w_hh_p = _pad_axis(_pad_axis(w_hh.reshape(H, 4, H), 2, Hp), 0, Hp).reshape(Hp, 4 * Hp)
    b_p = _pad_axis(b.reshape(1, 4, H), 2, Hp).reshape(1, 4 * Hp)
    return w_ih_p, w_hh_p, b_p


# ------------------------------- model wrapper -------------------------------
def init_params(key, vocab, emb_size, hidden_sizes):
    n_keys = 1 + 2 * 3 * len(hidden_sizes) + 2
    keys = iter(jax.random.split(key, n_keys))
    params = {"embedding": 0.1 * jax.random.normal(next(keys), (vocab, emb_size), jnp.float32)}

    def make_stack():
        stack = []
        d_in = emb_size
        for H in hidden_sizes:
            scale = 1.0 / jnp.sqrt(H)
            stack.append({
                "w_ih": scale * jax.random.normal(next(keys), (d_in, 4 * H), jnp.float32),
                "w_hh": scale * jax.random.normal(next(keys), (H, 4 * H), jnp.float32),
                "b":    scale * jax.random.normal(next(keys), (1, 4 * H), jnp.float32),
            })
            d_in = H
        return stack

    params["fwd"] = make_stack()
    params["bwd"] = make_stack()
    H_last = hidden_sizes[-1]
    params["w_dec"] = (1.0 / jnp.sqrt(H_last)) * jax.random.normal(next(keys), (H_last, vocab), jnp.float32)
    params["b_dec"] = 0.1 * jax.random.normal(next(keys), (1, vocab), jnp.float32)
    return params


def init_hidden(bsz, hidden_sizes):
    return [(jnp.zeros((bsz, H), jnp.float32), jnp.zeros((bsz, H), jnp.float32))
            for H in hidden_sizes]


def bilm_forward(params, input_f, input_b, hidden_f, hidden_b):
    T, B = input_f.shape
    emb = params["embedding"]
    # encoder (embedding gather) + dropout (eval-mode identity) -- plain JAX glue
    # TODO(synk): training-mode dropout omitted (eval mode => identity).
    xx = jnp.stack([emb[input_f], emb[input_b]], axis=0)   # (2, T, B, E)

    new_hf, new_hb = [], []
    for li, (lp_f, lp_b) in enumerate(zip(params["fwd"], params["bwd"])):
        H = lp_f["w_hh"].shape[0]
        Hp = _round_up(H, 128)
        d_in_pad = xx.shape[-1]                            # E for layer 0, Hp_prev after

        wih_f, whh_f, bia_f = _prep_lstm_weights(lp_f["w_ih"], lp_f["w_hh"], lp_f["b"], d_in_pad, Hp)
        wih_b, whh_b, bia_b = _prep_lstm_weights(lp_b["w_ih"], lp_b["w_hh"], lp_b["b"], d_in_pad, Hp)
        wih = jnp.stack([wih_f, wih_b], axis=0)                         # (2, d_in, 4Hp)
        bias = jnp.stack([bia_f, bia_b], axis=0)                        # (2, 1, 4Hp)
        whh = jnp.stack([whh_f, whh_b], axis=0).astype(jnp.bfloat16)    # (2, Hp, 4Hp)

        # Hoisted input projection: both directions in ONE batched Pallas GEMM.
        gx = matmul_bias_batched(xx.reshape(2, T * B, d_in_pad), wih, bias)
        gx = gx.reshape(2, T, B, 4 * Hp)                   # f32

        (h0f, c0f), (h0b, c0b) = hidden_f[li], hidden_b[li]
        h0 = jnp.stack([_pad_axis(h0f, 1, Hp), _pad_axis(h0b, 1, Hp)], axis=0)
        c0 = jnp.stack([_pad_axis(c0f, 1, Hp), _pad_axis(c0b, 1, Hp)], axis=0)

        y, hN, cN = bilstm_layer(gx, whh, h0, c0)          # fused fwd+bwd recurrence

        new_hf.append((hN[0, :, :H], cN[0, :, :H]))
        new_hb.append((hN[1, :, :H], cN[1, :, :H]))
        xx = y                                             # keep padded (2, T, B, Hp)

    H_last = params["fwd"][-1]["w_hh"].shape[0]
    Hp_last = _round_up(H_last, 128)
    V = params["w_dec"].shape[1]
    Vp = _round_up(V, 128)

    combined_p = combine_flip_add(xx[0], xx[1])            # (T, B, Hp_last)

    w_dec_p = _pad_axis(_pad_axis(params["w_dec"], 0, Hp_last), 1, Vp)   # (Hp, Vp)
    b_dec_p = _pad_axis(params["b_dec"], 1, Vp)                          # (1, Vp)
    dec_p = matmul_bias(combined_p.reshape(T * B, Hp_last), w_dec_p, b_dec_p)
    decoded = dec_p.reshape(T, B, Vp)[:, :, :V]
    combined = combined_p[:, :, :H_last]
    return decoded, (new_hf, new_hb), combined


# ------------------------------ pure-JAX reference ----------------------------
def _bf16_dot(a, b):
    # Matches the kernel's bf16-operand / f32-accumulation matmul scheme.
    return jnp.dot(a.astype(jnp.bfloat16), b.astype(jnp.bfloat16),
                   preferred_element_type=jnp.float32)


def _ref_lstm_layer(x, w_ih, w_hh, b, h0, c0):
    H = w_hh.shape[0]

    def step(carry, x_t):
        h, c = carry
        gates = _bf16_dot(x_t, w_ih) + _bf16_dot(h, w_hh) + b[0]
        i = jax.nn.sigmoid(gates[:, 0:H]); f = jax.nn.sigmoid(gates[:, H:2 * H])
        g = jnp.tanh(gates[:, 2 * H:3 * H]); o = jax.nn.sigmoid(gates[:, 3 * H:4 * H])
        c = f * c + i * g
        h = o * jnp.tanh(c)
        return (h, c), h

    (hN, cN), y = jax.lax.scan(step, (h0, c0), x)
    return y, hN, cN


def ref_forward(params, input_f, input_b, hidden_f, hidden_b):
    def run_stack(emb_seq, stack, hidden):
        x = emb_seq
        for lp, (h0, c0) in zip(stack, hidden):
            x, _, _ = _ref_lstm_layer(x, lp["w_ih"], lp["w_hh"], lp["b"], h0, c0)
        return x

    out_f = run_stack(params["embedding"][input_f], params["fwd"], hidden_f)
    out_b = run_stack(params["embedding"][input_b], params["bwd"], hidden_b)
    combined = out_f + jnp.flip(out_b, axis=0)
    T, B, H = combined.shape
    decoded = (_bf16_dot(combined.reshape(T * B, H), params["w_dec"])
               + params["b_dec"][0]).reshape(T, B, -1)
    return decoded, combined


# ------------------------------------ main ------------------------------------
if __name__ == "__main__":
    VOCAB, EMB, HIDDEN_SIZES = 50, 32, (32, 32)
    T, B = 8, 2

    key = jax.random.PRNGKey(0)
    k_param, k_tok = jax.random.split(key)
    params = init_params(k_param, VOCAB, EMB, HIDDEN_SIZES)

    input_f = jax.random.randint(k_tok, (T, B), 0, VOCAB, dtype=jnp.int32)
    input_b = jnp.flip(input_f, axis=0)           # backward-direction token stream

    hidden_f = init_hidden(B, HIDDEN_SIZES)
    hidden_b = init_hidden(B, HIDDEN_SIZES)

    fwd = jax.jit(bilm_forward)
    decoded, (hf, hb), output = fwd(params, input_f, input_b, hidden_f, hidden_b)
    jax.block_until_ready((decoded, hf, hb, output))

    dec_ref, out_ref = ref_forward(params, input_f, input_b, hidden_f, hidden_b)
    assert decoded.shape == (T, B, VOCAB) and output.shape == (T, B, HIDDEN_SIZES[-1])
    assert jnp.allclose(decoded, dec_ref, rtol=2e-3, atol=2e-3), "decoded mismatch vs reference"
    assert jnp.allclose(output, out_ref, rtol=2e-3, atol=2e-3), "combined output mismatch vs reference"

    print("KERNEL_OK")
</pallas_src>

<mosaic_0001>
module attributes {stable_mosaic.version = 11 : i64} {
  func.func @_bmatmul_bias_kernel(%arg0: i32, %arg1: i32, %arg2: i32, %arg3: memref<1x16x32xf32, #tpu.memory_space<vmem>>, %arg4: memref<1x32x512xf32, #tpu.memory_space<vmem>>, %arg5: memref<1x1x512xf32, #tpu.memory_space<vmem>>, %arg6: memref<1x16x512xf32, #tpu.memory_space<vmem>>) attributes {dimension_semantics = [#tpu.dimension_semantics<parallel>, #tpu.dimension_semantics<parallel>, #tpu.dimension_semantics<parallel>], iteration_bounds = array<i64: 2, 1, 1>, scalar_prefetch = 0 : i64, scratch_operands = 0 : i64, tpu.core_type = #tpu.core_type<tc>, window_params = [{transform_indices = @transform_0, window_bounds = array<i64: 1, 16, 32>}, {transform_indices = @transform_1, window_bounds = array<i64: 1, 32, 512>}, {transform_indices = @transform_2, window_bounds = array<i64: 1, 1, 512>}, {transform_indices = @transform_3, window_bounds = array<i64: 1, 16, 512>}]} {
    %c0 = arith.constant 0 : index
    %c0_0 = arith.constant 0 : index
    %c0_1 = arith.constant 0 : index
    %0 = vector.load %arg3[%c0, %c0_0, %c0_1] : memref<1x16x32xf32, #tpu.memory_space<vmem>>, vector<1x16x32xf32>
    %1 = vector.shape_cast %0 : vector<1x16x32xf32> to vector<16x32xf32>
    %2 = arith.truncf %1 : vector<16x32xf32> to vector<16x32xbf16>
    %c0_2 = arith.constant 0 : index
    %c0_3 = arith.constant 0 : index
    %c0_4 = arith.constant 0 : index
    %3 = vector.load %arg4[%c0_2, %c0_3, %c0_4] : memref<1x32x512xf32, #tpu.memory_space<vmem>>, vector<1x32x512xf32>
    %4 = vector.shape_cast %3 : vector<1x32x512xf32> to vector<32x512xf32>
    %5 = arith.truncf %4 : vector<32x512xf32> to vector<32x512xbf16>
    %cst = arith.constant dense<0.000000e+00> : vector<16x512xf32>
    %6 = tpu.matmul %2, %5, %cst {dimension_numbers = #tpu.dot_dimension_numbers<[1], [0], [0], [1], [0, 0, 1, 1], [], []>} : vector<16x32xbf16>, vector<32x512xbf16>, vector<16x512xf32> -> vector<16x512xf32>
    %c0_5 = arith.constant 0 : index
    %c0_6 = arith.constant 0 : index
    %c0_7 = arith.constant 0 : index
    %7 = vector.load %arg5[%c0_5, %c0_6, %c0_7] : memref<1x1x512xf32, #tpu.memory_space<vmem>>, vector<1x1x512xf32>
    %8 = vector.shape_cast %7 : vector<1x1x512xf32> to vector<1x512xf32>
    %9 = vector.broadcast %8 : vector<1x512xf32> to vector<16x512xf32>
    %10 = arith.addf %6, %9 : vector<16x512xf32>
    %c0_8 = arith.constant 0 : index
    %c0_9 = arith.constant 0 : index
    %c0_10 = arith.constant 0 : index
    %11 = vector.load %arg6[%c0_8, %c0_9, %c0_10] : memref<1x16x512xf32, #tpu.memory_space<vmem>>, vector<1x16x512xf32>
    %12 = vector.shape_cast %11 : vector<1x16x512xf32> to vector<16x512xf32>
    %13 = vector.shape_cast %10 : vector<16x512xf32> to vector<1x16x512xf32>
    tpu.vector_store %arg6[%c0_8, %c0_9, %c0_10], %13 {strides = array<i32>} : memref<1x16x512xf32, #tpu.memory_space<vmem>>, vector<1x16x512xf32>,
    return
  }
  func.func @transform_0(%arg0: i32, %arg1: i32, %arg2: i32) -> (i32, i32, i32) {
    %c0_i32 = arith.constant 0 : i32
    %c0_i32_0 = arith.constant 0 : i32
    return %arg0, %arg1, %c0_i32 : i32, i32, i32
  }
  func.func @transform_1(%arg0: i32, %arg1: i32, %arg2: i32) -> (i32, i32, i32) {
    %c0_i32 = arith.constant 0 : i32
    %c0_i32_0 = arith.constant 0 : i32
    return %arg0, %c0_i32, %arg2 : i32, i32, i32
  }
  func.func @transform_2(%arg0: i32, %arg1: i32, %arg2: i32) -> (i32, i32, i32) {
    %c0_i32 = arith.constant 0 : i32
    %c0_i32_0 = arith.constant 0 : i32
    return %arg0, %c0_i32, %arg2 : i32, i32, i32
  }
  func.func @transform_3(%arg0: i32, %arg1: i32, %arg2: i32) -> (i32, i32, i32) {
    %c0_i32 = arith.constant 0 : i32
    return %arg0, %arg1, %arg2 : i32, i32, i32
  }
}

module attributes {stable_mosaic.version = 11 : i64} {
  func.func @_bilstm_layer_kernel(%arg0: i32, %arg1: i32, %arg2: memref<1x8x2x512xf32, #tpu.memory_space<vmem>>, %arg3: memref<1x128x512xbf16, #tpu.memory_space<vmem>>, %arg4: memref<1x2x128xf32, #tpu.memory_space<vmem>>, %arg5: memref<1x2x128xf32, #tpu.memory_space<vmem>>, %arg6: memref<1x8x2x128xf32, #tpu.memory_space<vmem>>, %arg7: memref<1x2x128xf32, #tpu.memory_space<vmem>>, %arg8: memref<1x2x128xf32, #tpu.memory_space<vmem>>, %arg9: memref<2x128xf32, #tpu.memory_space<vmem>>, %arg10: memref<2x128xf32, #tpu.memory_space<vmem>>) attributes {dimension_semantics = [#tpu.dimension_semantics<parallel>, #tpu.dimension_semantics<arbitrary>], iteration_bounds = array<i64: 2, 1>, scalar_prefetch = 0 : i64, scratch_operands = 2 : i64, tpu.core_type = #tpu.core_type<tc>, window_params = [{transform_indices = @transform_0, window_bounds = array<i64: 1, 8, 2, 512>}, {transform_indices = @transform_1, window_bounds = array<i64: 1, 128, 512>}, {transform_indices = @transform_2, window_bounds = array<i64: 1, 2, 128>}, {transform_indices = @transform_3, window_bounds = array<i64: 1, 2, 128>}, {transform_indices = @transform_4, window_bounds = array<i64: 1, 8, 2, 128>}, {transform_indices = @transform_5, window_bounds = array<i64: 1, 2, 128>}, {transform_indices = @transform_6, window_bounds = array<i64: 1, 2, 128>}]} {
    %c0_i32 = arith.constant 0 : i32
    %0 = arith.cmpi eq, %arg1, %c0_i32 : i32
    %1 = arith.extui %0 : i1 to i32
    %c0_i32_0 = arith.constant 0 : i32
    %2 = arith.cmpi ne, %1, %c0_i32_0 : i32
    scf.if %2 {
      %c0_157 = arith.constant 0 : index
      %c0_158 = arith.constant 0 : index
      %c0_159 = arith.constant 0 : index
      %304 = vector.load %arg4[%c0_157, %c0_158, %c0_159] : memref<1x2x128xf32, #tpu.memory_space<vmem>>, vector<1x2x128xf32>
      %305 = vector.shape_cast %304 : vector<1x2x128xf32> to vector<2x128xf32>
      %c0_160 = arith.constant 0 : index
      %c0_161 = arith.constant 0 : index
      %306 = vector.load %arg9[%c0_160, %c0_161] : memref<2x128xf32, #tpu.memory_space<vmem>>, vector<2x128xf32>
      tpu.vector_store %arg9[%c0_160, %c0_161], %305 {strides = array<i32>} : memref<2x128xf32, #tpu.memory_space<vmem>>, vector<2x128xf32>,
      %c0_162 = arith.constant 0 : index
      %c0_163 = arith.constant 0 : index
      %c0_164 = arith.constant 0 : index
      %307 = vector.load %arg5[%c0_162, %c0_163, %c0_164] : memref<1x2x128xf32, #tpu.memory_space<vmem>>, vector<1x2x128xf32>
      %308 = vector.shape_cast %307 : vector<1x2x128xf32> to vector<2x128xf32>
      %c0_165 = arith.constant 0 : index
      %c0_166 = arith.constant 0 : index
      %309 = vector.load %arg10[%c0_165, %c0_166] : memref<2x128xf32, #tpu.memory_space<vmem>>, vector<2x128xf32>
      tpu.vector_store %arg10[%c0_165, %c0_166], %308 {strides = array<i32>} : memref<2x128xf32, #tpu.memory_space<vmem>>, vector<2x128xf32>,
    } else {
    }
    %c0 = arith.constant 0 : index
    %c0_1 = arith.constant 0 : index
    %c0_2 = arith.constant 0 : index
    %3 = vector.load %arg3[%c0, %c0_1, %c0_2] : memref<1x128x512xbf16, #tpu.memory_space<vmem>>, vector<1x128x512xbf16>
    %4 = vector.shape_cast %3 : vector<1x128x512xbf16> to vector<128x512xbf16>
    %c0_3 = arith.constant 0 : index
    %c0_4 = arith.constant 0 : index
    %c0_5 = arith.constant 0 : index
    %c0_6 = arith.constant 0 : index
    %5 = vector.load %arg2[%c0_3, %c0_4, %c0_5, %c0_6] : memref<1x8x2x512xf32, #tpu.memory_space<vmem>>, vector<1x1x2x512xf32>
    %6 = vector.shape_cast %5 : vector<1x1x2x512xf32> to vector<2x512xf32>
    %c0_7 = arith.constant 0 : index
    %c0_8 = arith.constant 0 : index
    %7 = vector.load %arg9[%c0_7, %c0_8] : memref<2x128xf32, #tpu.memory_space<vmem>>, vector<2x128xf32>
    %8 = arith.truncf %7 : vector<2x128xf32> to vector<2x128xbf16>
    %cst = arith.constant dense<0.000000e+00> : vector<2x512xf32>
    %9 = tpu.matmul %8, %4, %cst {dimension_numbers = #tpu.dot_dimension_numbers<[1], [0], [0], [1], [0, 0, 1, 1], [], []>} : vector<2x128xbf16>, vector<128x512xbf16>, vector<2x512xf32> -> vector<2x512xf32>
    %10 = arith.addf %6, %9 : vector<2x512xf32>
    %11 = vector.extract_strided_slice %10 {offsets = [0, 0], sizes = [2, 128], strides = [1, 1]} : vector<2x512xf32> to vector<2x128xf32>
    %12 = arith.negf %11 : vector<2x128xf32>
    %13 = math.exp %12 : vector<2x128xf32>
    %cst_9 = arith.constant 1.000000e+00 : f32
    %14 = vector.broadcast %cst_9 : f32 to vector<2x128xf32>
    %15 = arith.addf %14, %13 : vector<2x128xf32>
    %16 = arith.divf %14, %15 : vector<2x128xf32>
    %17 = vector.extract_strided_slice %10 {offsets = [0, 128], sizes = [2, 128], strides = [1, 1]} : vector<2x512xf32> to vector<2x128xf32>
    %18 = arith.negf %17 : vector<2x128xf32>
    %19 = math.exp %18 : vector<2x128xf32>
    %cst_10 = arith.constant 1.000000e+00 : f32
    %20 = vector.broadcast %cst_10 : f32 to vector<2x128xf32>
    %21 = arith.addf %20, %19 : vector<2x128xf32>
    %22 = arith.divf %20, %21 : vector<2x128xf32>
    %23 = vector.extract_strided_slice %10 {offsets = [0, 256], sizes = [2, 128], strides = [1, 1]} : vector<2x512xf32> to vector<2x128xf32>
    %24 = math.tanh %23 : vector<2x128xf32>
    %25 = vector.extract_strided_slice %10 {offsets = [0, 384], sizes = [2, 128], strides = [1, 1]} : vector<2x512xf32> to vector<2x128xf32>
    %26 = arith.negf %25 : vector<2x128xf32>
    %27 = math.exp %26 : vector<2x128xf32>
    %cst_11 = arith.constant 1.000000e+00 : f32
    %28 = vector.broadcast %cst_11 : f32 to vector<2x128xf32>
    %29 = arith.addf %28, %27 : vector<2x128xf32>
    %30 = arith.divf %28, %29 : vector<2x128xf32>
    %c0_12 = arith.constant 0 : index
    %c0_13 = arith.constant 0 : index
    %31 = vector.load %arg10[%c0_12, %c0_13] : memref<2x128xf32, #tpu.memory_space<vmem>>, vector<2x128xf32>
    %32 = arith.mulf %22, %31 : vector<2x128xf32>
    %33 = arith.mulf %16, %24 : vector<2x128xf32>
    %34 = arith.addf %32, %33 : vector<2x128xf32>
    %35 = math.tanh %34 : vector<2x128xf32>
    %36 = arith.mulf %30, %35 : vector<2x128xf32>
    %c0_14 = arith.constant 0 : index
    %c0_15 = arith.constant 0 : index
    %37 = vector.load %arg10[%c0_14, %c0_15] : memref<2x128xf32, #tpu.memory_space<vmem>>, vector<2x128xf32>
    tpu.vector_store %arg10[%c0_14, %c0_15], %34 {strides = array<i32>} : memref<2x128xf32, #tpu.memory_space<vmem>>, vector<2x128xf32>,
    %c0_16 = arith.constant 0 : index
    %c0_17 = arith.constant 0 : index
    %38 = vector.load %arg9[%c0_16, %c0_17] : memref<2x128xf32, #tpu.memory_space<vmem>>, vector<2x128xf32>
    tpu.vector_store %arg9[%c0_16, %c0_17], %36 {strides = array<i32>} : memref<2x128xf32, #tpu.memory_space<vmem>>, vector<2x128xf32>,
    %c0_18 = arith.constant 0 : index
    %c0_19 = arith.constant 0 : index
    %c0_20 = arith.constant 0 : index
    %c0_21 = arith.constant 0 : index
    %39 = vector.load %arg6[%c0_18, %c0_19, %c0_20, %c0_21] : memref<1x8x2x128xf32, #tpu.memory_space<vmem>>, vector<1x1x2x128xf32>
    %40 = vector.shape_cast %39 : vector<1x1x2x128xf32> to vector<2x128xf32>
    %41 = vector.shape_cast %36 : vector<2x128xf32> to vector<1x1x2x128xf32>
    tpu.vector_store %arg6[%c0_18, %c0_19, %c0_20, %c0_21], %41 {strides = array<i32>} : memref<1x8x2x128xf32, #tpu.memory_space<vmem>>, vector<1x1x2x128xf32>,
    %c0_22 = arith.constant 0 : index
    %c1 = arith.constant 1 : index
    %c0_23 = arith.constant 0 : index
    %c0_24 = arith.constant 0 : index
    %42 = vector.load %arg2[%c0_22, %c1, %c0_23, %c0_24] : memref<1x8x2x512xf32, #tpu.memory_space<vmem>>, vector<1x1x2x512xf32>
    %43 = vector.shape_cast %42 : vector<1x1x2x512xf32> to vector<2x512xf32>
    %c0_25 = arith.constant 0 : index
    %c0_26 = arith.constant 0 : index
    %44 = vector.load %arg9[%c0_25, %c0_26] : memref<2x128xf32, #tpu.memory_space<vmem>>, vector<2x128xf32>
    %45 = arith.truncf %44 : vector<2x128xf32> to vector<2x128xbf16>
    %cst_27 = arith.constant dense<0.000000e+00> : vector<2x512xf32>
    %46 = tpu.matmul %45, %4, %cst_27 {dimension_numbers = #tpu.dot_dimension_numbers<[1], [0], [0], [1], [0, 0, 1, 1], [], []>} : vector<2x128xbf16>, vector<128x512xbf16>, vector<2x512xf32> -> vector<2x512xf32>
    %47 = arith.addf %43, %46 : vector<2x512xf32>
    %48 = vector.extract_strided_slice %47 {offsets = [0, 0], sizes = [2, 128], strides = [1, 1]} : vector<2x512xf32> to vector<2x128xf32>
    %49 = arith.negf %48 : vector<2x128xf32>
    %50 = math.exp %49 : vector<2x128xf32>
    %cst_28 = arith.constant 1.000000e+00 : f32
    %51 = vector.broadcast %cst_28 : f32 to vector<2x128xf32>
    %52 = arith.addf %51, %50 : vector<2x128xf32>
    %53 = arith.divf %51, %52 : vector<2x128xf32>
    %54 = vector.extract_strided_slice %47 {offsets = [0, 128], sizes = [2, 128], strides = [1, 1]} : vector<2x512xf32> to vector<2x128xf32>
    %55 = arith.negf %54 : vector<2x128xf32>
    %56 = math.exp %55 : vector<2x128xf32>
    %cst_29 = arith.constant 1.000000e+00 : f32
    %57 = vector.broadcast %cst_29 : f32 to vector<2x128xf32>
    %58 = arith.addf %57, %56 : vector<2x128xf32>
    %59 = arith.divf %57, %58 : vector<2x128xf32>
    %60 = vector.extract_strided_slice %47 {offsets = [0, 256], sizes = [2, 128], strides = [1, 1]} : vector<2x512xf32> to vector<2x128xf32>
    %61 = math.tanh %60 : vector<2x128xf32>
    %62 = vector.extract_strided_slice %47 {offsets = [0, 384], sizes = [2, 128], strides = [1, 1]} : vector<2x512xf32> to vector<2x128xf32>
    %63 = arith.negf %62 : vector<2x128xf32>
    %64 = math.exp %63 : vector<2x128xf32>
    %cst_30 = arith.constant 1.000000e+00 : f32
    %65 = vector.broadcast %cst_30 : f32 to vector<2x128xf32>
    %66 = arith.addf %65, %64 : vector<2x128xf32>
    %67 = arith.divf %65, %66 : vector<2x128xf32>
    %c0_31 = arith.constant 0 : index
    %c0_32 = arith.constant 0 : index
    %68 = vector.load %arg10[%c0_31, %c0_32] : memref<2x128xf32, #tpu.memory_space<vmem>>, vector<2x128xf32>
    %69 = arith.mulf %59, %68 : vector<2x128xf32>
    %70 = arith.mulf %53, %61 : vector<2x128xf32>
    %71 = arith.addf %69, %70 : vector<2x128xf32>
    %72 = math.tanh %71 : vector<2x128xf32>
    %73 = arith.mulf %67, %72 : vector<2x128xf32>
    %c0_33 = arith.constant 0 : index
    %c0_34 = arith.constant 0 : index
    %74 = vector.load %arg10[%c0_33, %c0_34] : memref<2x128xf32, #tpu.memory_space<vmem>>, vector<2x128xf32>
    tpu.vector_store %arg10[%c0_33, %c0_34], %71 {strides = array<i32>} : memref<2x128xf32, #tpu.memory_space<vmem>>, vector<2x128xf32>,
    %c0_35 = arith.constant 0 : index
    %c0_36 = arith.constant 0 : index
    %75 = vector.load %arg9[%c0_35, %c0_36] : memref<2x128xf32, #tpu.memory_space<vmem>>, vector<2x128xf32>
    tpu.vector_store %arg9[%c0_35, %c0_36], %73 {strides = array<i32>} : memref<2x128xf32, #tpu.memory_space<vmem>>, vector<2x128xf32>,
    %c0_37 = arith.constant 0 : index
    %c1_38 = arith.constant 1 : index
    %c0_39 = arith.constant 0 : index
    %c0_40 = arith.constant 0 : index
    %76 = vector.load %arg6[%c0_37, %c1_38, %c0_39, %c0_40] : memref<1x8x2x128xf32, #tpu.memory_space<vmem>>, vector<1x1x2x128xf32>
    %77 = vector.shape_cast %76 : vector<1x1x2x128xf32> to vector<2x128xf32>
    %78 = vector.shape_cast %73 : vector<2x128xf32> to vector<1x1x2x128xf32>
    tpu.vector_store %arg6[%c0_37, %c1_38, %c0_39, %c0_40], %78 {strides = array<i32>} : memref<1x8x2x128xf32, #tpu.memory_space<vmem>>, vector<1x1x2x128xf32>,
    %c0_41 = arith.constant 0 : index
    %c2 = arith.constant 2 : index
    %c0_42 = arith.constant 0 : index
    %c0_43 = arith.constant 0 : index
    %79 = vector.load %arg2[%c0_41, %c2, %c0_42, %c0_43] : memref<1x8x2x512xf32, #tpu.memory_space<vmem>>, vector<1x1x2x512xf32>
    %80 = vector.shape_cast %79 : vector<1x1x2x512xf32> to vector<2x512xf32>
    %c0_44 = arith.constant 0 : index
    %c0_45 = arith.constant 0 : index
    %81 = vector.load %arg9[%c0_44, %c0_45] : memref<2x128xf32, #tpu.memory_space<vmem>>, vector<2x128xf32>
    %82 = arith.truncf %81 : vector<2x128xf32> to vector<2x128xbf16>
    %cst_46 = arith.constant dense<0.000000e+00> : vector<2x512xf32>
    %83 = tpu.matmul %82, %4, %cst_46 {dimension_numbers = #tpu.dot_dimension_numbers<[1], [0], [0], [1], [0, 0, 1, 1], [], []>} : vector<2x128xbf16>, vector<128x512xbf16>, vector<2x512xf32> -> vector<2x512xf32>
    %84 = arith.addf %80, %83 : vector<2x512xf32>
    %85 = vector.extract_strided_slice %84 {offsets = [0, 0], sizes = [2, 128], strides = [1, 1]} : vector<2x512xf32> to vector<2x128xf32>
    %86 = arith.negf %85 : vector<2x128xf32>
    %87 = math.exp %86 : vector<2x128xf32>
    %cst_47 = arith.constant 1.000000e+00 : f32
    %88 = vector.broadcast %cst_47 : f32 to vector<2x128xf32>
    %89 = arith.addf %88, %87 : vector<2x128xf32>
    %90 = arith.divf %88, %89 : vector<2x128xf32>
    %91 = vector.extract_strided_slice %84 {offsets = [0, 128], sizes = [2, 128], strides = [1, 1]} : vector<2x512xf32> to vector<2x128xf32>
    %92 = arith.negf %91 : vector<2x128xf32>
    %93 = math.exp %92 : vector<2x128xf32>
    %cst_48 = arith.constant 1.000000e+00 : f32
    %94 = vector.broadcast %cst_48 : f32 to vector<2x128xf32>
    %95 = arith.addf %94, %93 : vector<2x128xf32>
    %96 = arith.divf %94, %95 : vector<2x128xf32>
    %97 = vector.extract_strided_slice %84 {offsets = [0, 256], sizes = [2, 128], strides = [1, 1]} : vector<2x512xf32> to vector<2x128xf32>
    %98 = math.tanh %97 : vector<2x128xf32>
    %99 = vector.extract_strided_slice %84 {offsets = [0, 384], sizes = [2, 128], strides = [1, 1]} : vector<2x512xf32> to vector<2x128xf32>
    %100 = arith.negf %99 : vector<2x128xf32>
    %101 = math.exp %100 : vector<2x128xf32>
    %cst_49 = arith.constant 1.000000e+00 : f32
    %102 = vector.broadcast %cst_49 : f32 to vector<2x128xf32>
    %103 = arith.addf %102, %101 : vector<2x128xf32>
    %104 = arith.divf %102, %103 : vector<2x128xf32>
    %c0_50 = arith.constant 0 : index
    %c0_51 = arith.constant 0 : index
    %105 = vector.load %arg10[%c0_50, %c0_51] : memref<2x128xf32, #tpu.memory_space<vmem>>, vector<2x128xf32>
    %106 = arith.mulf %96, %105 : vector<2x128xf32>
    %107 = arith.mulf %90, %98 : vector<2x128xf32>
    %108 = arith.addf %106, %107 : vector<2x128xf32>
    %109 = math.tanh %108 : vector<2x128xf32>
    %110 = arith.mulf %104, %109 : vector<2x128xf32>
    %c0_52 = arith.constant 0 : index
    %c0_53 = arith.constant 0 : index
    %111 = vector.load %arg10[%c0_52, %c0_53] : memref<2x128xf32, #tpu.memory_space<vmem>>, vector<2x128xf32>
    tpu.vector_store %arg10[%c0_52, %c0_53], %108 {strides = array<i32>} : memref<2x128xf32, #tpu.memory_space<vmem>>, vector<2x128xf32>,
    %c0_54 = arith.constant 0 : index
    %c0_55 = arith.constant 0 : index
    %112 = vector.load %arg9[%c0_54, %c0_55] : memref<2x128xf32, #tpu.memory_space<vmem>>, vector<2x128xf32>
    tpu.vector_store %arg9[%c0_54, %c0_55], %110 {strides = array<i32>} : memref<2x128xf32, #tpu.memory_space<vmem>>, vector<2x128xf32>,
    %c0_56 = arith.constant 0 : index
    %c2_57 = arith.constant 2 : index
    %c0_58 = arith.constant 0 : index
    %c0_59 = arith.constant 0 : index
    %113 = vector.load %arg6[%c0_56, %c2_57, %c0_58, %c0_59] : memref<1x8x2x128xf32, #tpu.memory_space<vmem>>, vector<1x1x2x128xf32>
    %114 = vector.shape_cast %113 : vector<1x1x2x128xf32> to vector<2x128xf32>
    %115 = vector.shape_cast %110 : vector<2x128xf32> to vector<1x1x2x128xf32>
    tpu.vector_store %arg6[%c0_56, %c2_57, %c0_58, %c0_59], %115 {strides = array<i32>} : memref<1x8x2x128xf32, #tpu.memory_space<vmem>>, vector<1x1x2x128xf32>,
    %c0_60 = arith.constant 0 : index
    %c3 = arith.constant 3 : index
    %c0_61 = arith.constant 0 : index
    %c0_62 = arith.constant 0 : index
    %116 = vector.load %arg2[%c0_60, %c3, %c0_61, %c0_62] : memref<1x8x2x512xf32, #tpu.memory_space<vmem>>, vector<1x1x2x512xf32>
    %117 = vector.shape_cast %116 : vector<1x1x2x512xf32> to vector<2x512xf32>
    %c0_63 = arith.constant 0 : index
    %c0_64 = arith.constant 0 : index
    %118 = vector.load %arg9[%c0_63, %c0_64] : memref<2x128xf32, #tpu.memory_space<vmem>>, vector<2x128xf32>
    %119 = arith.truncf %118 : vector<2x128xf32> to vector<2x128xbf16>
    %cst_65 = arith.constant dense<0.000000e+00> : vector<2x512xf32>
    %120 = tpu.matmul %119, %4, %cst_65 {dimension_numbers = #tpu.dot_dimension_numbers<[1], [0], [0], [1], [0, 0, 1, 1], [], []>} : vector<2x128xbf16>, vector<128x512xbf16>, vector<2x512xf32> -> vector<2x512xf32>
    %121 = arith.addf %117, %120 : vector<2x512xf32>
    %122 = vector.extract_strided_slice %121 {offsets = [0, 0], sizes = [2, 128], strides = [1, 1]} : vector<2x512xf32> to vector<2x128xf32>
    %123 = arith.negf %122 : vector<2x128xf32>
    %124 = math.exp %123 : vector<2x128xf32>
    %cst_66 = arith.constant 1.000000e+00 : f32
    %125 = vector.broadcast %cst_66 : f32 to vector<2x128xf32>
    %126 = arith.addf %125, %124 : vector<2x128xf32>
    %127 = arith.divf %125, %126 : vector<2x128xf32>
    %128 = vector.extract_strided_slice %121 {offsets = [0, 128], sizes = [2, 128], strides = [1, 1]} : vector<2x512xf32> to vector<2x128xf32>
    %129 = arith.negf %128 : vector<2x128xf32>
    %130 = math.exp %129 : vector<2x128xf32>
    %cst_67 = arith.constant 1.000000e+00 : f32
    %131 = vector.broadcast %cst_67 : f32 to vector<2x128xf32>
    %132 = arith.addf %131, %130 : vector<2x128xf32>
    %133 = arith.divf %131, %132 : vector<2x128xf32>
    %134 = vector.extract_strided_slice %121 {offsets = [0, 256], sizes = [2, 128], strides = [1, 1]} : vector<2x512xf32> to vector<2x128xf32>
    %135 = math.tanh %134 : vector<2x128xf32>
    %136 = vector.extract_strided_slice %121 {offsets = [0, 384], sizes = [2, 128], strides = [1, 1]} : vector<2x512xf32> to vector<2x128xf32>
    %137 = arith.negf %136 : vector<2x128xf32>
    %138 = math.exp %137 : vector<2x128xf32>
    %cst_68 = arith.constant 1.000000e+00 : f32
    %139 = vector.broadcast %cst_68 : f32 to vector<2x128xf32>
    %140 = arith.addf %139, %138 : vector<2x128xf32>
    %141 = arith.divf %139, %140 : vector<2x128xf32>
    %c0_69 = arith.constant 0 : index
    %c0_70 = arith.constant 0 : index
    %142 = vector.load %arg10[%c0_69, %c0_70] : memref<2x128xf32, #tpu.memory_space<vmem>>, vector<2x128xf32>
    %143 = arith.mulf %133, %142 : vector<2x128xf32>
    %144 = arith.mulf %127, %135 : vector<2x128xf32>
    %145 = arith.addf %143, %144 : vector<2x128xf32>
    %146 = math.tanh %145 : vector<2x128xf32>
    %147 = arith.mulf %141, %146 : vector<2x128xf32>
    %c0_71 = arith.constant 0 : index
    %c0_72 = arith.constant 0 : index
    %148 = vector.load %arg10[%c0_71, %c0_72] : memref<2x128xf32, #tpu.memory_space<vmem>>, vector<2x128xf32>
    tpu.vector_store %arg10[%c0_71, %c0_72], %145 {strides = array<i32>} : memref<2x128xf32, #tpu.memory_space<vmem>>, vector<2x128xf32>,
    %c0_73 = arith.constant 0 : index
    %c0_74 = arith.constant 0 : index
    %149 = vector.load %arg9[%c0_73, %c0_74] : memref<2x128xf32, #tpu.memory_space<vmem>>, vector<2x128xf32>
    tpu.vector_store %arg9[%c0_73, %c0_74], %147 {strides = array<i32>} : memref<2x128xf32, #tpu.memory_space<vmem>>, vector<2x128xf32>,
    %c0_75 = arith.constant 0 : index
    %c3_76 = arith.constant 3 : index
    %c0_77 = arith.constant 0 : index
    %c0_78 = arith.constant 0 : index
    %150 = vector.load %arg6[%c0_75, %c3_76, %c0_77, %c0_78] : memref<1x8x2x128xf32, #tpu.memory_space<vmem>>, vector<1x1x2x128xf32>
    %151 = vector.shape_cast %150 : vector<1x1x2x128xf32> to vector<2x128xf32>
    %152 = vector.shape_cast %147 : vector<2x128xf32> to vector<1x1x2x128xf32>
    tpu.vector_store %arg6[%c0_75, %c3_76, %c0_77, %c0_78], %152 {strides = array<i32>} : memref<1x8x2x128xf32, #tpu.memory_space<vmem>>, vector<1x1x2x128xf32>,
    %c0_79 = arith.constant 0 : index
    %c4 = arith.constant 4 : index
    %c0_80 = arith.constant 0 : index
    %c0_81 = arith.constant 0 : index
    %153 = vector.load %arg2[%c0_79, %c4, %c0_80, %c0_81] : memref<1x8x2x512xf32, #tpu.memory_space<vmem>>, vector<1x1x2x512xf32>
    %154 = vector.shape_cast %153 : vector<1x1x2x512xf32> to vector<2x512xf32>
    %c0_82 = arith.constant 0 : index
    %c0_83 = arith.constant 0 : index
    %155 = vector.load %arg9[%c0_82, %c0_83] : memref<2x128xf32, #tpu.memory_space<vmem>>, vector<2x128xf32>
    %156 = arith.truncf %155 : vector<2x128xf32> to vector<2x128xbf16>
    %cst_84 = arith.constant dense<0.000000e+00> : vector<2x512xf32>
    %157 = tpu.matmul %156, %4, %cst_84 {dimension_numbers = #tpu.dot_dimension_numbers<[1], [0], [0], [1], [0, 0, 1, 1], [], []>} : vector<2x128xbf16>, vector<128x512xbf16>, vector<2x512xf32> -> vector<2x512xf32>
    %158 = arith.addf %154, %157 : vector<2x512xf32>
    %159 = vector.extract_strided_slice %158 {offsets = [0, 0], sizes = [2, 128], strides = [1, 1]} : vector<2x512xf32> to vector<2x128xf32>
    %160 = arith.negf %159 : vector<2x128xf32>
    %161 = math.exp %160 : vector<2x128xf32>
    %cst_85 = arith.constant 1.000000e+00 : f32
    %162 = vector.broadcast %cst_85 : f32 to vector<2x128xf32>
    %163 = arith.addf %162, %161 : vector<2x128xf32>
    %164 = arith.divf %162, %163 : vector<2x128xf32>
    %165 = vector.extract_strided_slice %158 {offsets = [0, 128], sizes = [2, 128], strides = [1, 1]} : vector<2x512xf32> to vector<2x128xf32>
    %166 = arith.negf %165 : vector<2x128xf32>
    %167 = math.exp %166 : vector<2x128xf32>
    %cst_86 = arith.constant 1.000000e+00 : f32
    %168 = vector.broadcast %cst_86 : f32 to vector<2x128xf32>
    %169 = arith.addf %168, %167 : vector<2x128xf32>
    %170 = arith.divf %168, %169 : vector<2x128xf32>
    %171 = vector.extract_strided_slice %158 {offsets = [0, 256], sizes = [2, 128], strides = [1, 1]} : vector<2x512xf32> to vector<2x128xf32>
    %172 = math.tanh %171 : vector<2x128xf32>
    %173 = vector.extract_strided_slice %158 {offsets = [0, 384], sizes = [2, 128], strides = [1, 1]} : vector<2x512xf32> to vector<2x128xf32>
    %174 = arith.negf %173 : vector<2x128xf32>
    %175 = math.exp %174 : vector<2x128xf32>
    %cst_87 = arith.constant 1.000000e+00 : f32
    %176 = vector.broadcast %cst_87 : f32 to vector<2x128xf32>
    %177 = arith.addf %176, %175 : vector<2x128xf32>
    %178 = arith.divf %176, %177 : vector<2x128xf32>
    %c0_88 = arith.constant 0 : index
    %c0_89 = arith.constant 0 : index
    %179 = vector.load %arg10[%c0_88, %c0_89] : memref<2x128xf32, #tpu.memory_space<vmem>>, vector<2x128xf32>
    %180 = arith.mulf %170, %179 : vector<2x128xf32>
    %181 = arith.mulf %164, %172 : vector<2x128xf32>
    %182 = arith.addf %180, %181 : vector<2x128xf32>
    %183 = math.tanh %182 : vector<2x128xf32>
    %184 = arith.mulf %178, %183 : vector<2x128xf32>
    %c0_90 = arith.constant 0 : index
    %c0_91 = arith.constant 0 : index
    %185 = vector.load %arg10[%c0_90, %c0_91] : memref<2x128xf32, #tpu.memory_space<vmem>>, vector<2x128xf32>
    tpu.vector_store %arg10[%c0_90, %c0_91], %182 {strides = array<i32>} : memref<2x128xf32, #tpu.memory_space<vmem>>, vector<2x128xf32>,
    %c0_92 = arith.constant 0 : index
    %c0_93 = arith.constant 0 : index
    %186 = vector.load %arg9[%c0_92, %c0_93] : memref<2x128xf32, #tpu.memory_space<vmem>>, vector<2x128xf32>
    tpu.vector_store %arg9[%c0_92, %c0_93], %184 {strides = array<i32>} : memref<2x128xf32, #tpu.memory_space<vmem>>, vector<2x128xf32>,
    %c0_94 = arith.constant 0 : index
    %c4_95 = arith.constant 4 : index
    %c0_96 = arith.constant 0 : index
    %c0_97 = arith.constant 0 : index
    %187 = vector.load %arg6[%c0_94, %c4_95, %c0_96, %c0_97] : memref<1x8x2x128xf32, #tpu.memory_space<vmem>>, vector<1x1x2x128xf32>
    %188 = vector.shape_cast %187 : vector<1x1x2x128xf32> to vector<2x128xf32>
    %189 = vector.shape_cast %184 : vector<2x128xf32> to vector<1x1x2x128xf32>
    tpu.vector_store %arg6[%c0_94, %c4_95, %c0_96, %c0_97], %189 {strides = array<i32>} : memref<1x8x2x128xf32, #tpu.memory_space<vmem>>, vector<1x1x2x128xf32>,
    %c0_98 = arith.constant 0 : index
    %c5 = arith.constant 5 : index
    %c0_99 = arith.constant 0 : index
    %c0_100 = arith.constant 0 : index
    %190 = vector.load %arg2[%c0_98, %c5, %c0_99, %c0_100] : memref<1x8x2x512xf32, #tpu.memory_space<vmem>>, vector<1x1x2x512xf32>
    %191 = vector.shape_cast %190 : vector<1x1x2x512xf32> to vector<2x512xf32>
    %c0_101 = arith.constant 0 : index
    %c0_102 = arith.constant 0 : index
    %192 = vector.load %arg9[%c0_101, %c0_102] : memref<2x128xf32, #tpu.memory_space<vmem>>, vector<2x128xf32>
    %193 = arith.truncf %192 : vector<2x128xf32> to vector<2x128xbf16>
    %cst_103 = arith.constant dense<0.000000e+00> : vector<2x512xf32>
    %194 = tpu.matmul %193, %4, %cst_103 {dimension_numbers = #tpu.dot_dimension_numbers<[1], [0], [0], [1], [0, 0, 1, 1], [], []>} : vector<2x128xbf16>, vector<128x512xbf16>, vector<2x512xf32> -> vector<2x512xf32>
    %195 = arith.addf %191, %194 : vector<2x512xf32>
    %196 = vector.extract_strided_slice %195 {offsets = [0, 0], sizes = [2, 128], strides = [1, 1]} : vector<2x512xf32> to vector<2x128xf32>
    %197 = arith.negf %196 : vector<2x128xf32>
    %198 = math.exp %197 : vector<2x128xf32>
    %cst_104 = arith.constant 1.000000e+00 : f32
    %199 = vector.broadcast %cst_104 : f32 to vector<2x128xf32>
    %200 = arith.addf %199, %198 : vector<2x128xf32>
    %201 = arith.divf %199, %200 : vector<2x128xf32>
    %202 = vector.extract_strided_slice %195 {offsets = [0, 128], sizes = [2, 128], strides = [1, 1]} : vector<2x512xf32> to vector<2x128xf32>
    %203 = arith.negf %202 : vector<2x128xf32>
    %204 = math.exp %203 : vector<2x128xf32>
    %cst_105 = arith.constant 1.000000e+00 : f32
    %205 = vector.broadcast %cst_105 : f32 to vector<2x128xf32>
    %206 = arith.addf %205, %204 : vector<2x128xf32>
    %207 = arith.divf %205, %206 : vector<2x128xf32>
    %208 = vector.extract_strided_slice %195 {offsets = [0, 256], sizes = [2, 128], strides = [1, 1]} : vector<2x512xf32> to vector<2x128xf32>
    %209 = math.tanh %208 : vector<2x128xf32>
    %210 = vector.extract_strided_slice %195 {offsets = [0, 384], sizes = [2, 128], strides = [1, 1]} : vector<2x512xf32> to vector<2x128xf32>
    %211 = arith.negf %210 : vector<2x128xf32>
    %212 = math.exp %211 : vector<2x128xf32>
    %cst_106 = arith.constant 1.000000e+00 : f32
    %213 = vector.broadcast %cst_106 : f32 to vector<2x128xf32>
    %214 = arith.addf %213, %212 : vector<2x128xf32>
    %215 = arith.divf %213, %214 : vector<2x128xf32>
    %c0_107 = arith.constant 0 : index
    %c0_108 = arith.constant 0 : index
    %216 = vector.load %arg10[%c0_107, %c0_108] : memref<2x128xf32, #tpu.memory_space<vmem>>, vector<2x128xf32>
    %217 = arith.mulf %207, %216 : vector<2x128xf32>
    %218 = arith.mulf %201, %209 : vector<2x128xf32>
    %219 = arith.addf %217, %218 : vector<2x128xf32>
    %220 = math.tanh %219 : vector<2x128xf32>
    %221 = arith.mulf %215, %220 : vector<2x128xf32>
    %c0_109 = arith.constant 0 : index
    %c0_110 = arith.constant 0 : index
    %222 = vector.load %arg10[%c0_109, %c0_110] : memref<2x128xf32, #tpu.memory_space<vmem>>, vector<2x128xf32>
    tpu.vector_store %arg10[%c0_109, %c0_110], %219 {strides = array<i32>} : memref<2x128xf32, #tpu.memory_space<vmem>>, vector<2x128xf32>,
    %c0_111 = arith.constant 0 : index
    %c0_112 = arith.constant 0 : index
    %223 = vector.load %arg9[%c0_111, %c0_112] : memref<2x128xf32, #tpu.memory_space<vmem>>, vector<2x128xf32>
    tpu.vector_store %arg9[%c0_111, %c0_112], %221 {strides = array<i32>} : memref<2x128xf32, #tpu.memory_space<vmem>>, vector<2x128xf32>,
    %c0_113 = arith.constant 0 : index
    %c5_114 = arith.constant 5 : index
    %c0_115 = arith.constant 0 : index
    %c0_116 = arith.constant 0 : index
    %224 = vector.load %arg6[%c0_113, %c5_114, %c0_115, %c0_116] : memref<1x8x2x128xf32, #tpu.memory_space<vmem>>, vector<1x1x2x128xf32>
    %225 = vector.shape_cast %224 : vector<1x1x2x128xf32> to vector<2x128xf32>
    %226 = vector.shape_cast %221 : vector<2x128xf32> to vector<1x1x2x128xf32>
    tpu.vector_store %arg6[%c0_113, %c5_114, %c0_115, %c0_116], %226 {strides = array<i32>} : memref<1x8x2x128xf32, #tpu.memory_space<vmem>>, vector<1x1x2x128xf32>,
    %c0_117 = arith.constant 0 : index
    %c6 = arith.constant 6 : index
    %c0_118 = arith.constant 0 : index
    %c0_119 = arith.constant 0 : index
    %227 = vector.load %arg2[%c0_117, %c6, %c0_118, %c0_119] : memref<1x8x2x512xf32, #tpu.memory_space<vmem>>, vector<1x1x2x512xf32>
    %228 = vector.shape_cast %227 : vector<1x1x2x512xf32> to vector<2x512xf32>
    %c0_120 = arith.constant 0 : index
    %c0_121 = arith.constant 0 : index
    %229 = vector.load %arg9[%c0_120, %c0_121] : memref<2x128xf32, #tpu.memory_space<vmem>>, vector<2x128xf32>
    %230 = arith.truncf %229 : vector<2x128xf32> to vector<2x128xbf16>
    %cst_122 = arith.constant dense<0.000000e+00> : vector<2x512xf32>
    %231 = tpu.matmul %230, %4, %cst_122 {dimension_numbers = #tpu.dot_dimension_numbers<[1], [0], [0], [1], [0, 0, 1, 1], [], []>} : vector<2x128xbf16>, vector<128x512xbf16>, vector<2x512xf32> -> vector<2x512xf32>
    %232 = arith.addf %228, %231 : vector<2x512xf32>
    %233 = vector.extract_strided_slice %232 {offsets = [0, 0], sizes = [2, 128], strides = [1, 1]} : vector<2x512xf32> to vector<2x128xf32>
    %234 = arith.negf %233 : vector<2x128xf32>
    %235 = math.exp %234 : vector<2x128xf32>
    %cst_123 = arith.constant 1.000000e+00 : f32
    %236 = vector.broadcast %cst_123 : f32 to vector<2x128xf32>
    %237 = arith.addf %236, %235 : vector<2x128xf32>
    %238 = arith.divf %236, %237 : vector<2x128xf32>
    %239 = vector.extract_strided_slice %232 {offsets = [0, 128], sizes = [2, 128], strides = [1, 1]} : vector<2x512xf32> to vector<2x128xf32>
    %240 = arith.negf %239 : vector<2x128xf32>
    %241 = math.exp %240 : vector<2x128xf32>
    %cst_124 = arith.constant 1.000000e+00 : f32
    %242 = vector.broadcast %cst_124 : f32 to vector<2x128xf32>
    %243 = arith.addf %242, %241 : vector<2x128xf32>
    %244 = arith.divf %242, %243 : vector<2x128xf32>
    %245 = vector.extract_strided_slice %232 {offsets = [0, 256], sizes = [2, 128], strides = [1, 1]} : vector<2x512xf32> to vector<2x128xf32>
    %246 = math.tanh %245 : vector<2x128xf32>
    %247 = vector.extract_strided_slice %232 {offsets = [0, 384], sizes = [2, 128], strides = [1, 1]} : vector<2x512xf32> to vector<2x128xf32>
    %248 = arith.negf %247 : vector<2x128xf32>
    %249 = math.exp %248 : vector<2x128xf32>
    %cst_125 = arith.constant 1.000000e+00 : f32
    %250 = vector.broadcast %cst_125 : f32 to vector<2x128xf32>
    %251 = arith.addf %250, %249 : vector<2x128xf32>
    %252 = arith.divf %250, %251 : vector<2x128xf32>
    %c0_126 = arith.constant 0 : index
    %c0_127 = arith.constant 0 : index
    %253 = vector.load %arg10[%c0_126, %c0_127] : memref<2x128xf32, #tpu.memory_space<vmem>>, vector<2x128xf32>
    %254 = arith.mulf %244, %253 : vector<2x128xf32>
    %255 = arith.mulf %238, %246 : vector<2x128xf32>
    %256 = arith.addf %254, %255 : vector<2x128xf32>
    %257 = math.tanh %256 : vector<2x128xf32>
    %258 = arith.mulf %252, %257 : vector<2x128xf32>
    %c0_128 = arith.constant 0 : index
    %c0_129 = arith.constant 0 : index
    %259 = vector.load %arg10[%c0_128, %c0_129] : memref<2x128xf32, #tpu.memory_space<vmem>>, vector<2x128xf32>
    tpu.vector_store %arg10[%c0_128, %c0_129], %256 {strides = array<i32>} : memref<2x128xf32, #tpu.memory_space<vmem>>, vector<2x128xf32>,
    %c0_130 = arith.constant 0 : index
    %c0_131 = arith.constant 0 : index
    %260 = vector.load %arg9[%c0_130, %c0_131] : memref<2x128xf32, #tpu.memory_space<vmem>>, vector<2x128xf32>
    tpu.vector_store %arg9[%c0_130, %c0_131], %258 {strides = array<i32>} : memref<2x128xf32, #tpu.memory_space<vmem>>, vector<2x128xf32>,
    %c0_132 = arith.constant 0 : index
    %c6_133 = arith.constant 6 : index
    %c0_134 = arith.constant 0 : index
    %c0_135 = arith.constant 0 : index
    %261 = vector.load %arg6[%c0_132, %c6_133, %c0_134, %c0_135] : memref<1x8x2x128xf32, #tpu.memory_space<vmem>>, vector<1x1x2x128xf32>
    %262 = vector.shape_cast %261 : vector<1x1x2x128xf32> to vector<2x128xf32>
    %263 = vector.shape_cast %258 : vector<2x128xf32> to vector<1x1x2x128xf32>
    tpu.vector_store %arg6[%c0_132, %c6_133, %c0_134, %c0_135], %263 {strides = array<i32>} : memref<1x8x2x128xf32, #tpu.memory_space<vmem>>, vector<1x1x2x128xf32>,
    %c0_136 = arith.constant 0 : index
    %c7 = arith.constant 7 : index
    %c0_137 = arith.constant 0 : index
    %c0_138 = arith.constant 0 : index
    %264 = vector.load %arg2[%c0_136, %c7, %c0_137, %c0_138] : memref<1x8x2x512xf32, #tpu.memory_space<vmem>>, vector<1x1x2x512xf32>
    %265 = vector.shape_cast %264 : vector<1x1x2x512xf32> to vector<2x512xf32>
    %c0_139 = arith.constant 0 : index
    %c0_140 = arith.constant 0 : index
    %266 = vector.load %arg9[%c0_139, %c0_140] : memref<2x128xf32, #tpu.memory_space<vmem>>, vector<2x128xf32>
    %267 = arith.truncf %266 : vector<2x128xf32> to vector<2x128xbf16>
    %cst_141 = arith.constant dense<0.000000e+00> : vector<2x512xf32>
    %268 = tpu.matmul %267, %4, %cst_141 {dimension_numbers = #tpu.dot_dimension_numbers<[1], [0], [0], [1], [0, 0, 1, 1], [], []>} : vector<2x128xbf16>, vector<128x512xbf16>, vector<2x512xf32> -> vector<2x512xf32>
    %269 = arith.addf %265, %268 : vector<2x512xf32>
    %270 = vector.extract_strided_slice %269 {offsets = [0, 0], sizes = [2, 128], strides = [1, 1]} : vector<2x512xf32> to vector<2x128xf32>
    %271 = arith.negf %270 : vector<2x128xf32>
    %272 = math.exp %271 : vector<2x128xf32>
    %cst_142 = arith.constant 1.000000e+00 : f32
    %273 = vector.broadcast %cst_142 : f32 to vector<2x128xf32>
    %274 = arith.addf %273, %272 : vector<2x128xf32>
    %275 = arith.divf %273, %274 : vector<2x128xf32>
    %276 = vector.extract_strided_slice %269 {offsets = [0, 128], sizes = [2, 128], strides = [1, 1]} : vector<2x512xf32> to vector<2x128xf32>
    %277 = arith.negf %276 : vector<2x128xf32>
    %278 = math.exp %277 : vector<2x128xf32>
    %cst_143 = arith.constant 1.000000e+00 : f32
    %279 = vector.broadcast %cst_143 : f32 to vector<2x128xf32>
    %280 = arith.addf %279, %278 : vector<2x128xf32>
    %281 = arith.divf %279, %280 : vector<2x128xf32>
    %282 = vector.extract_strided_slice %269 {offsets = [0, 256], sizes = [2, 128], strides = [1, 1]} : vector<2x512xf32> to vector<2x128xf32>
    %283 = math.tanh %282 : vector<2x128xf32>
    %284 = vector.extract_strided_slice %269 {offsets = [0, 384], sizes = [2, 128], strides = [1, 1]} : vector<2x512xf32> to vector<2x128xf32>
    %285 = arith.negf %284 : vector<2x128xf32>
    %286 = math.exp %285 : vector<2x128xf32>
    %cst_144 = arith.constant 1.000000e+00 : f32
    %287 = vector.broadcast %cst_144 : f32 to vector<2x128xf32>
    %288 = arith.addf %287, %286 : vector<2x128xf32>
    %289 = arith.divf %287, %288 : vector<2x128xf32>
    %c0_145 = arith.constant 0 : index
    %c0_146 = arith.constant 0 : index
    %290 = vector.load %arg10[%c0_145, %c0_146] : memref<2x128xf32, #tpu.memory_space<vmem>>, vector<2x128xf32>
    %291 = arith.mulf %281, %290 : vector<2x128xf32>
    %292 = arith.mulf %275, %283 : vector<2x128xf32>
    %293 = arith.addf %291, %292 : vector<2x128xf32>
    %294 = math.tanh %293 : vector<2x128xf32>
    %295 = arith.mulf %289, %294 : vector<2x128xf32>
    %c0_147 = arith.constant 0 : index
    %c0_148 = arith.constant 0 : index
    %296 = vector.load %arg10[%c0_147, %c0_148] : memref<2x128xf32, #tpu.memory_space<vmem>>, vector<2x128xf32>
    tpu.vector_store %arg10[%c0_147, %c0_148], %293 {strides = array<i32>} : memref<2x128xf32, #tpu.memory_space<vmem>>, vector<2x128xf32>,
    %c0_149 = arith.constant 0 : index
    %c0_150 = arith.constant 0 : index
    %297 = vector.load %arg9[%c0_149, %c0_150] : memref<2x128xf32, #tpu.memory_space<vmem>>, vector<2x128xf32>
    tpu.vector_store %arg9[%c0_149, %c0_150], %295 {strides = array<i32>} : memref<2x128xf32, #tpu.memory_space<vmem>>, vector<2x128xf32>,
    %c0_151 = arith.constant 0 : index
    %c7_152 = arith.constant 7 : index
    %c0_153 = arith.constant 0 : index
    %c0_154 = arith.constant 0 : index
    %298 = vector.load %arg6[%c0_151, %c7_152, %c0_153, %c0_154] : memref<1x8x2x128xf32, #tpu.memory_space<vmem>>, vector<1x1x2x128xf32>
    %299 = vector.shape_cast %298 : vector<1x1x2x128xf32> to vector<2x128xf32>
    %300 = vector.shape_cast %295 : vector<2x128xf32> to vector<1x1x2x128xf32>
    tpu.vector_store %arg6[%c0_151, %c7_152, %c0_153, %c0_154], %300 {strides = array<i32>} : memref<1x8x2x128xf32, #tpu.memory_space<vmem>>, vector<1x1x2x128xf32>,
    %c0_i32_155 = arith.constant 0 : i32
    %301 = arith.cmpi eq, %arg1, %c0_i32_155 : i32
    %302 = arith.extui %301 : i1 to i32
    %c0_i32_156 = arith.constant 0 : i32
    %303 = arith.cmpi ne, %302, %c0_i32_156 : i32
    scf.if %303 {
      %c0_157 = arith.constant 0 : index
      %c0_158 = arith.constant 0 : index
      %304 = vector.load %arg9[%c0_157, %c0_158] : memref<2x128xf32, #tpu.memory_space<vmem>>, vector<2x128xf32>
      %c0_159 = arith.constant 0 : index
      %c0_160 = arith.constant 0 : index
      %c0_161 = arith.constant 0 : index
      %305 = vector.load %arg7[%c0_159, %c0_160, %c0_161] : memref<1x2x128xf32, #tpu.memory_space<vmem>>, vector<1x2x128xf32>
      %306 = vector.shape_cast %305 : vector<1x2x128xf32> to vector<2x128xf32>
      %307 = vector.shape_cast %304 : vector<2x128xf32> to vector<1x2x128xf32>
      tpu.vector_store %arg7[%c0_159, %c0_160, %c0_161], %307 {strides = array<i32>} : memref<1x2x128xf32, #tpu.memory_space<vmem>>, vector<1x2x128xf32>,
      %c0_162 = arith.constant 0 : index
      %c0_163 = arith.constant 0 : index
      %308 = vector.load %arg10[%c0_162, %c0_163] : memref<2x128xf32, #tpu.memory_space<vmem>>, vector<2x128xf32>
      %c0_164 = arith.constant 0 : index
      %c0_165 = arith.constant 0 : index
      %c0_166 = arith.constant 0 : index
      %309 = vector.load %arg8[%c0_164, %c0_165, %c0_166] : memref<1x2x128xf32, #tpu.memory_space<vmem>>, vector<1x2x128xf32>
      %310 = vector.shape_cast %309 : vector<1x2x128xf32> to vector<2x128xf32>
      %311 = vector.shape_cast %308 : vector<2x128xf32> to vector<1x2x128xf32>
      tpu.vector_store %arg8[%c0_164, %c0_165, %c0_166], %311 {strides = array<i32>} : memref<1x2x128xf32, #tpu.memory_space<vmem>>, vector<1x2x128xf32>,
    } else {
    }
    return
  }
  func.func @transform_0(%arg0: i32, %arg1: i32) -> (i32, i32, i32, i32) {
    %c0_i32 = arith.constant 0 : i32
    %c0_i32_0 = arith.constant 0 : i32
    %c0_i32_1 = arith.constant 0 : i32
    return %arg0, %arg1, %c0_i32, %c0_i32_0 : i32, i32, i32, i32
  }
  func.func @transform_1(%arg0: i32, %arg1: i32) -> (i32, i32, i32) {
    %c0_i32 = arith.constant 0 : i32
    %c0_i32_0 = arith.constant 0 : i32
    %c0_i32_1 = arith.constant 0 : i32
    return %arg0, %c0_i32, %c0_i32_0 : i32, i32, i32
  }
  func.func @transform_2(%arg0: i32, %arg1: i32) -> (i32, i32, i32) {
    %c0_i32 = arith.constant 0 : i32
    %c0_i32_0 = arith.constant 0 : i32
    %c0_i32_1 = arith.constant 0 : i32
    return %arg0, %c0_i32, %c0_i32_0 : i32, i32, i32
  }
  func.func @transform_3(%arg0: i32, %arg1: i32) -> (i32, i32, i32) {
    %c0_i32 = arith.constant 0 : i32
    %c0_i32_0 = arith.constant 0 : i32
    %c0_i32_1 = arith.constant 0 : i32
    return %arg0, %c0_i32, %c0_i32_0 : i32, i32, i32
  }
  func.func @transform_4(%arg0: i32, %arg1: i32) -> (i32, i32, i32, i32) {
    %c0_i32 = arith.constant 0 : i32
    %c0_i32_0 = arith.constant 0 : i32
    %c0_i32_1 = arith.constant 0 : i32
    return %arg0, %arg1, %c0_i32, %c0_i32_0 : i32, i32, i32, i32
  }
  func.func @transform_5(%arg0: i32, %arg1: i32) -> (i32, i32, i32) {
    %c0_i32 = arith.constant 0 : i32
    %c0_i32_0 = arith.constant 0 : i32
    %c0_i32_1 = arith.constant 0 : i32
    return %arg0, %c0_i32, %c0_i32_0 : i32, i32, i32
  }
  func.func @transform_6(%arg0: i32, %arg1: i32) -> (i32, i32, i32) {
    %c0_i32 = arith.constant 0 : i32
    %c0_i32_0 = arith.constant 0 : i32
    %c0_i32_1 = arith.constant 0 : i32
    return %arg0, %c0_i32, %c0_i32_0 : i32, i32, i32
  }
}

module attributes {stable_mosaic.version = 11 : i64} {
  func.func @_bmatmul_bias_kernel(%arg0: i32, %arg1: i32, %arg2: i32, %arg3: memref<1x16x128xf32, #tpu.memory_space<vmem>>, %arg4: memref<1x128x512xf32, #tpu.memory_space<vmem>>, %arg5: memref<1x1x512xf32, #tpu.memory_space<vmem>>, %arg6: memref<1x16x512xf32, #tpu.memory_space<vmem>>) attributes {dimension_semantics = [#tpu.dimension_semantics<parallel>, #tpu.dimension_semantics<parallel>, #tpu.dimension_semantics<parallel>], iteration_bounds = array<i64: 2, 1, 1>, scalar_prefetch = 0 : i64, scratch_operands = 0 : i64, tpu.core_type = #tpu.core_type<tc>, window_params = [{transform_indices = @transform_0, window_bounds = array<i64: 1, 16, 128>}, {transform_indices = @transform_1, window_bounds = array<i64: 1, 128, 512>}, {transform_indices = @transform_2, window_bounds = array<i64: 1, 1, 512>}, {transform_indices = @transform_3, window_bounds = array<i64: 1, 16, 512>}]} {
    %c0 = arith.constant 0 : index
    %c0_0 = arith.constant 0 : index
    %c0_1 = arith.constant 0 : index
    %0 = vector.load %arg3[%c0, %c0_0, %c0_1] : memref<1x16x128xf32, #tpu.memory_space<vmem>>, vector<1x16x128xf32>
    %1 = vector.shape_cast %0 : vector<1x16x128xf32> to vector<16x128xf32>
    %2 = arith.truncf %1 : vector<16x128xf32> to vector<16x128xbf16>
    %c0_2 = arith.constant 0 : index
    %c0_3 = arith.constant 0 : index
    %c0_4 = arith.constant 0 : index
    %3 = vector.load %arg4[%c0_2, %c0_3, %c0_4] : memref<1x128x512xf32, #tpu.memory_space<vmem>>, vector<1x128x512xf32>
    %4 = vector.shape_cast %3 : vector<1x128x512xf32> to vector<128x512xf32>
    %5 = arith.truncf %4 : vector<128x512xf32> to vector<128x512xbf16>
    %cst = arith.constant dense<0.000000e+00> : vector<16x512xf32>
    %6 = tpu.matmul %2, %5, %cst {dimension_numbers = #tpu.dot_dimension_numbers<[1], [0], [0], [1], [0, 0, 1, 1], [], []>} : vector<16x128xbf16>, vector<128x512xbf16>, vector<16x512xf32> -> vector<16x512xf32>
    %c0_5 = arith.constant 0 : index
    %c0_6 = arith.constant 0 : index
    %c0_7 = arith.constant 0 : index
    %7 = vector.load %arg5[%c0_5, %c0_6, %c0_7] : memref<1x1x512xf32, #tpu.memory_space<vmem>>, vector<1x1x512xf32>
    %8 = vector.shape_cast %7 : vector<1x1x512xf32> to vector<1x512xf32>
    %9 = vector.broadcast %8 : vector<1x512xf32> to vector<16x512xf32>
    %10 = arith.addf %6, %9 : vector<16x512xf32>
    %c0_8 = arith.constant 0 : index
    %c0_9 = arith.constant 0 : index
    %c0_10 = arith.constant 0 : index
    %11 = vector.load %arg6[%c0_8, %c0_9, %c0_10] : memref<1x16x512xf32, #tpu.memory_space<vmem>>, vector<1x16x512xf32>
    %12 = vector.shape_cast %11 : vector<1x16x512xf32> to vector<16x512xf32>
    %13 = vector.shape_cast %10 : vector<16x512xf32> to vector<1x16x512xf32>
    tpu.vector_store %arg6[%c0_8, %c0_9, %c0_10], %13 {strides = array<i32>} : memref<1x16x512xf32, #tpu.memory_space<vmem>>, vector<1x16x512xf32>,
    return
  }
  func.func @transform_0(%arg0: i32, %arg1: i32, %arg2: i32) -> (i32, i32, i32) {
    %c0_i32 = arith.constant 0 : i32
    %c0_i32_0 = arith.constant 0 : i32
    return %arg0, %arg1, %c0_i32 : i32, i32, i32
  }
  func.func @transform_1(%arg0: i32, %arg1: i32, %arg2: i32) -> (i32, i32, i32) {
    %c0_i32 = arith.constant 0 : i32
    %c0_i32_0 = arith.constant 0 : i32
    return %arg0, %c0_i32, %arg2 : i32, i32, i32
  }
  func.func @transform_2(%arg0: i32, %arg1: i32, %arg2: i32) -> (i32, i32, i32) {
    %c0_i32 = arith.constant 0 : i32
    %c0_i32_0 = arith.constant 0 : i32
    return %arg0, %c0_i32, %arg2 : i32, i32, i32
  }
  func.func @transform_3(%arg0: i32, %arg1: i32, %arg2: i32) -> (i32, i32, i32) {
    %c0_i32 = arith.constant 0 : i32
    return %arg0, %arg1, %arg2 : i32, i32, i32
  }
}

module attributes {stable_mosaic.version = 11 : i64} {
  func.func @_combine_kernel(%arg0: i32, %arg1: memref<8x2x128xf32, #tpu.memory_space<vmem>>, %arg2: memref<8x2x128xf32, #tpu.memory_space<vmem>>, %arg3: memref<8x2x128xf32, #tpu.memory_space<vmem>>) attributes {dimension_semantics = [#tpu.dimension_semantics<parallel>], iteration_bounds = array<i64: 1>, scalar_prefetch = 0 : i64, scratch_operands = 0 : i64, tpu.core_type = #tpu.core_type<tc>, window_params = [{transform_indices = @transform_0, window_bounds = array<i64: 8, 2, 128>}, {transform_indices = @transform_1, window_bounds = array<i64: 8, 2, 128>}, {transform_indices = @transform_2, window_bounds = array<i64: 8, 2, 128>}]} {
    %c0 = arith.constant 0 : index
    %c0_0 = arith.constant 0 : index
    %c0_1 = arith.constant 0 : index
    %0 = vector.load %arg1[%c0, %c0_0, %c0_1] : memref<8x2x128xf32, #tpu.memory_space<vmem>>, vector<1x2x128xf32>
    %1 = vector.shape_cast %0 : vector<1x2x128xf32> to vector<2x128xf32>
    %c7 = arith.constant 7 : index
    %c0_2 = arith.constant 0 : index
    %c0_3 = arith.constant 0 : index
    %2 = vector.load %arg2[%c7, %c0_2, %c0_3] : memref<8x2x128xf32, #tpu.memory_space<vmem>>, vector<1x2x128xf32>
    %3 = vector.shape_cast %2 : vector<1x2x128xf32> to vector<2x128xf32>
    %4 = arith.addf %1, %3 : vector<2x128xf32>
    %c0_4 = arith.constant 0 : index
    %c0_5 = arith.constant 0 : index
    %c0_6 = arith.constant 0 : index
    %5 = vector.load %arg3[%c0_4, %c0_5, %c0_6] : memref<8x2x128xf32, #tpu.memory_space<vmem>>, vector<1x2x128xf32>
    %6 = vector.shape_cast %5 : vector<1x2x128xf32> to vector<2x128xf32>
    %7 = vector.shape_cast %4 : vector<2x128xf32> to vector<1x2x128xf32>
    tpu.vector_store %arg3[%c0_4, %c0_5, %c0_6], %7 {strides = array<i32>} : memref<8x2x128xf32, #tpu.memory_space<vmem>>, vector<1x2x128xf32>,
    %c1 = arith.constant 1 : index
    %c0_7 = arith.constant 0 : index
    %c0_8 = arith.constant 0 : index
    %8 = vector.load %arg1[%c1, %c0_7, %c0_8] : memref<8x2x128xf32, #tpu.memory_space<vmem>>, vector<1x2x128xf32>
    %9 = vector.shape_cast %8 : vector<1x2x128xf32> to vector<2x128xf32>
    %c6 = arith.constant 6 : index
    %c0_9 = arith.constant 0 : index
    %c0_10 = arith.constant 0 : index
    %10 = vector.load %arg2[%c6, %c0_9, %c0_10] : memref<8x2x128xf32, #tpu.memory_space<vmem>>, vector<1x2x128xf32>
    %11 = vector.shape_cast %10 : vector<1x2x128xf32> to vector<2x128xf32>
    %12 = arith.addf %9, %11 : vector<2x128xf32>
    %c1_11 = arith.constant 1 : index
    %c0_12 = arith.constant 0 : index
    %c0_13 = arith.constant 0 : index
    %13 = vector.load %arg3[%c1_11, %c0_12, %c0_13] : memref<8x2x128xf32, #tpu.memory_space<vmem>>, vector<1x2x128xf32>
    %14 = vector.shape_cast %13 : vector<1x2x128xf32> to vector<2x128xf32>
    %15 = vector.shape_cast %12 : vector<2x128xf32> to vector<1x2x128xf32>
    tpu.vector_store %arg3[%c1_11, %c0_12, %c0_13], %15 {strides = array<i32>} : memref<8x2x128xf32, #tpu.memory_space<vmem>>, vector<1x2x128xf32>,
    %c2 = arith.constant 2 : index
    %c0_14 = arith.constant 0 : index
    %c0_15 = arith.constant 0 : index
    %16 = vector.load %arg1[%c2, %c0_14, %c0_15] : memref<8x2x128xf32, #tpu.memory_space<vmem>>, vector<1x2x128xf32>
    %17 = vector.shape_cast %16 : vector<1x2x128xf32> to vector<2x128xf32>
    %c5 = arith.constant 5 : index
    %c0_16 = arith.constant 0 : index
    %c0_17 = arith.constant 0 : index
    %18 = vector.load %arg2[%c5, %c0_16, %c0_17] : memref<8x2x128xf32, #tpu.memory_space<vmem>>, vector<1x2x128xf32>
    %19 = vector.shape_cast %18 : vector<1x2x128xf32> to vector<2x128xf32>
    %20 = arith.addf %17, %19 : vector<2x128xf32>
    %c2_18 = arith.constant 2 : index
    %c0_19 = arith.constant 0 : index
    %c0_20 = arith.constant 0 : index
    %21 = vector.load %arg3[%c2_18, %c0_19, %c0_20] : memref<8x2x128xf32, #tpu.memory_space<vmem>>, vector<1x2x128xf32>
    %22 = vector.shape_cast %21 : vector<1x2x128xf32> to vector<2x128xf32>
    %23 = vector.shape_cast %20 : vector<2x128xf32> to vector<1x2x128xf32>
    tpu.vector_store %arg3[%c2_18, %c0_19, %c0_20], %23 {strides = array<i32>} : memref<8x2x128xf32, #tpu.memory_space<vmem>>, vector<1x2x128xf32>,
    %c3 = arith.constant 3 : index
    %c0_21 = arith.constant 0 : index
    %c0_22 = arith.constant 0 : index
    %24 = vector.load %arg1[%c3, %c0_21, %c0_22] : memref<8x2x128xf32, #tpu.memory_space<vmem>>, vector<1x2x128xf32>
    %25 = vector.shape_cast %24 : vector<1x2x128xf32> to vector<2x128xf32>
    %c4 = arith.constant 4 : index
    %c0_23 = arith.constant 0 : index
    %c0_24 = arith.constant 0 : index
    %26 = vector.load %arg2[%c4, %c0_23, %c0_24] : memref<8x2x128xf32, #tpu.memory_space<vmem>>, vector<1x2x128xf32>
    %27 = vector.shape_cast %26 : vector<1x2x128xf32> to vector<2x128xf32>
    %28 = arith.addf %25, %27 : vector<2x128xf32>
    %c3_25 = arith.constant 3 : index
    %c0_26 = arith.constant 0 : index
    %c0_27 = arith.constant 0 : index
    %29 = vector.load %arg3[%c3_25, %c0_26, %c0_27] : memref<8x2x128xf32, #tpu.memory_space<vmem>>, vector<1x2x128xf32>
    %30 = vector.shape_cast %29 : vector<1x2x128xf32> to vector<2x128xf32>
    %31 = vector.shape_cast %28 : vector<2x128xf32> to vector<1x2x128xf32>
    tpu.vector_store %arg3[%c3_25, %c0_26, %c0_27], %31 {strides = array<i32>} : memref<8x2x128xf32, #tpu.memory_space<vmem>>, vector<1x2x128xf32>,
    %c4_28 = arith.constant 4 : index
    %c0_29 = arith.constant 0 : index
    %c0_30 = arith.constant 0 : index
    %32 = vector.load %arg1[%c4_28, %c0_29, %c0_30] : memref<8x2x128xf32, #tpu.memory_space<vmem>>, vector<1x2x128xf32>
    %33 = vector.shape_cast %32 : vector<1x2x128xf32> to vector<2x128xf32>
    %c3_31 = arith.constant 3 : index
    %c0_32 = arith.constant 0 : index
    %c0_33 = arith.constant 0 : index
    %34 = vector.load %arg2[%c3_31, %c0_32, %c0_33] : memref<8x2x128xf32, #tpu.memory_space<vmem>>, vector<1x2x128xf32>
    %35 = vector.shape_cast %34 : vector<1x2x128xf32> to vector<2x128xf32>
    %36 = arith.addf %33, %35 : vector<2x128xf32>
    %c4_34 = arith.constant 4 : index
    %c0_35 = arith.constant 0 : index
    %c0_36 = arith.constant 0 : index
    %37 = vector.load %arg3[%c4_34, %c0_35, %c0_36] : memref<8x2x128xf32, #tpu.memory_space<vmem>>, vector<1x2x128xf32>
    %38 = vector.shape_cast %37 : vector<1x2x128xf32> to vector<2x128xf32>
    %39 = vector.shape_cast %36 : vector<2x128xf32> to vector<1x2x128xf32>
    tpu.vector_store %arg3[%c4_34, %c0_35, %c0_36], %39 {strides = array<i32>} : memref<8x2x128xf32, #tpu.memory_space<vmem>>, vector<1x2x128xf32>,
    %c5_37 = arith.constant 5 : index
    %c0_38 = arith.constant 0 : index
    %c0_39 = arith.constant 0 : index
    %40 = vector.load %arg1[%c5_37, %c0_38, %c0_39] : memref<8x2x128xf32, #tpu.memory_space<vmem>>, vector<1x2x128xf32>
    %41 = vector.shape_cast %40 : vector<1x2x128xf32> to vector<2x128xf32>
    %c2_40 = arith.constant 2 : index
    %c0_41 = arith.constant 0 : index
    %c0_42 = arith.constant 0 : index
    %42 = vector.load %arg2[%c2_40, %c0_41, %c0_42] : memref<8x2x128xf32, #tpu.memory_space<vmem>>, vector<1x2x128xf32>
    %43 = vector.shape_cast %42 : vector<1x2x128xf32> to vector<2x128xf32>
    %44 = arith.addf %41, %43 : vector<2x128xf32>
    %c5_43 = arith.constant 5 : index
    %c0_44 = arith.constant 0 : index
    %c0_45 = arith.constant 0 : index
    %45 = vector.load %arg3[%c5_43, %c0_44, %c0_45] : memref<8x2x128xf32, #tpu.memory_space<vmem>>, vector<1x2x128xf32>
    %46 = vector.shape_cast %45 : vector<1x2x128xf32> to vector<2x128xf32>
    %47 = vector.shape_cast %44 : vector<2x128xf32> to vector<1x2x128xf32>
    tpu.vector_store %arg3[%c5_43, %c0_44, %c0_45], %47 {strides = array<i32>} : memref<8x2x128xf32, #tpu.memory_space<vmem>>, vector<1x2x128xf32>,
    %c6_46 = arith.constant 6 : index
    %c0_47 = arith.constant 0 : index
    %c0_48 = arith.constant 0 : index
    %48 = vector.load %arg1[%c6_46, %c0_47, %c0_48] : memref<8x2x128xf32, #tpu.memory_space<vmem>>, vector<1x2x128xf32>
    %49 = vector.shape_cast %48 : vector<1x2x128xf32> to vector<2x128xf32>
    %c1_49 = arith.constant 1 : index
    %c0_50 = arith.constant 0 : index
    %c0_51 = arith.constant 0 : index
    %50 = vector.load %arg2[%c1_49, %c0_50, %c0_51] : memref<8x2x128xf32, #tpu.memory_space<vmem>>, vector<1x2x128xf32>
    %51 = vector.shape_cast %50 : vector<1x2x128xf32> to vector<2x128xf32>
    %52 = arith.addf %49, %51 : vector<2x128xf32>
    %c6_52 = arith.constant 6 : index
    %c0_53 = arith.constant 0 : index
    %c0_54 = arith.constant 0 : index
    %53 = vector.load %arg3[%c6_52, %c0_53, %c0_54] : memref<8x2x128xf32, #tpu.memory_space<vmem>>, vector<1x2x128xf32>
    %54 = vector.shape_cast %53 : vector<1x2x128xf32> to vector<2x128xf32>
    %55 = vector.shape_cast %52 : vector<2x128xf32> to vector<1x2x128xf32>
    tpu.vector_store %arg3[%c6_52, %c0_53, %c0_54], %55 {strides = array<i32>} : memref<8x2x128xf32, #tpu.memory_space<vmem>>, vector<1x2x128xf32>,
    %c7_55 = arith.constant 7 : index
    %c0_56 = arith.constant 0 : index
    %c0_57 = arith.constant 0 : index
    %56 = vector.load %arg1[%c7_55, %c0_56, %c0_57] : memref<8x2x128xf32, #tpu.memory_space<vmem>>, vector<1x2x128xf32>
    %57 = vector.shape_cast %56 : vector<1x2x128xf32> to vector<2x128xf32>
    %c0_58 = arith.constant 0 : index
    %c0_59 = arith.constant 0 : index
    %c0_60 = arith.constant 0 : index
    %58 = vector.load %arg2[%c0_58, %c0_59, %c0_60] : memref<8x2x128xf32, #tpu.memory_space<vmem>>, vector<1x2x128xf32>
    %59 = vector.shape_cast %58 : vector<1x2x128xf32> to vector<2x128xf32>
    %60 = arith.addf %57, %59 : vector<2x128xf32>
    %c7_61 = arith.constant 7 : index
    %c0_62 = arith.constant 0 : index
    %c0_63 = arith.constant 0 : index
    %61 = vector.load %arg3[%c7_61, %c0_62, %c0_63] : memref<8x2x128xf32, #tpu.memory_space<vmem>>, vector<1x2x128xf32>
    %62 = vector.shape_cast %61 : vector<1x2x128xf32> to vector<2x128xf32>
    %63 = vector.shape_cast %60 : vector<2x128xf32> to vector<1x2x128xf32>
    tpu.vector_store %arg3[%c7_61, %c0_62, %c0_63], %63 {strides = array<i32>} : memref<8x2x128xf32, #tpu.memory_space<vmem>>, vector<1x2x128xf32>,
    return
  }
  func.func @transform_0(%arg0: i32) -> (i32, i32, i32) {
    %c0_i32 = arith.constant 0 : i32
    %c0_i32_0 = arith.constant 0 : i32
    %c0_i32_1 = arith.constant 0 : i32
    return %arg0, %c0_i32, %c0_i32_0 : i32, i32, i32
  }
  func.func @transform_1(%arg0: i32) -> (i32, i32, i32) {
    %c0_i32 = arith.constant 0 : i32
    %0 = arith.subi %c0_i32, %arg0 : i32
    %c0_i32_0 = arith.constant 0 : i32
    %c0_i32_1 = arith.constant 0 : i32
    %c0_i32_2 = arith.constant 0 : i32
    return %0, %c0_i32_0, %c0_i32_1 : i32, i32, i32
  }
  func.func @transform_2(%arg0: i32) -> (i32, i32, i32) {
    %c0_i32 = arith.constant 0 : i32
    %c0_i32_0 = arith.constant 0 : i32
    %c0_i32_1 = arith.constant 0 : i32
    return %arg0, %c0_i32, %c0_i32_0 : i32, i32, i32
  }
}

module attributes {stable_mosaic.version = 11 : i64} {
  func.func @_matmul_bias_kernel(%arg0: i32, %arg1: i32, %arg2: i32, %arg3: memref<16x128xf32, #tpu.memory_space<vmem>>, %arg4: memref<128x128xf32, #tpu.memory_space<vmem>>, %arg5: memref<1x128xf32, #tpu.memory_space<vmem>>, %arg6: memref<16x128xf32, #tpu.memory_space<vmem>>, %arg7: memref<16x128xf32, #tpu.memory_space<vmem>>) attributes {dimension_semantics = [#tpu.dimension_semantics<parallel>, #tpu.dimension_semantics<parallel>, #tpu.dimension_semantics<arbitrary>], iteration_bounds = array<i64: 1, 1, 1>, scalar_prefetch = 0 : i64, scratch_operands = 1 : i64, tpu.core_type = #tpu.core_type<tc>, window_params = [{transform_indices = @transform_0, window_bounds = array<i64: 16, 128>}, {transform_indices = @transform_1, window_bounds = array<i64: 128, 128>}, {transform_indices = @transform_2, window_bounds = array<i64: 1, 128>}, {transform_indices = @transform_3, window_bounds = array<i64: 16, 128>}]} {
    %c0_i32 = arith.constant 0 : i32
    %0 = arith.cmpi eq, %arg2, %c0_i32 : i32
    %1 = arith.extui %0 : i1 to i32
    %c0_i32_0 = arith.constant 0 : i32
    %2 = arith.cmpi ne, %1, %c0_i32_0 : i32
    scf.if %2 {
      %cst_10 = arith.constant 0.000000e+00 : f32
      %14 = vector.broadcast %cst_10 : f32 to vector<16x128xf32>
      %c0_11 = arith.constant 0 : index
      %c0_12 = arith.constant 0 : index
      %15 = vector.load %arg7[%c0_11, %c0_12] : memref<16x128xf32, #tpu.memory_space<vmem>>, vector<16x128xf32>
      tpu.vector_store %arg7[%c0_11, %c0_12], %14 {strides = array<i32>} : memref<16x128xf32, #tpu.memory_space<vmem>>, vector<16x128xf32>,
    } else {
    }
    %c0 = arith.constant 0 : index
    %c0_1 = arith.constant 0 : index
    %3 = vector.load %arg7[%c0, %c0_1] : memref<16x128xf32, #tpu.memory_space<vmem>>, vector<16x128xf32>
    %c0_2 = arith.constant 0 : index
    %c0_3 = arith.constant 0 : index
    %4 = vector.load %arg3[%c0_2, %c0_3] : memref<16x128xf32, #tpu.memory_space<vmem>>, vector<16x128xf32>
    %5 = arith.truncf %4 : vector<16x128xf32> to vector<16x128xbf16>
    %c0_4 = arith.constant 0 : index
    %c0_5 = arith.constant 0 : index
    %6 = vector.load %arg4[%c0_4, %c0_5] : memref<128x128xf32, #tpu.memory_space<vmem>>, vector<128x128xf32>
    %7 = arith.truncf %6 : vector<128x128xf32> to vector<128x128xbf16>
    %cst = arith.constant dense<0.000000e+00> : vector<16x128xf32>
    %8 = tpu.matmul %5, %7, %cst {dimension_numbers = #tpu.dot_dimension_numbers<[1], [0], [0], [1], [0, 0, 1, 1], [], []>} : vector<16x128xbf16>, vector<128x128xbf16>, vector<16x128xf32> -> vector<16x128xf32>
    %9 = arith.addf %3, %8 : vector<16x128xf32>
    %c0_6 = arith.constant 0 : index
    %c0_7 = arith.constant 0 : index
    %10 = vector.load %arg7[%c0_6, %c0_7] : memref<16x128xf32, #tpu.memory_space<vmem>>, vector<16x128xf32>
    tpu.vector_store %arg7[%c0_6, %c0_7], %9 {strides = array<i32>} : memref<16x128xf32, #tpu.memory_space<vmem>>, vector<16x128xf32>,
    %c0_i32_8 = arith.constant 0 : i32
    %11 = arith.cmpi eq, %arg2, %c0_i32_8 : i32
    %12 = arith.extui %11 : i1 to i32
    %c0_i32_9 = arith.constant 0 : i32
    %13 = arith.cmpi ne, %12, %c0_i32_9 : i32
    scf.if %13 {
      %c0_10 = arith.constant 0 : index
      %c0_11 = arith.constant 0 : index
      %14 = vector.load %arg7[%c0_10, %c0_11] : memref<16x128xf32, #tpu.memory_space<vmem>>, vector<16x128xf32>
      %c0_12 = arith.constant 0 : index
      %c0_13 = arith.constant 0 : index
      %15 = vector.load %arg5[%c0_12, %c0_13] : memref<1x128xf32, #tpu.memory_space<vmem>>, vector<1x128xf32>
      %16 = vector.broadcast %15 : vector<1x128xf32> to vector<16x128xf32>
      %17 = arith.addf %14, %16 : vector<16x128xf32>
      %c0_14 = arith.constant 0 : index
      %c0_15 = arith.constant 0 : index
      %18 = vector.load %arg6[%c0_14, %c0_15] : memref<16x128xf32, #tpu.memory_space<vmem>>, vector<16x128xf32>
      tpu.vector_store %arg6[%c0_14, %c0_15], %17 {strides = array<i32>} : memref<16x128xf32, #tpu.memory_space<vmem>>, vector<16x128xf32>,
    } else {
    }
    return
  }
  func.func @transform_0(%arg0: i32, %arg1: i32, %arg2: i32) -> (i32, i32) {
    %c0_i32 = arith.constant 0 : i32
    return %arg0, %arg2 : i32, i32
  }
  func.func @transform_1(%arg0: i32, %arg1: i32, %arg2: i32) -> (i32, i32) {
    %c0_i32 = arith.constant 0 : i32
    return %arg2, %arg1 : i32, i32
  }
  func.func @transform_2(%arg0: i32, %arg1: i32, %arg2: i32) -> (i32, i32) {
    %c0_i32 = arith.constant 0 : i32
    %c0_i32_0 = arith.constant 0 : i32
    return %c0_i32, %arg1 : i32, i32
  }
  func.func @transform_3(%arg0: i32, %arg1: i32, %arg2: i32) -> (i32, i32) {
    %c0_i32 = arith.constant 0 : i32
    return %arg0, %arg1 : i32, i32
  }
}

</mosaic_0001>

<llo_original>
// kernel: bilm_forward.6
$region0: #{bilm_forward.6}
  #allocation0 [shape = 'u32[]', space=smem, size = 0x4, offset = 0x4, fixed_abs, tag = 'smem constant byte address 0x4 - core index']
  #allocation1 [shape = 'u32[144,128]{1,0:T(1,128)}', space=vmem, size = 0x12000, scoped, tag = 'internal scratch']
  %s0 = inlined_call_operand.vmem [shape: f32[2,16,32], index: 0, kind: input, shape index: {}]
  %s1 = inlined_call_operand.vmem [shape: f32[2,32,512], index: 1, kind: input, shape index: {}]
  %s2 = inlined_call_operand.vmem [shape: f32[2,1,512], index: 2, kind: input, shape index: {}]
  %s3 = inlined_call_operand.vmem [shape: f32[2,16,512], index: 3, kind: output, shape index: {}]
  %s4 = sld [smem:[#allocation0]]
  $region45: #{bilm_forward.6} parent=0
    _
  %s6 = ssub.s32 1, %s4
  %s7 = scalar_select 0, %s6, %s4
  loop: start=0, step=1, limit=4
  $region2: #{bilm_forward.6} parent=0 // loop_pre_header
    _
  $region3: #{bilm_forward.6} parent=0 // loop_header
    %s9 = sphi 0, %s13
    %p10 = scmp.ge.s32.totalorder %s9, 4
    %s16 = sphi 0, %s35
    %s17 = sphi 0, %s31
    %s18 = sphi 0, %s27
    %s19 = sphi 0, %s16
    %s20 = sphi 0, %s17
    %s21 = sphi 0, %s18
    %s22 = sphi 0, %s19
    %s23 = sphi 0, %s20
    %s24 = sphi 0, %s21
    %s40 = sphi 0, %s42
    %s43 = sphi 0, %s40
    %s44 = sphi 0, %s43
    %s60 = sphi 0, %s44
    %s68 = sphi 0, %s70
    %s71 = sphi 0, %s68
    %s72 = sphi 0, %s71
    %s88 = sphi 0, %s72
    %s96 = sphi 0, %s98
    %s99 = sphi 0, %s96
    %s100 = sphi 0, %s99
    %s116 = sphi 0, %s100
    %s126 = sphi 0, %s128
    %s129 = sphi 0, %s126
    %s130 = sphi 0, %s129
    %s146 = sphi 0, %s130
  $region4: #{bilm_forward.6} parent=0 // loop_header_branch
    %12 = sbr.rel (%p10) target = $region8
  $region5: #{bilm_forward.6} parent=0 // loop_body
    %s14 = ssub.s32 %s9, 1
    %s15 = ssub.s32 %s9, 2
    %s25 = sadd.s32 1, %s18
    %p26 = scmp.ge.s32.totalorder %s25, 1
    %s27 = scalar_select %p26, 0, %s25
    %s28 = sadd.s32 1, %s17
    %s29 = scalar_select %p26, %s28, %s17
    %p30 = scmp.ge.s32.totalorder %s29, 1
    %s31 = scalar_select %p30, 0, %s29
    %s32 = sadd.s32 1, %s16
    %s33 = scalar_select %p30, %s32, %s16
    %p34 = scmp.ge.s32.totalorder %s33, 2
    %s35 = scalar_select %p34, 0, %s33
    %s36 = ssub.s32 %s16, %s35
    %s37 = ssub.s32 %s17, %s31
    %s38 = sor.u32 %s36, %s37
    %p39 = scmp.eq.s32.totalorder %s38, 0
    %s41 = sadd.s32 %s40, 1
    %s42 = scalar_select %p39, %s40, %s41
    %p45 = pneg %p39
    %p46 = scmp.eq.s32.totalorder %s9, 1
    %p47 = por %p45, %p46
    %p48 = scmp.ne.s32.totalorder %s40, %s43
    %p49 = scmp.eq.s32.totalorder %s9, 0
    %p50 = por %p48, %p49
    %p51 = scmp.ne.s32.totalorder %s40, %s43
    %p52 = scmp.eq.s32.totalorder %s14, 1
    %p53 = por %p51, %p52
    %p54 = scmp.ne.s32.totalorder %s43, %s44
    %p55 = scmp.eq.s32.totalorder %s14, 0
    %p56 = por %p54, %p55
    %p57 = scmp.ne.s32.totalorder %s43, %s44
    %p58 = scmp.eq.s32.totalorder %s15, 1
    %p59 = por %p57, %p58
    %p61 = scmp.ne.s32.totalorder %s44, %s60
    %p62 = scmp.eq.s32.totalorder %s15, 0
    %p63 = por %p61, %p62
    %s64 = ssub.s32 %s16, %s35
    %s65 = ssub.s32 %s18, %s27
    %s66 = sor.u32 %s64, %s65
    %p67 = scmp.eq.s32.totalorder %s66, 0
    %s69 = sadd.s32 %s68, 1
    %s70 = scalar_select %p67, %s68, %s69
    %p73 = pneg %p67
    %p74 = scmp.eq.s32.totalorder %s9, 1
    %p75 = por %p73, %p74
    %p76 = scmp.ne.s32.totalorder %s68, %s71
    %p77 = scmp.eq.s32.totalorder %s9, 0
    %p78 = por %p76, %p77
    %p79 = scmp.ne.s32.totalorder %s68, %s71
    %p80 = scmp.eq.s32.totalorder %s14, 1
    %p81 = por %p79, %p80
    %p82 = scmp.ne.s32.totalorder %s71, %s72
    %p83 = scmp.eq.s32.totalorder %s14, 0
    %p84 = por %p82, %p83
    %p85 = scmp.ne.s32.totalorder %s71, %s72
    %p86 = scmp.eq.s32.totalorder %s15, 1
    %p87 = por %p85, %p86
    %p89 = scmp.ne.s32.totalorder %s72, %s88
    %p90 = scmp.eq.s32.totalorder %s15, 0
    %p91 = por %p89, %p90
    %s92 = ssub.s32 %s16, %s35
    %s93 = ssub.s32 %s18, %s27
    %s94 = sor.u32 %s92, %s93
    %p95 = scmp.eq.s32.totalorder %s94, 0
    %s97 = sadd.s32 %s96, 1
    %s98 = scalar_select %p95, %s96, %s97
    %p101 = pneg %p95
    %p102 = scmp.eq.s32.totalorder %s9, 1
    %p103 = por %p101, %p102
    %p104 = scmp.ne.s32.totalorder %s96, %s99
    %p105 = scmp.eq.s32.totalorder %s9, 0
    %p106 = por %p104, %p105
    %p107 = scmp.ne.s32.totalorder %s96, %s99
    %p108 = scmp.eq.s32.totalorder %s14, 1
    %p109 = por %p107, %p108
    %p110 = scmp.ne.s32.totalorder %s99, %s100
    %p111 = scmp.eq.s32.totalorder %s14, 0
    %p112 = por %p110, %p111
    %p113 = scmp.ne.s32.totalorder %s99, %s100
    %p114 = scmp.eq.s32.totalorder %s15, 1
    %p115 = por %p113, %p114
    %p117 = scmp.ne.s32.totalorder %s100, %s116
    %p118 = scmp.eq.s32.totalorder %s15, 0
    %p119 = por %p117, %p118
    %s120 = ssub.s32 %s16, %s35
    %s121 = ssub.s32 %s17, %s31
    %s122 = sor.u32 %s120, %s121
    %s123 = ssub.s32 %s18, %s27
    %s124 = sor.u32 %s122, %s123
    %p125 = scmp.eq.s32.totalorder %s124, 0
    %s127 = sadd.s32 %s126, 1
    %s128 = scalar_select %p125, %s126, %s127
    %p131 = pneg %p125
    %p132 = scmp.eq.s32.totalorder %s9, 1
    %p133 = por %p131, %p132
    %p134 = scmp.ne.s32.totalorder %s126, %s129
    %p135 = scmp.eq.s32.totalorder %s9, 0
    %p136 = por %p134, %p135
    %p137 = scmp.ne.s32.totalorder %s126, %s129
    %p138 = scmp.eq.s32.totalorder %s14, 1
    %p139 = por %p137, %p138
    %p140 = scmp.ne.s32.totalorder %s129, %s130
    %p141 = scmp.eq.s32.totalorder %s14, 0
    %p142 = por %p140, %p141
    %p143 = scmp.ne.s32.totalorder %s129, %s130
    %p144 = scmp.eq.s32.totalorder %s15, 1
    %p145 = por %p143, %p144
    %p147 = scmp.ne.s32.totalorder %s130, %s146
    %p148 = scmp.eq.s32.totalorder %s15, 0
    %p149 = por %p147, %p148
    %p150 = scmp.le.s32.totalorder 1, %s9
    %p151 = scmp.lt.s32.totalorder %s9, 3
    %p152 = pnand %p150, %p151
    %p153 = pneg %p152
    // Predicated region
    $region9: #{bilm_forward.6} parent=5 // pred_check
      _
    $region10: #{bilm_forward.6} parent=5 // pred_check_branch
      %155 = sbr.rel (%p152) target = $region12
    $region11: #{bilm_forward.6} parent=5 // pred_region
      %s156 = ssub.s32 %s9, 1
    $region12: #{bilm_forward.6} parent=5 // pred_fallthru
      _
    %p157 = scmp.lt.s32.totalorder %s9, 2
    // Predicated region
    $region13: #{bilm_forward.6} parent=5 // pred_check
      %p158 = pneg %p157
    $region14: #{bilm_forward.6} parent=5 // pred_check_branch
      %160 = sbr.rel (%p158) target = $region16
    $region15: #{bilm_forward.6} parent=5 // pred_region
      // Predicated region
      $region17: #{bilm_forward.6} parent=15 // pred_check
        %p161 = pneg %p50
      $region18: #{bilm_forward.6} parent=15 // pred_check_branch
        %163 = sbr.rel (%p161) target = $region20
      $region19: #{bilm_forward.6} parent=15 // pred_region
        %s164 = smul.u32 2, %s17
        %p165 = scmp.lt.s32.totalorder %s16, 1
        %s166 = scalar_select %p165, %s16, 1
        %p167 = scmp.lt.s32.totalorder %s164, 1
        %s168 = scalar_select %p167, %s164, 1
        %s169 = smul.addr %s166, 2
        %s170 = sadd.s32 %s168, %s169
        %s171 = smul.addr %s170, 8
        %s172 = scalar_lea.vmem %s0, %s171
        %s173 = smul.u32 2, %s17
      $region20: #{bilm_forward.6} parent=15 // pred_fallthru
        _
      // Predicated region
      $region21: #{bilm_forward.6} parent=15 // pred_check
        %p174 = pneg %p78
      $region22: #{bilm_forward.6} parent=15 // pred_check_branch
        %176 = sbr.rel (%p174) target = $region24
      $region23: #{bilm_forward.6} parent=15 // pred_region
        %s177 = smul.u32 4, %s18
        %p178 = scmp.lt.s32.totalorder %s16, 1
        %s179 = scalar_select %p178, %s16, 1
        %p180 = scmp.lt.s32.totalorder %s177, 3
        %s181 = scalar_select %p180, %s177, 3
        %s182 = smul.addr %s179, 16
        %s183 = sadd.s32 %s181, %s182
        %s184 = smul.addr %s183, 8
        %s185 = scalar_lea.vmem %s1, %s184
        %s186 = smul.u32 4, %s18
      $region24: #{bilm_forward.6} parent=15 // pred_fallthru
        _
      // Predicated region
      $region25: #{bilm_forward.6} parent=15 // pred_check
        %p187 = pneg %p106
      $region26: #{bilm_forward.6} parent=15 // pred_check_branch
        %189 = sbr.rel (%p187) target = $region28
      $region27: #{bilm_forward.6} parent=15 // pred_region
        %s190 = smul.u32 4, %s18
        %p191 = scmp.lt.s32.totalorder %s16, 1
        %s192 = scalar_select %p191, %s16, 1
        %p193 = scmp.lt.s32.totalorder %s190, 3
        %s194 = scalar_select %p193, %s190, 3
        %s195 = smul.addr %s192, 4
        %s196 = sadd.s32 %s194, %s195
        %s197 = scalar_lea.vmem %s2, %s196
        %s198 = smul.u32 4, %s18
      $region28: #{bilm_forward.6} parent=15 // pred_fallthru
        _
    $region16: #{bilm_forward.6} parent=5 // pred_fallthru
      _
    %p199 = scmp.le.s32.totalorder 1, %s9
    %p200 = scmp.lt.s32.totalorder %s9, 3
    %p201 = pnand %p199, %p200
    %p202 = pneg %p201
    // Predicated region
    $region29: #{bilm_forward.6} parent=5 // pred_check
      _
    $region30: #{bilm_forward.6} parent=5 // pred_check_branch
      %204 = sbr.rel (%p201) target = $region32
    $region31: #{bilm_forward.6} parent=5 // pred_region
      %s205 = ssub.s32 %s9, 1
      %s206 = smul.u32 2, %s20
      %p207 = scmp.lt.s32.totalorder %s19, 1
      %s208 = scalar_select %p207, %s19, 1
      %p209 = scmp.lt.s32.totalorder %s206, 1
      %s210 = scalar_select %p209, %s206, 1
      %s211 = smul.addr %s208, 2
      %s212 = sadd.s32 %s210, %s211
      %s213 = smul.addr %s212, 8
      %s214 = scalar_lea.vmem %s0, %s213
      %p215 = pneg %p56
      %p216 = pneg %p53
      %s217 = smul.u32 4, %s21
      %p218 = scmp.lt.s32.totalorder %s19, 1
      %s219 = scalar_select %p218, %s19, 1
      %p220 = scmp.lt.s32.totalorder %s217, 3
      %s221 = scalar_select %p220, %s217, 3
      %s222 = smul.addr %s219, 16
      %s223 = sadd.s32 %s221, %s222
      %s224 = smul.addr %s223, 8
      %s225 = scalar_lea.vmem %s1, %s224
      %p226 = pneg %p84
      %p227 = pneg %p81
      %s228 = smul.u32 4, %s21
      %p229 = scmp.lt.s32.totalorder %s19, 1
      %s230 = scalar_select %p229, %s19, 1
      %p231 = scmp.lt.s32.totalorder %s228, 3
      %s232 = scalar_select %p231, %s228, 3
      %s233 = smul.addr %s230, 4
      %s234 = sadd.s32 %s232, %s233
      %s235 = scalar_lea.vmem %s2, %s234
      %p236 = pneg %p112
      %p237 = pneg %p109
      %p238 = pneg %p142
      %p239 = pneg %p139
      %s240 = smul.u32 2, %s20
      %s241 = smul.u32 4, %s21
      %p242 = scmp.lt.s32.totalorder %s19, 1
      %s243 = scalar_select %p242, %s19, 1
      %p244 = scmp.lt.s32.totalorder %s240, 1
      %s245 = scalar_select %p244, %s240, 1
      %p246 = scmp.lt.s32.totalorder %s241, 3
      %s247 = scalar_select %p246, %s241, 3
      %s248 = smul.addr %s245, 4
      %s249 = sadd.s32 %s247, %s248
      %s250 = smul.addr %s243, 8
      %s251 = sadd.s32 %s249, %s250
      %s252 = smul.addr %s251, 8
      %s253 = scalar_lea.vmem %s3, %s252
      %s254 = smul.u32 2, %s20
      %p255 = scmp.lt.s32.totalorder %s19, 1
      %s256 = scalar_select %p255, %s19, 1
      %p257 = scmp.lt.s32.totalorder %s254, 1
      %s258 = scalar_select %p257, %s254, 1
      %s259 = smul.addr %s256, 2
      %s260 = sadd.s32 %s258, %s259
      %s261 = smul.addr %s260, 8
      %s262 = scalar_lea.vmem %s0, %s261
      %s263 = smul.u32 2, %s20
      %s264 = smul.u32 4, %s21
      %p265 = scmp.lt.s32.totalorder %s19, 1
      %s266 = scalar_select %p265, %s19, 1
      %p267 = scmp.lt.s32.totalorder %s264, 3
      %s268 = scalar_select %p267, %s264, 3
      %s269 = smul.addr %s266, 16
      %s270 = sadd.s32 %s268, %s269
      %s271 = smul.addr %s270, 8
      %s272 = scalar_lea.vmem %s1, %s271
      %s273 = smul.u32 4, %s21
      %s274 = smul.u32 4, %s21
      %p275 = scmp.lt.s32.totalorder %s19, 1
      %s276 = scalar_select %p275, %s19, 1
      %p277 = scmp.lt.s32.totalorder %s274, 3
      %s278 = scalar_select %p277, %s274, 3
      %s279 = smul.addr %s276, 4
      %s280 = sadd.s32 %s278, %s279
      %s281 = scalar_lea.vmem %s2, %s280
      %s282 = smul.u32 4, %s21
      %s283 = smul.u32 2, %s20
      %s284 = smul.u32 4, %s21
      %p285 = scmp.lt.s32.totalorder %s19, 1
      %s286 = scalar_select %p285, %s19, 1
      %p287 = scmp.lt.s32.totalorder %s283, 1
      %s288 = scalar_select %p287, %s283, 1
      %p289 = scmp.lt.s32.totalorder %s284, 3
      %s290 = scalar_select %p289, %s284, 3
      %s291 = smul.addr %s288, 4
      %s292 = sadd.s32 %s290, %s291
      %s293 = smul.addr %s286, 8
      %s294 = sadd.s32 %s292, %s293
      %s295 = smul.addr %s294, 8
      %s296 = scalar_lea.vmem %s3, %s295
      %s297 = smul.u32 2, %s20
      %s298 = smul.u32 4, %s21
      %v300 = vld [vmem:[%s262] sm:$0xff]
      %v301 = vld [vmem:[%s262 + $0x8] sm:$0xff]
      %v302 = vpack.c.bf16 %v301, %v300
      %v303 = vld [vmem:[%s272] sm:$0xff]
      %v304 = vld [vmem:[%s272 + $0x8] sm:$0xff]
      %v305 = vld [vmem:[%s272 + $0x10] sm:$0xff]
      %v306 = vld [vmem:[%s272 + $0x18] sm:$0xff]
      %v307 = vld [vmem:[%s272 + $0x20] sm:$0xff]
      %v308 = vld [vmem:[%s272 + $0x28] sm:$0xff]
      %v309 = vld [vmem:[%s272 + $0x30] sm:$0xff]
      %v310 = vld [vmem:[%s272 + $0x38] sm:$0xff]
      %v311 = vld [vmem:[%s272 + $0x40] sm:$0xff]
      %v312 = vld [vmem:[%s272 + $0x48] sm:$0xff]
      %v313 = vld [vmem:[%s272 + $0x50] sm:$0xff]
      %v314 = vld [vmem:[%s272 + $0x58] sm:$0xff]
      %v315 = vld [vmem:[%s272 + $0x60] sm:$0xff]
      %v316 = vld [vmem:[%s272 + $0x68] sm:$0xff]
      %v317 = vld [vmem:[%s272 + $0x70] sm:$0xff]
      %v318 = vld [vmem:[%s272 + $0x78] sm:$0xff]
      %v319 = vpack.c.bf16 %v307, %v303
      %v320 = vpack.c.bf16 %v308, %v304
      %v321 = vpack.c.bf16 %v309, %v305
      %v322 = vpack.c.bf16 %v310, %v306
      %v323 = vpack.c.bf16 %v315, %v311
      %v324 = vpack.c.bf16 %v316, %v312
      %v325 = vpack.c.bf16 %v317, %v313
      %v326 = vpack.c.bf16 %v318, %v314
      %v327 = vld [vmem:[%s281] sm:$0xf]
      %v329 = vlaneseq
      %v330 = vshrl.u32 %v329, 7
      %v331 = vsub.s32 0, %v330
      %v332 = vrot.slane %v327, %v331
      %v333 = vlaneseq
      %v334 = vshrl.u32 %v333, 7
      %v335 = vsub.s32 1, %v334
      %v336 = vrot.slane %v327, %v335
      %v337 = vlaneseq
      %v338 = vshrl.u32 %v337, 7
      %v339 = vsub.s32 2, %v338
      %v340 = vrot.slane %v327, %v339
      %v341 = vlaneseq
      %v342 = vshrl.u32 %v341, 7
      %v343 = vsub.s32 3, %v342
      %v344 = vrot.slane %v327, %v343
      %vm349 = vcmask 261120
      %v351 = vsel %vm349, %v302, 0
      %353 = vmatprep.subr.bf16.mxu0 %v320
      %354 = vmatpush1.bf16.msra.mxu0 %v319
      %355 = vmatprep.subr.bf16.mxu0 %v324
      %356 = vmatpush1.bf16.msra.mxu0 %v323
      %357 = vmatprep.subr.bf16.mxu0 0
      %358 = vmatpush1.bf16.msra.mxu0 0
      %359 = vmatprep.subr.bf16.mxu0 0
      %360 = vmatpush1.bf16.msra.mxu0 0
      %361 = vmatprep.subr.bf16.mxu0 0
      %362 = vmatpush1.bf16.msra.mxu0 0
      %363 = vmatprep.subr.bf16.mxu0 0
      %364 = vmatpush1.bf16.msra.mxu0 0
      %365 = vmatprep.subr.bf16.mxu0 0
      %366 = vmatpush1.bf16.msra.mxu0 0
      %367 = vmatprep.subr.bf16.mxu0 0
      %368 = vmatpush1.bf16.msra.mxu0 0
      %369 = vmatprep.subr.bf16.mxu0 0
      %370 = vmatpush1.bf16.msra.mxu0 0
      %371 = vmatprep.subr.bf16.mxu0 0
      %372 = vmatpush1.bf16.msra.mxu0 0
      %373 = vmatprep.subr.bf16.mxu0 0
      %374 = vmatpush1.bf16.msra.mxu0 0
      %375 = vmatprep.subr.bf16.mxu0 0
      %376 = vmatpush1.bf16.msra.mxu0 0
      %377 = vmatprep.subr.bf16.mxu0 0
      %378 = vmatpush1.bf16.msra.mxu0 0
      %379 = vmatprep.subr.bf16.mxu0 0
      %380 = vmatpush1.bf16.msra.mxu0 0
      %381 = vmatprep.subr.bf16.mxu0 0
      %382 = vmatpush1.bf16.msra.mxu0 0
      %383 = vmatprep.subr.bf16.mxu0 0
      %384 = vmatpush1.bf16.msra.mxu0 0
      %385 = vmatprep.mubr.bf16.mxu0 0
      %386 = vmatmul.mubr.bf16.gmra.mrb[0].mxu0 %v351
      %v387 = vpop.f32.mrb[0].mxu0
      %v388 = vadd.f32 %v332, %v387
      %v389 = vpop.f32.mrb[0].mxu0
      %v390 = vadd.f32 %v336, %v389
      %v391 = vpop.f32.mrb[0].mxu0
      %v392 = vadd.f32 %v332, %v391
      %v393 = vpop.f32.mrb[0].mxu0
      %v394 = vadd.f32 %v336, %v393
      %395 = vdwg.mxu0
      %396 = vmatprep.subr.bf16.mxu0 %v322
      %397 = vmatpush1.bf16.msra.mxu0 %v321
      %398 = vmatprep.subr.bf16.mxu0 %v326
      %399 = vmatpush1.bf16.msra.mxu0 %v325
      %400 = vmatprep.subr.bf16.mxu0 0
      %401 = vmatpush1.bf16.msra.mxu0 0
      %402 = vmatprep.subr.bf16.mxu0 0
      %403 = vmatpush1.bf16.msra.mxu0 0
      %404 = vmatprep.subr.bf16.mxu0 0
      %405 = vmatpush1.bf16.msra.mxu0 0
      %406 = vmatprep.subr.bf16.mxu0 0
      %407 = vmatpush1.bf16.msra.mxu0 0
      %408 = vmatprep.subr.bf16.mxu0 0
      %409 = vmatpush1.bf16.msra.mxu0 0
      %410 = vmatprep.subr.bf16.mxu0 0
      %411 = vmatpush1.bf16.msra.mxu0 0
      %412 = vmatprep.subr.bf16.mxu0 0
      %413 = vmatpush1.bf16.msra.mxu0 0
      %414 = vmatprep.subr.bf16.mxu0 0
      %415 = vmatpush1.bf16.msra.mxu0 0
      %416 = vmatprep.subr.bf16.mxu0 0
      %417 = vmatpush1.bf16.msra.mxu0 0
      %418 = vmatprep.subr.bf16.mxu0 0
      %419 = vmatpush1.bf16.msra.mxu0 0
      %420 = vmatprep.subr.bf16.mxu0 0
      %421 = vmatpush1.bf16.msra.mxu0 0
      %422 = vmatprep.subr.bf16.mxu0 0
      %423 = vmatpush1.bf16.msra.mxu0 0
      %424 = vmatprep.subr.bf16.mxu0 0
      %425 = vmatpush1.bf16.msra.mxu0 0
      %426 = vmatprep.subr.bf16.mxu0 0
      %427 = vmatpush1.bf16.msra.mxu0 0
      %428 = vmatprep.mubr.bf16.mxu0 0
      %429 = vmatmul.mubr.bf16.gmra.mrb[0].mxu0 %v351
      %v430 = vpop.f32.mrb[0].mxu0
      %v431 = vadd.f32 %v340, %v430
      %v432 = vpop.f32.mrb[0].mxu0
      %v433 = vadd.f32 %v344, %v432
      %v434 = vpop.f32.mrb[0].mxu0
      %v435 = vadd.f32 %v340, %v434
      %v436 = vpop.f32.mrb[0].mxu0
      %v437 = vadd.f32 %v344, %v436
      %438 = vdwg.mxu0
      %439 = vst [vmem:[%s296] sm:$0xff] %v388
      %440 = vst [vmem:[%s296 + $0x8] sm:$0xff] %v390
      %441 = vst [vmem:[%s296 + $0x10] sm:$0xff] %v431
      %442 = vst [vmem:[%s296 + $0x18] sm:$0xff] %v433
      %443 = vst [vmem:[%s296 + $0x20] sm:$0xff] %v392
      %444 = vst [vmem:[%s296 + $0x28] sm:$0xff] %v394
      %445 = vst [vmem:[%s296 + $0x30] sm:$0xff] %v435
      %446 = vst [vmem:[%s296 + $0x38] sm:$0xff] %v437
      %s447 = smul.u32 2, %s20
      %s448 = smul.u32 4, %s21
      %p449 = scmp.lt.s32.totalorder %s19, 1
      %s450 = scalar_select %p449, %s19, 1
      %p451 = scmp.lt.s32.totalorder %s447, 1
      %s452 = scalar_select %p451, %s447, 1
      %p453 = scmp.lt.s32.totalorder %s448, 3
      %s454 = scalar_select %p453, %s448, 3
      %s455 = smul.addr %s452, 4
      %s456 = sadd.s32 %s454, %s455
      %s457 = smul.addr %s450, 8
      %s458 = sadd.s32 %s456, %s457
      %s459 = smul.addr %s458, 8
      %s460 = scalar_lea.vmem %s3, %s459
      // Predicated region
      $region33: #{bilm_forward.6} parent=31 // pred_check
        %p461 = pneg %p139
      $region34: #{bilm_forward.6} parent=31 // pred_check_branch
        %463 = sbr.rel (%p461) target = $region36
      $region35: #{bilm_forward.6} parent=31 // pred_region
        %s464 = smul.u32 2, %s20
        %s465 = smul.u32 4, %s21
      $region36: #{bilm_forward.6} parent=31 // pred_fallthru
        _
    $region32: #{bilm_forward.6} parent=5 // pred_fallthru
      _
    %p466 = scmp.le.s32.totalorder 2, %s9
    // Predicated region
    $region37: #{bilm_forward.6} parent=5 // pred_check
      %p467 = pneg %p466
    $region38: #{bilm_forward.6} parent=5 // pred_check_branch
      %469 = sbr.rel (%p467) target = $region40
    $region39: #{bilm_forward.6} parent=5 // pred_region
      %s470 = ssub.s32 %s9, 2
      // Predicated region
      $region41: #{bilm_forward.6} parent=39 // pred_check
        %p471 = pneg %p145
      $region42: #{bilm_forward.6} parent=39 // pred_check_branch
        %473 = sbr.rel (%p471) target = $region44
      $region43: #{bilm_forward.6} parent=39 // pred_region
        %s474 = smul.u32 2, %s23
        %s475 = smul.u32 4, %s24
        %p476 = scmp.lt.s32.totalorder %s22, 1
        %s477 = scalar_select %p476, %s22, 1
        %p478 = scmp.lt.s32.totalorder %s474, 1
        %s479 = scalar_select %p478, %s474, 1
        %p480 = scmp.lt.s32.totalorder %s475, 3
        %s481 = scalar_select %p480, %s475, 3
        %s482 = smul.addr %s479, 4
        %s483 = sadd.s32 %s481, %s482
        %s484 = smul.addr %s477, 8
        %s485 = sadd.s32 %s483, %s484
        %s486 = smul.addr %s485, 8
        %s487 = scalar_lea.vmem %s3, %s486
      $region44: #{bilm_forward.6} parent=39 // pred_fallthru
        _
    $region40: #{bilm_forward.6} parent=5 // pred_fallthru
      _
  $region6: #{bilm_forward.6} parent=0 // loop_footer
    %s13 = sadd.s32 1, %s9
  $region7: #{bilm_forward.6} parent=0 // loop_footer_branch
    %8 = sbr.rel target = $region3
  $region8: #{bilm_forward.6} parent=0 // loop_exit
    _

// kernel: bilm_forward.8
$region0: #{bilm_forward.8}
  #allocation0 [shape = 'u32[]', space=smem, size = 0x4, offset = 0x4, fixed_abs, tag = 'smem constant byte address 0x4 - core index']
  #allocation1 [shape = 'u32[144,128]{1,0:T(1,128)}', space=vmem, size = 0x12000, scoped, tag = 'internal scratch']
  %s0 = inlined_call_operand.vmem [shape: f32[2,16,128], index: 0, kind: input, shape index: {}]
  %s1 = inlined_call_operand.vmem [shape: f32[2,128,512], index: 1, kind: input, shape index: {}]
  %s2 = inlined_call_operand.vmem [shape: f32[2,1,512], index: 2, kind: input, shape index: {}]
  %s3 = inlined_call_operand.vmem [shape: f32[2,16,512], index: 3, kind: output, shape index: {}]
  %s4 = sld [smem:[#allocation0]]
  $region45: #{bilm_forward.8} parent=0
    _
  %s6 = ssub.s32 1, %s4
  %s7 = scalar_select 0, %s6, %s4
  loop: start=0, step=1, limit=4
  $region2: #{bilm_forward.8} parent=0 // loop_pre_header
    _
  $region3: #{bilm_forward.8} parent=0 // loop_header
    %s9 = sphi 0, %s13
    %p10 = scmp.ge.s32.totalorder %s9, 4
    %s16 = sphi 0, %s35
    %s17 = sphi 0, %s31
    %s18 = sphi 0, %s27
    %s19 = sphi 0, %s16
    %s20 = sphi 0, %s17
    %s21 = sphi 0, %s18
    %s22 = sphi 0, %s19
    %s23 = sphi 0, %s20
    %s24 = sphi 0, %s21
    %s40 = sphi 0, %s42
    %s43 = sphi 0, %s40
    %s44 = sphi 0, %s43
    %s60 = sphi 0, %s44
    %s68 = sphi 0, %s70
    %s71 = sphi 0, %s68
    %s72 = sphi 0, %s71
    %s88 = sphi 0, %s72
    %s96 = sphi 0, %s98
    %s99 = sphi 0, %s96
    %s100 = sphi 0, %s99
    %s116 = sphi 0, %s100
    %s126 = sphi 0, %s128
    %s129 = sphi 0, %s126
    %s130 = sphi 0, %s129
    %s146 = sphi 0, %s130
  $region4: #{bilm_forward.8} parent=0 // loop_header_branch
    %12 = sbr.rel (%p10) target = $region8
  $region5: #{bilm_forward.8} parent=0 // loop_body
    %s14 = ssub.s32 %s9, 1
    %s15 = ssub.s32 %s9, 2
    %s25 = sadd.s32 1, %s18
    %p26 = scmp.ge.s32.totalorder %s25, 1
    %s27 = scalar_select %p26, 0, %s25
    %s28 = sadd.s32 1, %s17
    %s29 = scalar_select %p26, %s28, %s17
    %p30 = scmp.ge.s32.totalorder %s29, 1
    %s31 = scalar_select %p30, 0, %s29
    %s32 = sadd.s32 1, %s16
    %s33 = scalar_select %p30, %s32, %s16
    %p34 = scmp.ge.s32.totalorder %s33, 2
    %s35 = scalar_select %p34, 0, %s33
    %s36 = ssub.s32 %s16, %s35
    %s37 = ssub.s32 %s17, %s31
    %s38 = sor.u32 %s36, %s37
    %p39 = scmp.eq.s32.totalorder %s38, 0
    %s41 = sadd.s32 %s40, 1
    %s42 = scalar_select %p39, %s40, %s41
    %p45 = pneg %p39
    %p46 = scmp.eq.s32.totalorder %s9, 1
    %p47 = por %p45, %p46
    %p48 = scmp.ne.s32.totalorder %s40, %s43
    %p49 = scmp.eq.s32.totalorder %s9, 0
    %p50 = por %p48, %p49
    %p51 = scmp.ne.s32.totalorder %s40, %s43
    %p52 = scmp.eq.s32.totalorder %s14, 1
    %p53 = por %p51, %p52
    %p54 = scmp.ne.s32.totalorder %s43, %s44
    %p55 = scmp.eq.s32.totalorder %s14, 0
    %p56 = por %p54, %p55
    %p57 = scmp.ne.s32.totalorder %s43, %s44
    %p58 = scmp.eq.s32.totalorder %s15, 1
    %p59 = por %p57, %p58
    %p61 = scmp.ne.s32.totalorder %s44, %s60
    %p62 = scmp.eq.s32.totalorder %s15, 0
    %p63 = por %p61, %p62
    %s64 = ssub.s32 %s16, %s35
    %s65 = ssub.s32 %s18, %s27
    %s66 = sor.u32 %s64, %s65
    %p67 = scmp.eq.s32.totalorder %s66, 0
    %s69 = sadd.s32 %s68, 1
    %s70 = scalar_select %p67, %s68, %s69
    %p73 = pneg %p67
    %p74 = scmp.eq.s32.totalorder %s9, 1
    %p75 = por %p73, %p74
    %p76 = scmp.ne.s32.totalorder %s68, %s71
    %p77 = scmp.eq.s32.totalorder %s9, 0
    %p78 = por %p76, %p77
    %p79 = scmp.ne.s32.totalorder %s68, %s71
    %p80 = scmp.eq.s32.totalorder %s14, 1
    %p81 = por %p79, %p80
    %p82 = scmp.ne.s32.totalorder %s71, %s72
    %p83 = scmp.eq.s32.totalorder %s14, 0
    %p84 = por %p82, %p83
    %p85 = scmp.ne.s32.totalorder %s71, %s72
    %p86 = scmp.eq.s32.totalorder %s15, 1
    %p87 = por %p85, %p86
    %p89 = scmp.ne.s32.totalorder %s72, %s88
    %p90 = scmp.eq.s32.totalorder %s15, 0
    %p91 = por %p89, %p90
    %s92 = ssub.s32 %s16, %s35
    %s93 = ssub.s32 %s18, %s27
    %s94 = sor.u32 %s92, %s93
    %p95 = scmp.eq.s32.totalorder %s94, 0
    %s97 = sadd.s32 %s96, 1
    %s98 = scalar_select %p95, %s96, %s97
    %p101 = pneg %p95
    %p102 = scmp.eq.s32.totalorder %s9, 1
    %p103 = por %p101, %p102
    %p104 = scmp.ne.s32.totalorder %s96, %s99
    %p105 = scmp.eq.s32.totalorder %s9, 0
    %p106 = por %p104, %p105
    %p107 = scmp.ne.s32.totalorder %s96, %s99
    %p108 = scmp.eq.s32.totalorder %s14, 1
    %p109 = por %p107, %p108
    %p110 = scmp.ne.s32.totalorder %s99, %s100
    %p111 = scmp.eq.s32.totalorder %s14, 0
    %p112 = por %p110, %p111
    %p113 = scmp.ne.s32.totalorder %s99, %s100
    %p114 = scmp.eq.s32.totalorder %s15, 1
    %p115 = por %p113, %p114
    %p117 = scmp.ne.s32.totalorder %s100, %s116
    %p118 = scmp.eq.s32.totalorder %s15, 0
    %p119 = por %p117, %p118
    %s120 = ssub.s32 %s16, %s35
    %s121 = ssub.s32 %s17, %s31
    %s122 = sor.u32 %s120, %s121
    %s123 = ssub.s32 %s18, %s27
    %s124 = sor.u32 %s122, %s123
    %p125 = scmp.eq.s32.totalorder %s124, 0
    %s127 = sadd.s32 %s126, 1
    %s128 = scalar_select %p125, %s126, %s127
    %p131 = pneg %p125
    %p132 = scmp.eq.s32.totalorder %s9, 1
    %p133 = por %p131, %p132
    %p134 = scmp.ne.s32.totalorder %s126, %s129
    %p135 = scmp.eq.s32.totalorder %s9, 0
    %p136 = por %p134, %p135
    %p137 = scmp.ne.s32.totalorder %s126, %s129
    %p138 = scmp.eq.s32.totalorder %s14, 1
    %p139 = por %p137, %p138
    %p140 = scmp.ne.s32.totalorder %s129, %s130
    %p141 = scmp.eq.s32.totalorder %s14, 0
    %p142 = por %p140, %p141
    %p143 = scmp.ne.s32.totalorder %s129, %s130
    %p144 = scmp.eq.s32.totalorder %s15, 1
    %p145 = por %p143, %p144
    %p147 = scmp.ne.s32.totalorder %s130, %s146
    %p148 = scmp.eq.s32.totalorder %s15, 0
    %p149 = por %p147, %p148
    %p150 = scmp.le.s32.totalorder 1, %s9
    %p151 = scmp.lt.s32.totalorder %s9, 3
    %p152 = pnand %p150, %p151
    %p153 = pneg %p152
    // Predicated region
    $region9: #{bilm_forward.8} parent=5 // pred_check
      _
    $region10: #{bilm_forward.8} parent=5 // pred_check_branch
      %155 = sbr.rel (%p152) target = $region12
    $region11: #{bilm_forward.8} parent=5 // pred_region
      %s156 = ssub.s32 %s9, 1
    $region12: #{bilm_forward.8} parent=5 // pred_fallthru
      _
    %p157 = scmp.lt.s32.totalorder %s9, 2
    // Predicated region
    $region13: #{bilm_forward.8} parent=5 // pred_check
      %p158 = pneg %p157
    $region14: #{bilm_forward.8} parent=5 // pred_check_branch
      %160 = sbr.rel (%p158) target = $region16
    $region15: #{bilm_forward.8} parent=5 // pred_region
      // Predicated region
      $region17: #{bilm_forward.8} parent=15 // pred_check
        %p161 = pneg %p50
      $region18: #{bilm_forward.8} parent=15 // pred_check_branch
        %163 = sbr.rel (%p161) target = $region20
      $region19: #{bilm_forward.8} parent=15 // pred_region
        %s164 = smul.u32 2, %s17
        %p165 = scmp.lt.s32.totalorder %s16, 1
        %s166 = scalar_select %p165, %s16, 1
        %p167 = scmp.lt.s32.totalorder %s164, 1
        %s168 = scalar_select %p167, %s164, 1
        %s169 = smul.addr %s166, 2
        %s170 = sadd.s32 %s168, %s169
        %s171 = smul.addr %s170, 8
        %s172 = scalar_lea.vmem %s0, %s171
        %s173 = smul.u32 2, %s17
      $region20: #{bilm_forward.8} parent=15 // pred_fallthru
        _
      // Predicated region
      $region21: #{bilm_forward.8} parent=15 // pred_check
        %p174 = pneg %p78
      $region22: #{bilm_forward.8} parent=15 // pred_check_branch
        %176 = sbr.rel (%p174) target = $region24
      $region23: #{bilm_forward.8} parent=15 // pred_region
        %s177 = smul.u32 4, %s18
        %p178 = scmp.lt.s32.totalorder %s16, 1
        %s179 = scalar_select %p178, %s16, 1
        %p180 = scmp.lt.s32.totalorder %s177, 3
        %s181 = scalar_select %p180, %s177, 3
        %s182 = smul.addr %s179, 64
        %s183 = sadd.s32 %s181, %s182
        %s184 = smul.addr %s183, 8
        %s185 = scalar_lea.vmem %s1, %s184
        %s186 = smul.u32 4, %s18
      $region24: #{bilm_forward.8} parent=15 // pred_fallthru
        _
      // Predicated region
      $region25: #{bilm_forward.8} parent=15 // pred_check
        %p187 = pneg %p106
      $region26: #{bilm_forward.8} parent=15 // pred_check_branch
        %189 = sbr.rel (%p187) target = $region28
      $region27: #{bilm_forward.8} parent=15 // pred_region
        %s190 = smul.u32 4, %s18
        %p191 = scmp.lt.s32.totalorder %s16, 1
        %s192 = scalar_select %p191, %s16, 1
        %p193 = scmp.lt.s32.totalorder %s190, 3
        %s194 = scalar_select %p193, %s190, 3
        %s195 = smul.addr %s192, 4
        %s196 = sadd.s32 %s194, %s195
        %s197 = scalar_lea.vmem %s2, %s196
        %s198 = smul.u32 4, %s18
      $region28: #{bilm_forward.8} parent=15 // pred_fallthru
        _
    $region16: #{bilm_forward.8} parent=5 // pred_fallthru
      _
    %p199 = scmp.le.s32.totalorder 1, %s9
    %p200 = scmp.lt.s32.totalorder %s9, 3
    %p201 = pnand %p199, %p200
    %p202 = pneg %p201
    // Predicated region
    $region29: #{bilm_forward.8} parent=5 // pred_check
      _
    $region30: #{bilm_forward.8} parent=5 // pred_check_branch
      %204 = sbr.rel (%p201) target = $region32
    $region31: #{bilm_forward.8} parent=5 // pred_region
      %s205 = ssub.s32 %s9, 1
      %s206 = smul.u32 2, %s20
      %p207 = scmp.lt.s32.totalorder %s19, 1
      %s208 = scalar_select %p207, %s19, 1
      %p209 = scmp.lt.s32.totalorder %s206, 1
      %s210 = scalar_select %p209, %s206, 1
      %s211 = smul.addr %s208, 2
      %s212 = sadd.s32 %s210, %s211
      %s213 = smul.addr %s212, 8
      %s214 = scalar_lea.vmem %s0, %s213
      %p215 = pneg %p56
      %p216 = pneg %p53
      %s217 = smul.u32 4, %s21
      %p218 = scmp.lt.s32.totalorder %s19, 1
      %s219 = scalar_select %p218, %s19, 1
      %p220 = scmp.lt.s32.totalorder %s217, 3
      %s221 = scalar_select %p220, %s217, 3
      %s222 = smul.addr %s219, 64
      %s223 = sadd.s32 %s221, %s222
      %s224 = smul.addr %s223, 8
      %s225 = scalar_lea.vmem %s1, %s224
      %p226 = pneg %p84
      %p227 = pneg %p81
      %s228 = smul.u32 4, %s21
      %p229 = scmp.lt.s32.totalorder %s19, 1
      %s230 = scalar_select %p229, %s19, 1
      %p231 = scmp.lt.s32.totalorder %s228, 3
      %s232 = scalar_select %p231, %s228, 3
      %s233 = smul.addr %s230, 4
      %s234 = sadd.s32 %s232, %s233
      %s235 = scalar_lea.vmem %s2, %s234
      %p236 = pneg %p112
      %p237 = pneg %p109
      %p238 = pneg %p142
      %p239 = pneg %p139
      %s240 = smul.u32 2, %s20
      %s241 = smul.u32 4, %s21
      %p242 = scmp.lt.s32.totalorder %s19, 1
      %s243 = scalar_select %p242, %s19, 1
      %p244 = scmp.lt.s32.totalorder %s240, 1
      %s245 = scalar_select %p244, %s240, 1
      %p246 = scmp.lt.s32.totalorder %s241, 3
      %s247 = scalar_select %p246, %s241, 3
      %s248 = smul.addr %s245, 4
      %s249 = sadd.s32 %s247, %s248
      %s250 = smul.addr %s243, 8
      %s251 = sadd.s32 %s249, %s250
      %s252 = smul.addr %s251, 8
      %s253 = scalar_lea.vmem %s3, %s252
      %s254 = smul.u32 2, %s20
      %p255 = scmp.lt.s32.totalorder %s19, 1
      %s256 = scalar_select %p255, %s19, 1
      %p257 = scmp.lt.s32.totalorder %s254, 1
      %s258 = scalar_select %p257, %s254, 1
      %s259 = smul.addr %s256, 2
      %s260 = sadd.s32 %s258, %s259
      %s261 = smul.addr %s260, 8
      %s262 = scalar_lea.vmem %s0, %s261
      %s263 = smul.u32 2, %s20
      %s264 = smul.u32 4, %s21
      %p265 = scmp.lt.s32.totalorder %s19, 1
      %s266 = scalar_select %p265, %s19, 1
      %p267 = scmp.lt.s32.totalorder %s264, 3
      %s268 = scalar_select %p267, %s264, 3
      %s269 = smul.addr %s266, 64
      %s270 = sadd.s32 %s268, %s269
      %s271 = smul.addr %s270, 8
      %s272 = scalar_lea.vmem %s1, %s271
      %s273 = smul.u32 4, %s21
      %s274 = smul.u32 4, %s21
      %p275 = scmp.lt.s32.totalorder %s19, 1
      %s276 = scalar_select %p275, %s19, 1
      %p277 = scmp.lt.s32.totalorder %s274, 3
      %s278 = scalar_select %p277, %s274, 3
      %s279 = smul.addr %s276, 4
      %s280 = sadd.s32 %s278, %s279
      %s281 = scalar_lea.vmem %s2, %s280
      %s282 = smul.u32 4, %s21
      %s283 = smul.u32 2, %s20
      %s284 = smul.u32 4, %s21
      %p285 = scmp.lt.s32.totalorder %s19, 1
      %s286 = scalar_select %p285, %s19, 1
      %p287 = scmp.lt.s32.totalorder %s283, 1
      %s288 = scalar_select %p287, %s283, 1
      %p289 = scmp.lt.s32.totalorder %s284, 3
      %s290 = scalar_select %p289, %s284, 3
      %s291 = smul.addr %s288, 4
      %s292 = sadd.s32 %s290, %s291
      %s293 = smul.addr %s286, 8
      %s294 = sadd.s32 %s292, %s293
      %s295 = smul.addr %s294, 8
      %s296 = scalar_lea.vmem %s3, %s295
      %s297 = smul.u32 2, %s20
      %s298 = smul.u32 4, %s21
      %v300 = vld [vmem:[%s262] sm:$0xff]
      %v301 = vld [vmem:[%s262 + $0x8] sm:$0xff]
      %v302 = vpack.c.bf16 %v301, %v300
      %v303 = vld [vmem:[%s272] sm:$0xff]
      %v304 = vld [vmem:[%s272 + $0x8] sm:$0xff]
      %v305 = vld [vmem:[%s272 + $0x10] sm:$0xff]
      %v306 = vld [vmem:[%s272 + $0x18] sm:$0xff]
      %v307 = vld [vmem:[%s272 + $0x20] sm:$0xff]
      %v308 = vld [vmem:[%s272 + $0x28] sm:$0xff]
      %v309 = vld [vmem:[%s272 + $0x30] sm:$0xff]
      %v310 = vld [vmem:[%s272 + $0x38] sm:$0xff]
      %v311 = vld [vmem:[%s272 + $0x40] sm:$0xff]
      %v312 = vld [vmem:[%s272 + $0x48] sm:$0xff]
      %v313 = vld [vmem:[%s272 + $0x50] sm:$0xff]
      %v314 = vld [vmem:[%s272 + $0x58] sm:$0xff]
      %v315 = vld [vmem:[%s272 + $0x60] sm:$0xff]
      %v316 = vld [vmem:[%s272 + $0x68] sm:$0xff]
      %v317 = vld [vmem:[%s272 + $0x70] sm:$0xff]
      %v318 = vld [vmem:[%s272 + $0x78] sm:$0xff]
      %v319 = vld [vmem:[%s272 + $0x80] sm:$0xff]
      %v320 = vld [vmem:[%s272 + $0x88] sm:$0xff]
      %v321 = vld [vmem:[%s272 + $0x90] sm:$0xff]
      %v322 = vld [vmem:[%s272 + $0x98] sm:$0xff]
      %v323 = vld [vmem:[%s272 + $0xa0] sm:$0xff]
      %v324 = vld [vmem:[%s272 + $0xa8] sm:$0xff]
      %v325 = vld [vmem:[%s272 + $0xb0] sm:$0xff]
      %v326 = vld [vmem:[%s272 + $0xb8] sm:$0xff]
      %v327 = vld [vmem:[%s272 + $0xc0] sm:$0xff]
      %v328 = vld [vmem:[%s272 + $0xc8] sm:$0xff]
      %v329 = vld [vmem:[%s272 + $0xd0] sm:$0xff]
      %v330 = vld [vmem:[%s272 + $0xd8] sm:$0xff]
      %v331 = vld [vmem:[%s272 + $0xe0] sm:$0xff]
      %v332 = vld [vmem:[%s272 + $0xe8] sm:$0xff]
      %v333 = vld [vmem:[%s272 + $0xf0] sm:$0xff]
      %v334 = vld [vmem:[%s272 + $0xf8] sm:$0xff]
      %v335 = vld [vmem:[%s272 + $0x100] sm:$0xff]
      %v336 = vld [vmem:[%s272 + $0x108] sm:$0xff]
      %v337 = vld [vmem:[%s272 + $0x110] sm:$0xff]
      %v338 = vld [vmem:[%s272 + $0x118] sm:$0xff]
      %v339 = vld [vmem:[%s272 + $0x120] sm:$0xff]
      %v340 = vld [vmem:[%s272 + $0x128] sm:$0xff]
      %v341 = vld [vmem:[%s272 + $0x130] sm:$0xff]
      %v342 = vld [vmem:[%s272 + $0x138] sm:$0xff]
      %v343 = vld [vmem:[%s272 + $0x140] sm:$0xff]
      %v344 = vld [vmem:[%s272 + $0x148] sm:$0xff]
      %v345 = vld [vmem:[%s272 + $0x150] sm:$0xff]
      %v346 = vld [vmem:[%s272 + $0x158] sm:$0xff]
      %v347 = vld [vmem:[%s272 + $0x160] sm:$0xff]
      %v348 = vld [vmem:[%s272 + $0x168] sm:$0xff]
      %v349 = vld [vmem:[%s272 + $0x170] sm:$0xff]
      %v350 = vld [vmem:[%s272 + $0x178] sm:$0xff]
      %v351 = vld [vmem:[%s272 + $0x180] sm:$0xff]
      %v352 = vld [vmem:[%s272 + $0x188] sm:$0xff]
      %v353 = vld [vmem:[%s272 + $0x190] sm:$0xff]
      %v354 = vld [vmem:[%s272 + $0x198] sm:$0xff]
      %v355 = vld [vmem:[%s272 + $0x1a0] sm:$0xff]
      %v356 = vld [vmem:[%s272 + $0x1a8] sm:$0xff]
      %v357 = vld [vmem:[%s272 + $0x1b0] sm:$0xff]
      %v358 = vld [vmem:[%s272 + $0x1b8] sm:$0xff]
      %v359 = vld [vmem:[%s272 + $0x1c0] sm:$0xff]
      %v360 = vld [vmem:[%s272 + $0x1c8] sm:$0xff]
      %v361 = vld [vmem:[%s272 + $0x1d0] sm:$0xff]
      %v362 = vld [vmem:[%s272 + $0x1d8] sm:$0xff]
      %v363 = vld [vmem:[%s272 + $0x1e0] sm:$0xff]
      %v364 = vld [vmem:[%s272 + $0x1e8] sm:$0xff]
      %v365 = vld [vmem:[%s272 + $0x1f0] sm:$0xff]
      %v366 = vld [vmem:[%s272 + $0x1f8] sm:$0xff]
      %v367 = vpack.c.bf16 %v307, %v303
      %v368 = vpack.c.bf16 %v308, %v304
      %v369 = vpack.c.bf16 %v309, %v305
      %v370 = vpack.c.bf16 %v310, %v306
      %v371 = vpack.c.bf16 %v315, %v311
      %v372 = vpack.c.bf16 %v316, %v312
      %v373 = vpack.c.bf16 %v317, %v313
      %v374 = vpack.c.bf16 %v318, %v314
      %v375 = vpack.c.bf16 %v323, %v319
      %v376 = vpack.c.bf16 %v324, %v320
      %v377 = vpack.c.bf16 %v325, %v321
      %v378 = vpack.c.bf16 %v326, %v322
      %v379 = vpack.c.bf16 %v331, %v327
      %v380 = vpack.c.bf16 %v332, %v328
      %v381 = vpack.c.bf16 %v333, %v329
      %v382 = vpack.c.bf16 %v334, %v330
      %v383 = vpack.c.bf16 %v339, %v335
      %v384 = vpack.c.bf16 %v340, %v336
      %v385 = vpack.c.bf16 %v341, %v337
      %v386 = vpack.c.bf16 %v342, %v338
      %v387 = vpack.c.bf16 %v347, %v343
      %v388 = vpack.c.bf16 %v348, %v344
      %v389 = vpack.c.bf16 %v349, %v345
      %v390 = vpack.c.bf16 %v350, %v346
      %v391 = vpack.c.bf16 %v355, %v351
      %v392 = vpack.c.bf16 %v356, %v352
      %v393 = vpack.c.bf16 %v357, %v353
      %v394 = vpack.c.bf16 %v358, %v354
      %v395 = vpack.c.bf16 %v363, %v359
      %v396 = vpack.c.bf16 %v364, %v360
      %v397 = vpack.c.bf16 %v365, %v361
      %v398 = vpack.c.bf16 %v366, %v362
      %v399 = vld [vmem:[%s281] sm:$0xf]
      %v401 = vlaneseq
      %v402 = vshrl.u32 %v401, 7
      %v403 = vsub.s32 0, %v402
      %v404 = vrot.slane %v399, %v403
      %v405 = vlaneseq
      %v406 = vshrl.u32 %v405, 7
      %v407 = vsub.s32 1, %v406
      %v408 = vrot.slane %v399, %v407
      %v409 = vlaneseq
      %v410 = vshrl.u32 %v409, 7
      %v411 = vsub.s32 2, %v410
      %v412 = vrot.slane %v399, %v411
      %v413 = vlaneseq
      %v414 = vshrl.u32 %v413, 7
      %v415 = vsub.s32 3, %v414
      %v416 = vrot.slane %v399, %v415
      %421 = vmatprep.subr.bf16.mxu0 %v368
      %422 = vmatpush1.bf16.msra.mxu0 %v367
      %423 = vmatprep.subr.bf16.mxu0 %v372
      %424 = vmatpush1.bf16.msra.mxu0 %v371
      %425 = vmatprep.subr.bf16.mxu0 %v376
      %426 = vmatpush1.bf16.msra.mxu0 %v375
      %427 = vmatprep.subr.bf16.mxu0 %v380
      %428 = vmatpush1.bf16.msra.mxu0 %v379
      %429 = vmatprep.subr.bf16.mxu0 %v384
      %430 = vmatpush1.bf16.msra.mxu0 %v383
      %431 = vmatprep.subr.bf16.mxu0 %v388
      %432 = vmatpush1.bf16.msra.mxu0 %v387
      %433 = vmatprep.subr.bf16.mxu0 %v392
      %434 = vmatpush1.bf16.msra.mxu0 %v391
      %435 = vmatprep.subr.bf16.mxu0 %v396
      %436 = vmatpush1.bf16.msra.mxu0 %v395
      %437 = vmatprep.subr.bf16.mxu0 0
      %438 = vmatpush1.bf16.msra.mxu0 0
      %439 = vmatprep.subr.bf16.mxu0 0
      %440 = vmatpush1.bf16.msra.mxu0 0
      %441 = vmatprep.subr.bf16.mxu0 0
      %442 = vmatpush1.bf16.msra.mxu0 0
      %443 = vmatprep.subr.bf16.mxu0 0
      %444 = vmatpush1.bf16.msra.mxu0 0
      %445 = vmatprep.subr.bf16.mxu0 0
      %446 = vmatpush1.bf16.msra.mxu0 0
      %447 = vmatprep.subr.bf16.mxu0 0
      %448 = vmatpush1.bf16.msra.mxu0 0
      %449 = vmatprep.subr.bf16.mxu0 0
      %450 = vmatpush1.bf16.msra.mxu0 0
      %451 = vmatprep.subr.bf16.mxu0 0
      %452 = vmatpush1.bf16.msra.mxu0 0
      %453 = vmatprep.mubr.bf16.mxu0 0
      %454 = vmatmul.mubr.bf16.gmra.mrb[0].mxu0 %v302
      %v455 = vpop.f32.mrb[0].mxu0
      %v456 = vadd.f32 %v404, %v455
      %v457 = vpop.f32.mrb[0].mxu0
      %v458 = vadd.f32 %v408, %v457
      %v459 = vpop.f32.mrb[0].mxu0
      %v460 = vadd.f32 %v404, %v459
      %v461 = vpop.f32.mrb[0].mxu0
      %v462 = vadd.f32 %v408, %v461
      %463 = vdwg.mxu0
      %464 = vmatprep.subr.bf16.mxu0 %v370
      %465 = vmatpush1.bf16.msra.mxu0 %v369
      %466 = vmatprep.subr.bf16.mxu0 %v374
      %467 = vmatpush1.bf16.msra.mxu0 %v373
      %468 = vmatprep.subr.bf16.mxu0 %v378
      %469 = vmatpush1.bf16.msra.mxu0 %v377
      %470 = vmatprep.subr.bf16.mxu0 %v382
      %471 = vmatpush1.bf16.msra.mxu0 %v381
      %472 = vmatprep.subr.bf16.mxu0 %v386
      %473 = vmatpush1.bf16.msra.mxu0 %v385
      %474 = vmatprep.subr.bf16.mxu0 %v390
      %475 = vmatpush1.bf16.msra.mxu0 %v389
      %476 = vmatprep.subr.bf16.mxu0 %v394
      %477 = vmatpush1.bf16.msra.mxu0 %v393
      %478 = vmatprep.subr.bf16.mxu0 %v398
      %479 = vmatpush1.bf16.msra.mxu0 %v397
      %480 = vmatprep.subr.bf16.mxu0 0
      %481 = vmatpush1.bf16.msra.mxu0 0
      %482 = vmatprep.subr.bf16.mxu0 0
      %483 = vmatpush1.bf16.msra.mxu0 0
      %484 = vmatprep.subr.bf16.mxu0 0
      %485 = vmatpush1.bf16.msra.mxu0 0
      %486 = vmatprep.subr.bf16.mxu0 0
      %487 = vmatpush1.bf16.msra.mxu0 0
      %488 = vmatprep.subr.bf16.mxu0 0
      %489 = vmatpush1.bf16.msra.mxu0 0
      %490 = vmatprep.subr.bf16.mxu0 0
      %491 = vmatpush1.bf16.msra.mxu0 0
      %492 = vmatprep.subr.bf16.mxu0 0
      %493 = vmatpush1.bf16.msra.mxu0 0
      %494 = vmatprep.subr.bf16.mxu0 0
      %495 = vmatpush1.bf16.msra.mxu0 0
      %496 = vmatprep.mubr.bf16.mxu0 0
      %497 = vmatmul.mubr.bf16.gmra.mrb[0].mxu0 %v302
      %v498 = vpop.f32.mrb[0].mxu0
      %v499 = vadd.f32 %v412, %v498
      %v500 = vpop.f32.mrb[0].mxu0
      %v501 = vadd.f32 %v416, %v500
      %v502 = vpop.f32.mrb[0].mxu0
      %v503 = vadd.f32 %v412, %v502
      %v504 = vpop.f32.mrb[0].mxu0
      %v505 = vadd.f32 %v416, %v504
      %506 = vdwg.mxu0
      %507 = vst [vmem:[%s296] sm:$0xff] %v456
      %508 = vst [vmem:[%s296 + $0x8] sm:$0xff] %v458
      %509 = vst [vmem:[%s296 + $0x10] sm:$0xff] %v499
      %510 = vst [vmem:[%s296 + $0x18] sm:$0xff] %v501
      %511 = vst [vmem:[%s296 + $0x20] sm:$0xff] %v460
      %512 = vst [vmem:[%s296 + $0x28] sm:$0xff] %v462
      %513 = vst [vmem:[%s296 + $0x30] sm:$0xff] %v503
      %514 = vst [vmem:[%s296 + $0x38] sm:$0xff] %v505
      %s515 = smul.u32 2, %s20
      %s516 = smul.u32 4, %s21
      %p517 = scmp.lt.s32.totalorder %s19, 1
      %s518 = scalar_select %p517, %s19, 1
      %p519 = scmp.lt.s32.totalorder %s515, 1
      %s520 = scalar_select %p519, %s515, 1
      %p521 = scmp.lt.s32.totalorder %s516, 3
      %s522 = scalar_select %p521, %s516, 3
      %s523 = smul.addr %s520, 4
      %s524 = sadd.s32 %s522, %s523
      %s525 = smul.addr %s518, 8
      %s526 = sadd.s32 %s524, %s525
      %s527 = smul.addr %s526, 8
      %s528 = scalar_lea.vmem %s3, %s527
      // Predicated region
      $region33: #{bilm_forward.8} parent=31 // pred_check
        %p529 = pneg %p139
      $region34: #{bilm_forward.8} parent=31 // pred_check_branch
        %531 = sbr.rel (%p529) target = $region36
      $region35: #{bilm_forward.8} parent=31 // pred_region
        %s532 = smul.u32 2, %s20
        %s533 = smul.u32 4, %s21
      $region36: #{bilm_forward.8} parent=31 // pred_fallthru
        _
    $region32: #{bilm_forward.8} parent=5 // pred_fallthru
      _
    %p534 = scmp.le.s32.totalorder 2, %s9
    // Predicated region
    $region37: #{bilm_forward.8} parent=5 // pred_check
      %p535 = pneg %p534
    $region38: #{bilm_forward.8} parent=5 // pred_check_branch
      %537 = sbr.rel (%p535) target = $region40
    $region39: #{bilm_forward.8} parent=5 // pred_region
      %s538 = ssub.s32 %s9, 2
      // Predicated region
      $region41: #{bilm_forward.8} parent=39 // pred_check
        %p539 = pneg %p145
      $region42: #{bilm_forward.8} parent=39 // pred_check_branch
        %541 = sbr.rel (%p539) target = $region44
      $region43: #{bilm_forward.8} parent=39 // pred_region
        %s542 = smul.u32 2, %s23
        %s543 = smul.u32 4, %s24
        %p544 = scmp.lt.s32.totalorder %s22, 1
        %s545 = scalar_select %p544, %s22, 1
        %p546 = scmp.lt.s32.totalorder %s542, 1
        %s547 = scalar_select %p546, %s542, 1
        %p548 = scmp.lt.s32.totalorder %s543, 3
        %s549 = scalar_select %p548, %s543, 3
        %s550 = smul.addr %s547, 4
        %s551 = sadd.s32 %s549, %s550
        %s552 = smul.addr %s545, 8
        %s553 = sadd.s32 %s551, %s552
        %s554 = smul.addr %s553, 8
        %s555 = scalar_lea.vmem %s3, %s554
      $region44: #{bilm_forward.8} parent=39 // pred_fallthru
        _
    $region40: #{bilm_forward.8} parent=5 // pred_fallthru
      _
  $region6: #{bilm_forward.8} parent=0 // loop_footer
    %s13 = sadd.s32 1, %s9
  $region7: #{bilm_forward.8} parent=0 // loop_footer_branch
    %8 = sbr.rel target = $region3
  $region8: #{bilm_forward.8} parent=0 // loop_exit
    _

// kernel: bilm_forward.10
$region0: #{bilm_forward.10}
  #allocation0 [shape = 'u32[]', space=smem, size = 0x4, offset = 0x4, fixed_abs, tag = 'smem constant byte address 0x4 - core index']
  #allocation1 [shape = 'u32[144,128]{1,0:T(1,128)}', space=vmem, size = 0x12000, scoped, tag = 'internal scratch']
  %s0 = inlined_call_operand.vmem [shape: f32[8,2,128], index: 0, kind: input, shape index: {}]
  %s1 = inlined_call_operand.vmem [shape: f32[8,2,128], index: 1, kind: input, shape index: {}]
  %s2 = inlined_call_operand.vmem [shape: f32[8,2,128], index: 2, kind: output, shape index: {}]
  %s3 = sld [smem:[#allocation0]]
  $region18: #{bilm_forward.10} parent=0
    _
  %s5 = ssub.s32 1, %s3
  %s6 = scalar_select 0, %s5, %s3
  // Predicated region
  $region2: #{bilm_forward.10} parent=0 // pred_check
    _
  $region3: #{bilm_forward.10} parent=0 // pred_check_branch
    %8 = sbr.rel (0) target = $region5
  $region4: #{bilm_forward.10} parent=0 // pred_region
    _
  $region5: #{bilm_forward.10} parent=0 // pred_fallthru
    _
  // Predicated region
  $region6: #{bilm_forward.10} parent=0 // pred_check
    _
  $region7: #{bilm_forward.10} parent=0 // pred_check_branch
    %10 = sbr.rel (0) target = $region9
  $region8: #{bilm_forward.10} parent=0 // pred_region
    %s11 = ssub.s32 0, 0
    %s12 = smul.u32 8, %s11
    %p13 = scmp.lt.s32.totalorder %s12, 7
    %s14 = scalar_select %p13, %s12, 7
    %s15 = smul.addr %s14, 2
    %s16 = scalar_lea.vmem %s1, %s15
    %s17 = ssub.s32 0, 0
    %s18 = smul.u32 8, %s17
  $region9: #{bilm_forward.10} parent=0 // pred_fallthru
    _
  %s19 = ssub.s32 0, 0
  %s20 = smul.u32 8, %s19
  %p21 = scmp.lt.s32.totalorder %s20, 7
  %s22 = scalar_select %p21, %s20, 7
  %s23 = smul.addr %s22, 2
  %s24 = scalar_lea.vmem %s1, %s23
  %s25 = ssub.s32 0, 0
  %s26 = smul.u32 8, %s25
  %p27 = scmp.lt.s32.totalorder %s26, 7
  %s28 = scalar_select %p27, %s26, 7
  %s29 = smul.addr %s28, 2
  %s30 = scalar_lea.vmem %s1, %s29
  %s31 = ssub.s32 0, 0
  %s32 = smul.u32 8, %s31
  %v33 = vld [vmem:[%s0] sm:$0x3]
  %s34 = scalar_lea.vmem %s30, 14
  %v35 = vld [vmem:[%s34] sm:$0x3]
  %v36 = vadd.f32 %v33, %v35
  %37 = vst [vmem:[%s2] sm:$0x3] %v36
  %s38 = scalar_lea.vmem %s0, 2
  %v39 = vld [vmem:[%s38] sm:$0x3]
  %s40 = scalar_lea.vmem %s30, 12
  %v41 = vld [vmem:[%s40] sm:$0x3]
  %v42 = vadd.f32 %v39, %v41
  %s43 = scalar_lea.vmem %s2, 2
  %44 = vst [vmem:[%s43] sm:$0x3] %v42
  %s45 = scalar_lea.vmem %s0, 4
  %v46 = vld [vmem:[%s45] sm:$0x3]
  %s47 = scalar_lea.vmem %s30, 10
  %v48 = vld [vmem:[%s47] sm:$0x3]
  %v49 = vadd.f32 %v46, %v48
  %s50 = scalar_lea.vmem %s2, 4
  %51 = vst [vmem:[%s50] sm:$0x3] %v49
  %s52 = scalar_lea.vmem %s0, 6
  %v53 = vld [vmem:[%s52] sm:$0x3]
  %s54 = scalar_lea.vmem %s30, 8
  %v55 = vld [vmem:[%s54] sm:$0x3]
  %v56 = vadd.f32 %v53, %v55
  %s57 = scalar_lea.vmem %s2, 6
  %58 = vst [vmem:[%s57] sm:$0x3] %v56
  %s59 = scalar_lea.vmem %s0, 8
  %v60 = vld [vmem:[%s59] sm:$0x3]
  %s61 = scalar_lea.vmem %s30, 6
  %v62 = vld [vmem:[%s61] sm:$0x3]
  %v63 = vadd.f32 %v60, %v62
  %s64 = scalar_lea.vmem %s2, 8
  %65 = vst [vmem:[%s64] sm:$0x3] %v63
  %s66 = scalar_lea.vmem %s0, 10
  %v67 = vld [vmem:[%s66] sm:$0x3]
  %s68 = scalar_lea.vmem %s30, 4
  %v69 = vld [vmem:[%s68] sm:$0x3]
  %v70 = vadd.f32 %v67, %v69
  %s71 = scalar_lea.vmem %s2, 10
  %72 = vst [vmem:[%s71] sm:$0x3] %v70
  %s73 = scalar_lea.vmem %s0, 12
  %v74 = vld [vmem:[%s73] sm:$0x3]
  %s75 = scalar_lea.vmem %s30, 2
  %v76 = vld [vmem:[%s75] sm:$0x3]
  %v77 = vadd.f32 %v74, %v76
  %s78 = scalar_lea.vmem %s2, 12
  %79 = vst [vmem:[%s78] sm:$0x3] %v77
  %s80 = scalar_lea.vmem %s0, 14
  %v81 = vld [vmem:[%s80] sm:$0x3]
  %v82 = vld [vmem:[%s30] sm:$0x3]
  %v83 = vadd.f32 %v81, %v82
  %s84 = scalar_lea.vmem %s2, 14
  %85 = vst [vmem:[%s84] sm:$0x3] %v83
  // Predicated region
  $region10: #{bilm_forward.10} parent=0 // pred_check
    _
  $region11: #{bilm_forward.10} parent=0 // pred_check_branch
    %87 = sbr.rel (0) target = $region13
  $region12: #{bilm_forward.10} parent=0 // pred_region
    _
  $region13: #{bilm_forward.10} parent=0 // pred_fallthru
    _
  // Predicated region
  $region14: #{bilm_forward.10} parent=0 // pred_check
    _
  $region15: #{bilm_forward.10} parent=0 // pred_check_branch
    %89 = sbr.rel (0) target = $region17
  $region16: #{bilm_forward.10} parent=0 // pred_region
    _
  $region17: #{bilm_forward.10} parent=0 // pred_fallthru
    _

// kernel: bilm_forward.7
$region0: #{bilm_forward.7}
  #allocation0 [shape = 'u32[]', space=smem, size = 0x4, offset = 0x4, fixed_abs, tag = 'smem constant byte address 0x4 - core index']
  #allocation1 [shape = 'u32[144,128]{1,0:T(1,128)}', space=vmem, size = 0x12000, scoped, tag = 'internal scratch']
  #allocation2 [shape = 'f32[2,128]{1,0:T(2,128)}', space=vmem, size = 0x400, scoped, tag = 'scratch operand']
  #allocation3 [shape = 'f32[2,128]{1,0:T(2,128)}', space=vmem, size = 0x400, scoped, tag = 'scratch operand']
  %s0 = inlined_call_operand.vmem [shape: f32[2,8,2,512], index: 0, kind: input, shape index: {}]
  %s1 = inlined_call_operand.vmem [shape: bf16[2,128,512], index: 1, kind: input, shape index: {}]
  %s2 = inlined_call_operand.vmem [shape: f32[2,2,128], index: 2, kind: input, shape index: {}]
  %s3 = inlined_call_operand.vmem [shape: f32[2,2,128], index: 3, kind: input, shape index: {}]
  %s4 = inlined_call_operand.vmem [shape: f32[2,8,2,128], index: 4, kind: output, shape index: {0}]
  %s5 = inlined_call_operand.vmem [shape: f32[2,2,128], index: 5, kind: output, shape index: {1}]
  %s6 = inlined_call_operand.vmem [shape: f32[2,2,128], index: 6, kind: output, shape index: {2}]
  %7 = xla_tuple %s4, %s5, %s6
  %s8 = sld [smem:[#allocation0]]
  $region73: #{bilm_forward.7} parent=0
    _
  %s10 = ssub.s32 1, %s8
  %s11 = scalar_select 0, %s10, %s8
  loop: start=0, step=1, limit=4
  $region2: #{bilm_forward.7} parent=0 // loop_pre_header
    _
  $region3: #{bilm_forward.7} parent=0 // loop_header
    %s13 = sphi 0, %s17
    %p14 = scmp.ge.s32.totalorder %s13, 4
    %s20 = sphi 0, %s32
    %s21 = sphi 0, %s28
    %s22 = sphi 0, %s20
    %s23 = sphi 0, %s21
    %s24 = sphi 0, %s22
    %s25 = sphi 0, %s23
    %s37 = sphi 0, %s39
    %s40 = sphi 0, %s37
    %s41 = sphi 0, %s40
    %s57 = sphi 0, %s41
    %s63 = sphi 0, %s65
    %s66 = sphi 0, %s63
    %s67 = sphi 0, %s66
    %s83 = sphi 0, %s67
    %s89 = sphi 0, %s91
    %s92 = sphi 0, %s89
    %s93 = sphi 0, %s92
    %s109 = sphi 0, %s93
    %s115 = sphi 0, %s117
    %s118 = sphi 0, %s115
    %s119 = sphi 0, %s118
    %s135 = sphi 0, %s119
    %s143 = sphi 0, %s145
    %s146 = sphi 0, %s143
    %s147 = sphi 0, %s146
    %s163 = sphi 0, %s147
    %s169 = sphi 0, %s171
    %s172 = sphi 0, %s169
    %s173 = sphi 0, %s172
    %s189 = sphi 0, %s173
    %s195 = sphi 0, %s197
    %s198 = sphi 0, %s195
    %s199 = sphi 0, %s198
    %s215 = sphi 0, %s199
  $region4: #{bilm_forward.7} parent=0 // loop_header_branch
    %16 = sbr.rel (%p14) target = $region8
  $region5: #{bilm_forward.7} parent=0 // loop_body
    %s18 = ssub.s32 %s13, 1
    %s19 = ssub.s32 %s13, 2
    %s26 = sadd.s32 1, %s21
    %p27 = scmp.ge.s32.totalorder %s26, 1
    %s28 = scalar_select %p27, 0, %s26
    %s29 = sadd.s32 1, %s20
    %s30 = scalar_select %p27, %s29, %s20
    %p31 = scmp.ge.s32.totalorder %s30, 2
    %s32 = scalar_select %p31, 0, %s30
    %s33 = ssub.s32 %s20, %s32
    %s34 = ssub.s32 %s21, %s28
    %s35 = sor.u32 %s33, %s34
    %p36 = scmp.eq.s32.totalorder %s35, 0
    %s38 = sadd.s32 %s37, 1
    %s39 = scalar_select %p36, %s37, %s38
    %p42 = pneg %p36
    %p43 = scmp.eq.s32.totalorder %s13, 1
    %p44 = por %p42, %p43
    %p45 = scmp.ne.s32.totalorder %s37, %s40
    %p46 = scmp.eq.s32.totalorder %s13, 0
    %p47 = por %p45, %p46
    %p48 = scmp.ne.s32.totalorder %s37, %s40
    %p49 = scmp.eq.s32.totalorder %s18, 1
    %p50 = por %p48, %p49
    %p51 = scmp.ne.s32.totalorder %s40, %s41
    %p52 = scmp.eq.s32.totalorder %s18, 0
    %p53 = por %p51, %p52
    %p54 = scmp.ne.s32.totalorder %s40, %s41
    %p55 = scmp.eq.s32.totalorder %s19, 1
    %p56 = por %p54, %p55
    %p58 = scmp.ne.s32.totalorder %s41, %s57
    %p59 = scmp.eq.s32.totalorder %s19, 0
    %p60 = por %p58, %p59
    %s61 = ssub.s32 %s20, %s32
    %p62 = scmp.eq.s32.totalorder %s61, 0
    %s64 = sadd.s32 %s63, 1
    %s65 = scalar_select %p62, %s63, %s64
    %p68 = pneg %p62
    %p69 = scmp.eq.s32.totalorder %s13, 1
    %p70 = por %p68, %p69
    %p71 = scmp.ne.s32.totalorder %s63, %s66
    %p72 = scmp.eq.s32.totalorder %s13, 0
    %p73 = por %p71, %p72
    %p74 = scmp.ne.s32.totalorder %s63, %s66
    %p75 = scmp.eq.s32.totalorder %s18, 1
    %p76 = por %p74, %p75
    %p77 = scmp.ne.s32.totalorder %s66, %s67
    %p78 = scmp.eq.s32.totalorder %s18, 0
    %p79 = por %p77, %p78
    %p80 = scmp.ne.s32.totalorder %s66, %s67
    %p81 = scmp.eq.s32.totalorder %s19, 1
    %p82 = por %p80, %p81
    %p84 = scmp.ne.s32.totalorder %s67, %s83
    %p85 = scmp.eq.s32.totalorder %s19, 0
    %p86 = por %p84, %p85
    %s87 = ssub.s32 %s20, %s32
    %p88 = scmp.eq.s32.totalorder %s87, 0
    %s90 = sadd.s32 %s89, 1
    %s91 = scalar_select %p88, %s89, %s90
    %p94 = pneg %p88
    %p95 = scmp.eq.s32.totalorder %s13, 1
    %p96 = por %p94, %p95
    %p97 = scmp.ne.s32.totalorder %s89, %s92
    %p98 = scmp.eq.s32.totalorder %s13, 0
    %p99 = por %p97, %p98
    %p100 = scmp.ne.s32.totalorder %s89, %s92
    %p101 = scmp.eq.s32.totalorder %s18, 1
    %p102 = por %p100, %p101
    %p103 = scmp.ne.s32.totalorder %s92, %s93
    %p104 = scmp.eq.s32.totalorder %s18, 0
    %p105 = por %p103, %p104
    %p106 = scmp.ne.s32.totalorder %s92, %s93
    %p107 = scmp.eq.s32.totalorder %s19, 1
    %p108 = por %p106, %p107
    %p110 = scmp.ne.s32.totalorder %s93, %s109
    %p111 = scmp.eq.s32.totalorder %s19, 0
    %p112 = por %p110, %p111
    %s113 = ssub.s32 %s20, %s32
    %p114 = scmp.eq.s32.totalorder %s113, 0
    %s116 = sadd.s32 %s115, 1
    %s117 = scalar_select %p114, %s115, %s116
    %p120 = pneg %p114
    %p121 = scmp.eq.s32.totalorder %s13, 1
    %p122 = por %p120, %p121
    %p123 = scmp.ne.s32.totalorder %s115, %s118
    %p124 = scmp.eq.s32.totalorder %s13, 0
    %p125 = por %p123, %p124
    %p126 = scmp.ne.s32.totalorder %s115, %s118
    %p127 = scmp.eq.s32.totalorder %s18, 1
    %p128 = por %p126, %p127
    %p129 = scmp.ne.s32.totalorder %s118, %s119
    %p130 = scmp.eq.s32.totalorder %s18, 0
    %p131 = por %p129, %p130
    %p132 = scmp.ne.s32.totalorder %s118, %s119
    %p133 = scmp.eq.s32.totalorder %s19, 1
    %p134 = por %p132, %p133
    %p136 = scmp.ne.s32.totalorder %s119, %s135
    %p137 = scmp.eq.s32.totalorder %s19, 0
    %p138 = por %p136, %p137
    %s139 = ssub.s32 %s20, %s32
    %s140 = ssub.s32 %s21, %s28
    %s141 = sor.u32 %s139, %s140
    %p142 = scmp.eq.s32.totalorder %s141, 0
    %s144 = sadd.s32 %s143, 1
    %s145 = scalar_select %p142, %s143, %s144
    %p148 = pneg %p142
    %p149 = scmp.eq.s32.totalorder %s13, 1
    %p150 = por %p148, %p149
    %p151 = scmp.ne.s32.totalorder %s143, %s146
    %p152 = scmp.eq.s32.totalorder %s13, 0
    %p153 = por %p151, %p152
    %p154 = scmp.ne.s32.totalorder %s143, %s146
    %p155 = scmp.eq.s32.totalorder %s18, 1
    %p156 = por %p154, %p155
    %p157 = scmp.ne.s32.totalorder %s146, %s147
    %p158 = scmp.eq.s32.totalorder %s18, 0
    %p159 = por %p157, %p158
    %p160 = scmp.ne.s32.totalorder %s146, %s147
    %p161 = scmp.eq.s32.totalorder %s19, 1
    %p162 = por %p160, %p161
    %p164 = scmp.ne.s32.totalorder %s147, %s163
    %p165 = scmp.eq.s32.totalorder %s19, 0
    %p166 = por %p164, %p165
    %s167 = ssub.s32 %s20, %s32
    %p168 = scmp.eq.s32.totalorder %s167, 0
    %s170 = sadd.s32 %s169, 1
    %s171 = scalar_select %p168, %s169, %s170
    %p174 = pneg %p168
    %p175 = scmp.eq.s32.totalorder %s13, 1
    %p176 = por %p174, %p175
    %p177 = scmp.ne.s32.totalorder %s169, %s172
    %p178 = scmp.eq.s32.totalorder %s13, 0
    %p179 = por %p177, %p178
    %p180 = scmp.ne.s32.totalorder %s169, %s172
    %p181 = scmp.eq.s32.totalorder %s18, 1
    %p182 = por %p180, %p181
    %p183 = scmp.ne.s32.totalorder %s172, %s173
    %p184 = scmp.eq.s32.totalorder %s18, 0
    %p185 = por %p183, %p184
    %p186 = scmp.ne.s32.totalorder %s172, %s173
    %p187 = scmp.eq.s32.totalorder %s19, 1
    %p188 = por %p186, %p187
    %p190 = scmp.ne.s32.totalorder %s173, %s189
    %p191 = scmp.eq.s32.totalorder %s19, 0
    %p192 = por %p190, %p191
    %s193 = ssub.s32 %s20, %s32
    %p194 = scmp.eq.s32.totalorder %s193, 0
    %s196 = sadd.s32 %s195, 1
    %s197 = scalar_select %p194, %s195, %s196
    %p200 = pneg %p194
    %p201 = scmp.eq.s32.totalorder %s13, 1
    %p202 = por %p200, %p201
    %p203 = scmp.ne.s32.totalorder %s195, %s198
    %p204 = scmp.eq.s32.totalorder %s13, 0
    %p205 = por %p203, %p204
    %p206 = scmp.ne.s32.totalorder %s195, %s198
    %p207 = scmp.eq.s32.totalorder %s18, 1
    %p208 = por %p206, %p207
    %p209 = scmp.ne.s32.totalorder %s198, %s199
    %p210 = scmp.eq.s32.totalorder %s18, 0
    %p211 = por %p209, %p210
    %p212 = scmp.ne.s32.totalorder %s198, %s199
    %p213 = scmp.eq.s32.totalorder %s19, 1
    %p214 = por %p212, %p213
    %p216 = scmp.ne.s32.totalorder %s199, %s215
    %p217 = scmp.eq.s32.totalorder %s19, 0
    %p218 = por %p216, %p217
    %p219 = scmp.le.s32.totalorder 1, %s13
    %p220 = scmp.lt.s32.totalorder %s13, 3
    %p221 = pnand %p219, %p220
    %p222 = pneg %p221
    // Predicated region
    $region9: #{bilm_forward.7} parent=5 // pred_check
      _
    $region10: #{bilm_forward.7} parent=5 // pred_check_branch
      %224 = sbr.rel (%p221) target = $region12
    $region11: #{bilm_forward.7} parent=5 // pred_region
      %s225 = ssub.s32 %s13, 1
    $region12: #{bilm_forward.7} parent=5 // pred_fallthru
      _
    %p226 = scmp.lt.s32.totalorder %s13, 2
    // Predicated region
    $region13: #{bilm_forward.7} parent=5 // pred_check
      %p227 = pneg %p226
    $region14: #{bilm_forward.7} parent=5 // pred_check_branch
      %229 = sbr.rel (%p227) target = $region16
    $region15: #{bilm_forward.7} parent=5 // pred_region
      // Predicated region
      $region17: #{bilm_forward.7} parent=15 // pred_check
        %p230 = pneg %p47
      $region18: #{bilm_forward.7} parent=15 // pred_check_branch
        %232 = sbr.rel (%p230) target = $region20
      $region19: #{bilm_forward.7} parent=15 // pred_region
        %s233 = smul.u32 8, %s21
        %p234 = scmp.lt.s32.totalorder %s20, 1
        %s235 = scalar_select %p234, %s20, 1
        %p236 = scmp.lt.s32.totalorder %s233, 7
        %s237 = scalar_select %p236, %s233, 7
        %s238 = smul.addr %s237, 4
        %s239 = smul.addr %s235, 32
        %s240 = sadd.s32 %s238, %s239
        %s241 = smul.addr %s240, 2
        %s242 = scalar_lea.vmem %s0, %s241
        %s243 = smul.u32 8, %s21
      $region20: #{bilm_forward.7} parent=15 // pred_fallthru
        _
      // Predicated region
      $region21: #{bilm_forward.7} parent=15 // pred_check
        %p244 = pneg %p73
      $region22: #{bilm_forward.7} parent=15 // pred_check_branch
        %246 = sbr.rel (%p244) target = $region24
      $region23: #{bilm_forward.7} parent=15 // pred_region
        %p247 = scmp.lt.s32.totalorder %s20, 1
        %s248 = scalar_select %p247, %s20, 1
        %s249 = smul.addr %s248, 64
        %s250 = smul.addr %s249, 4
        %s251 = scalar_lea.vmem %s1, %s250
      $region24: #{bilm_forward.7} parent=15 // pred_fallthru
        _
      // Predicated region
      $region25: #{bilm_forward.7} parent=15 // pred_check
        %p252 = pneg %p99
      $region26: #{bilm_forward.7} parent=15 // pred_check_branch
        %254 = sbr.rel (%p252) target = $region28
      $region27: #{bilm_forward.7} parent=15 // pred_region
        %p255 = scmp.lt.s32.totalorder %s20, 1
        %s256 = scalar_select %p255, %s20, 1
        %s257 = smul.addr %s256, 2
        %s258 = scalar_lea.vmem %s2, %s257
      $region28: #{bilm_forward.7} parent=15 // pred_fallthru
        _
      // Predicated region
      $region29: #{bilm_forward.7} parent=15 // pred_check
        %p259 = pneg %p125
      $region30: #{bilm_forward.7} parent=15 // pred_check_branch
        %261 = sbr.rel (%p259) target = $region32
      $region31: #{bilm_forward.7} parent=15 // pred_region
        %p262 = scmp.lt.s32.totalorder %s20, 1
        %s263 = scalar_select %p262, %s20, 1
        %s264 = smul.addr %s263, 2
        %s265 = scalar_lea.vmem %s3, %s264
      $region32: #{bilm_forward.7} parent=15 // pred_fallthru
        _
    $region16: #{bilm_forward.7} parent=5 // pred_fallthru
      _
    %p266 = scmp.le.s32.totalorder 1, %s13
    %p267 = scmp.lt.s32.totalorder %s13, 3
    %p268 = pnand %p266, %p267
    %p269 = pneg %p268
    // Predicated region
    $region33: #{bilm_forward.7} parent=5 // pred_check
      _
    $region34: #{bilm_forward.7} parent=5 // pred_check_branch
      %271 = sbr.rel (%p268) target = $region36
    $region35: #{bilm_forward.7} parent=5 // pred_region
      %s272 = ssub.s32 %s13, 1
      %s273 = smul.u32 8, %s23
      %p274 = scmp.lt.s32.totalorder %s22, 1
      %s275 = scalar_select %p274, %s22, 1
      %p276 = scmp.lt.s32.totalorder %s273, 7
      %s277 = scalar_select %p276, %s273, 7
      %s278 = smul.addr %s277, 4
      %s279 = smul.addr %s275, 32
      %s280 = sadd.s32 %s278, %s279
      %s281 = smul.addr %s280, 2
      %s282 = scalar_lea.vmem %s0, %s281
      %p283 = pneg %p53
      %p284 = pneg %p50
      %p285 = scmp.lt.s32.totalorder %s22, 1
      %s286 = scalar_select %p285, %s22, 1
      %s287 = smul.addr %s286, 64
      %s288 = smul.addr %s287, 4
      %s289 = scalar_lea.vmem %s1, %s288
      %p290 = pneg %p79
      %p291 = pneg %p76
      %p292 = scmp.lt.s32.totalorder %s22, 1
      %s293 = scalar_select %p292, %s22, 1
      %s294 = smul.addr %s293, 2
      %s295 = scalar_lea.vmem %s2, %s294
      %p296 = pneg %p105
      %p297 = pneg %p102
      %p298 = scmp.lt.s32.totalorder %s22, 1
      %s299 = scalar_select %p298, %s22, 1
      %s300 = smul.addr %s299, 2
      %s301 = scalar_lea.vmem %s3, %s300
      %p302 = pneg %p131
      %p303 = pneg %p128
      %p304 = pneg %p159
      %p305 = pneg %p156
      %s306 = smul.u32 8, %s23
      %p307 = scmp.lt.s32.totalorder %s22, 1
      %s308 = scalar_select %p307, %s22, 1
      %p309 = scmp.lt.s32.totalorder %s306, 7
      %s310 = scalar_select %p309, %s306, 7
      %s311 = smul.addr %s308, 8
      %s312 = sadd.s32 %s310, %s311
      %s313 = smul.addr %s312, 2
      %s314 = scalar_lea.vmem %s4, %s313
      %p315 = pneg %p185
      %p316 = pneg %p182
      %p317 = scmp.lt.s32.totalorder %s22, 1
      %s318 = scalar_select %p317, %s22, 1
      %s319 = smul.addr %s318, 2
      %s320 = scalar_lea.vmem %s5, %s319
      %p321 = pneg %p211
      %p322 = pneg %p208
      %p323 = scmp.lt.s32.totalorder %s22, 1
      %s324 = scalar_select %p323, %s22, 1
      %s325 = smul.addr %s324, 2
      %s326 = scalar_lea.vmem %s6, %s325
      %s327 = smul.u32 8, %s23
      %p328 = scmp.lt.s32.totalorder %s22, 1
      %s329 = scalar_select %p328, %s22, 1
      %p330 = scmp.lt.s32.totalorder %s327, 7
      %s331 = scalar_select %p330, %s327, 7
      %s332 = smul.addr %s331, 4
      %s333 = smul.addr %s329, 32
      %s334 = sadd.s32 %s332, %s333
      %s335 = smul.addr %s334, 2
      %s336 = scalar_lea.vmem %s0, %s335
      %s337 = smul.u32 8, %s23
      %p338 = scmp.lt.s32.totalorder %s22, 1
      %s339 = scalar_select %p338, %s22, 1
      %s340 = smul.addr %s339, 64
      %s341 = smul.addr %s340, 4
      %s342 = scalar_lea.vmem %s1, %s341
      %p343 = scmp.lt.s32.totalorder %s22, 1
      %s344 = scalar_select %p343, %s22, 1
      %s345 = smul.addr %s344, 2
      %s346 = scalar_lea.vmem %s2, %s345
      %p347 = scmp.lt.s32.totalorder %s22, 1
      %s348 = scalar_select %p347, %s22, 1
      %s349 = smul.addr %s348, 2
      %s350 = scalar_lea.vmem %s3, %s349
      %s351 = smul.u32 8, %s23
      %p352 = scmp.lt.s32.totalorder %s22, 1
      %s353 = scalar_select %p352, %s22, 1
      %p354 = scmp.lt.s32.totalorder %s351, 7
      %s355 = scalar_select %p354, %s351, 7
      %s356 = smul.addr %s353, 8
      %s357 = sadd.s32 %s355, %s356
      %s358 = smul.addr %s357, 2
      %s359 = scalar_lea.vmem %s4, %s358
      %s360 = smul.u32 8, %s23
      %p361 = scmp.lt.s32.totalorder %s22, 1
      %s362 = scalar_select %p361, %s22, 1
      %s363 = smul.addr %s362, 2
      %s364 = scalar_lea.vmem %s5, %s363
      %p365 = scmp.lt.s32.totalorder %s22, 1
      %s366 = scalar_select %p365, %s22, 1
      %s367 = smul.addr %s366, 2
      %s368 = scalar_lea.vmem %s6, %s367
      %p370 = scmp.eq.s32.totalorder %s23, 0
      // Predicated region
      $region37: #{bilm_forward.7} parent=35 // pred_check
        %p371 = pneg %p370
      $region38: #{bilm_forward.7} parent=35 // pred_check_branch
        %373 = sbr.rel (%p371) target = $region40
      $region39: #{bilm_forward.7} parent=35 // pred_region
        %v374 = vld [vmem:[%s346] sm:$0x3]
        %375 = vst [vmem:[#allocation2] sm:$0x3] %v374
        %v376 = vld [vmem:[%s350] sm:$0x3]
        %377 = vst [vmem:[#allocation3] sm:$0x3] %v376
      $region40: #{bilm_forward.7} parent=35 // pred_fallthru
        _
      %v378 = vld [vmem:[%s342] sm:$0xff]
      %v379 = vld [vmem:[%s342 + $0x8] sm:$0xff]
      %v380 = vld [vmem:[%s342 + $0x10] sm:$0xff]
      %v381 = vld [vmem:[%s342 + $0x18] sm:$0xff]
      %v382 = vld [vmem:[%s342 + $0x20] sm:$0xff]
      %v383 = vld [vmem:[%s342 + $0x28] sm:$0xff]
      %v384 = vld [vmem:[%s342 + $0x30] sm:$0xff]
      %v385 = vld [vmem:[%s342 + $0x38] sm:$0xff]
      %v386 = vld [vmem:[%s342 + $0x40] sm:$0xff]
      %v387 = vld [vmem:[%s342 + $0x48] sm:$0xff]
      %v388 = vld [vmem:[%s342 + $0x50] sm:$0xff]
      %v389 = vld [vmem:[%s342 + $0x58] sm:$0xff]
      %v390 = vld [vmem:[%s342 + $0x60] sm:$0xff]
      %v391 = vld [vmem:[%s342 + $0x68] sm:$0xff]
      %v392 = vld [vmem:[%s342 + $0x70] sm:$0xff]
      %v393 = vld [vmem:[%s342 + $0x78] sm:$0xff]
      %v394 = vld [vmem:[%s342 + $0x80] sm:$0xff]
      %v395 = vld [vmem:[%s342 + $0x88] sm:$0xff]
      %v396 = vld [vmem:[%s342 + $0x90] sm:$0xff]
      %v397 = vld [vmem:[%s342 + $0x98] sm:$0xff]
      %v398 = vld [vmem:[%s342 + $0xa0] sm:$0xff]
      %v399 = vld [vmem:[%s342 + $0xa8] sm:$0xff]
      %v400 = vld [vmem:[%s342 + $0xb0] sm:$0xff]
      %v401 = vld [vmem:[%s342 + $0xb8] sm:$0xff]
      %v402 = vld [vmem:[%s342 + $0xc0] sm:$0xff]
      %v403 = vld [vmem:[%s342 + $0xc8] sm:$0xff]
      %v404 = vld [vmem:[%s342 + $0xd0] sm:$0xff]
      %v405 = vld [vmem:[%s342 + $0xd8] sm:$0xff]
      %v406 = vld [vmem:[%s342 + $0xe0] sm:$0xff]
      %v407 = vld [vmem:[%s342 + $0xe8] sm:$0xff]
      %v408 = vld [vmem:[%s342 + $0xf0] sm:$0xff]
      %v409 = vld [vmem:[%s342 + $0xf8] sm:$0xff]
      %v410 = vld [vmem:[%s336] sm:$0xff]
      %v411 = vld [vmem:[#allocation2] sm:$0x3]
      %v412 = vpack.c.bf16 %v411, %v411
      %v445 = vunpack.c.l.b16 %v378
      %v446 = vunpack.c.h.b16 %v378
      %v447 = vunpack.c.l.b16 %v379
      %v448 = vunpack.c.h.b16 %v379
      %v449 = vunpack.c.l.b16 %v380
      %v450 = vunpack.c.h.b16 %v380
      %v451 = vunpack.c.l.b16 %v381
      %v452 = vunpack.c.h.b16 %v381
      %v453 = vunpack.c.l.b16 %v382
      %v454 = vunpack.c.h.b16 %v382
      %v455 = vunpack.c.l.b16 %v383
      %v456 = vunpack.c.h.b16 %v383
      %v457 = vunpack.c.l.b16 %v384
      %v458 = vunpack.c.h.b16 %v384
      %v459 = vunpack.c.l.b16 %v385
      %v460 = vunpack.c.h.b16 %v385
      %v461 = vunpack.c.l.b16 %v386
      %v462 = vunpack.c.h.b16 %v386
      %v463 = vunpack.c.l.b16 %v387
      %v464 = vunpack.c.h.b16 %v387
      %v465 = vunpack.c.l.b16 %v388
      %v466 = vunpack.c.h.b16 %v388
      %v467 = vunpack.c.l.b16 %v389
      %v468 = vunpack.c.h.b16 %v389
      %v469 = vunpack.c.l.b16 %v390
      %v470 = vunpack.c.h.b16 %v390
      %v471 = vunpack.c.l.b16 %v391
      %v472 = vunpack.c.h.b16 %v391
      %v473 = vunpack.c.l.b16 %v392
      %v474 = vunpack.c.h.b16 %v392
      %v475 = vunpack.c.l.b16 %v393
      %v476 = vunpack.c.h.b16 %v393
      %v477 = vunpack.c.l.b16 %v394
      %v478 = vunpack.c.h.b16 %v394
      %v479 = vunpack.c.l.b16 %v395
      %v480 = vunpack.c.h.b16 %v395
      %v481 = vunpack.c.l.b16 %v396
      %v482 = vunpack.c.h.b16 %v396
      %v483 = vunpack.c.l.b16 %v397
      %v484 = vunpack.c.h.b16 %v397
      %v485 = vunpack.c.l.b16 %v398
      %v486 = vunpack.c.h.b16 %v398
      %v487 = vunpack.c.l.b16 %v399
      %v488 = vunpack.c.h.b16 %v399
      %v489 = vunpack.c.l.b16 %v400
      %v490 = vunpack.c.h.b16 %v400
      %v491 = vunpack.c.l.b16 %v401
      %v492 = vunpack.c.h.b16 %v401
      %v493 = vunpack.c.l.b16 %v402
      %v494 = vunpack.c.h.b16 %v402
      %v495 = vunpack.c.l.b16 %v403
      %v496 = vunpack.c.h.b16 %v403
      %v497 = vunpack.c.l.b16 %v404
      %v498 = vunpack.c.h.b16 %v404
      %v499 = vunpack.c.l.b16 %v405
      %v500 = vunpack.c.h.b16 %v405
      %v501 = vunpack.c.l.b16 %v406
      %v502 = vunpack.c.h.b16 %v406
      %v503 = vunpack.c.l.b16 %v407
      %v504 = vunpack.c.h.b16 %v407
      %v505 = vunpack.c.l.b16 %v408
      %v506 = vunpack.c.h.b16 %v408
      %v507 = vunpack.c.l.b16 %v409
      %v508 = vunpack.c.h.b16 %v409
      %v509 = vpack.c.b16 %v449, %v445
      %v510 = vpack.c.b16 %v450, %v446
      %v511 = vpack.c.b16 %v451, %v447
      %v512 = vpack.c.b16 %v452, %v448
      %v513 = vpack.c.b16 %v457, %v453
      %v514 = vpack.c.b16 %v458, %v454
      %v515 = vpack.c.b16 %v459, %v455
      %v516 = vpack.c.b16 %v460, %v456
      %v517 = vpack.c.b16 %v465, %v461
      %v518 = vpack.c.b16 %v466, %v462
      %v519 = vpack.c.b16 %v467, %v463
      %v520 = vpack.c.b16 %v468, %v464
      %v521 = vpack.c.b16 %v473, %v469
      %v522 = vpack.c.b16 %v474, %v470
      %v523 = vpack.c.b16 %v475, %v471
      %v524 = vpack.c.b16 %v476, %v472
      %v525 = vpack.c.b16 %v481, %v477
      %v526 = vpack.c.b16 %v482, %v478
      %v527 = vpack.c.b16 %v483, %v479
      %v528 = vpack.c.b16 %v484, %v480
      %v529 = vpack.c.b16 %v489, %v485
      %v530 = vpack.c.b16 %v490, %v486
      %v531 = vpack.c.b16 %v491, %v487
      %v532 = vpack.c.b16 %v492, %v488
      %v533 = vpack.c.b16 %v497, %v493
      %v534 = vpack.c.b16 %v498, %v494
      %v535 = vpack.c.b16 %v499, %v495
      %v536 = vpack.c.b16 %v500, %v496
      %v537 = vpack.c.b16 %v505, %v501
      %v538 = vpack.c.b16 %v506, %v502
      %v539 = vpack.c.b16 %v507, %v503
      %v540 = vpack.c.b16 %v508, %v504
      %573 = vmatprep.subr.bf16.mxu0 %v510
      %574 = vmatpush1.bf16.msra.mxu0 %v509
      %575 = vmatprep.subr.bf16.mxu0 %v514
      %576 = vmatpush1.bf16.msra.mxu0 %v513
      %577 = vmatprep.subr.bf16.mxu0 %v518
      %578 = vmatpush1.bf16.msra.mxu0 %v517
      %579 = vmatprep.subr.bf16.mxu0 %v522
      %580 = vmatpush1.bf16.msra.mxu0 %v521
      %581 = vmatprep.subr.bf16.mxu0 %v526
      %582 = vmatpush1.bf16.msra.mxu0 %v525
      %583 = vmatprep.subr.bf16.mxu0 %v530
      %584 = vmatpush1.bf16.msra.mxu0 %v529
      %585 = vmatprep.subr.bf16.mxu0 %v534
      %586 = vmatpush1.bf16.msra.mxu0 %v533
      %587 = vmatprep.subr.bf16.mxu0 %v538
      %588 = vmatpush1.bf16.msra.mxu0 %v537
      %589 = vmatprep.subr.bf16.mxu0 0
      %590 = vmatpush1.bf16.msra.mxu0 0
      %591 = vmatprep.subr.bf16.mxu0 0
      %592 = vmatpush1.bf16.msra.mxu0 0
      %593 = vmatprep.subr.bf16.mxu0 0
      %594 = vmatpush1.bf16.msra.mxu0 0
      %595 = vmatprep.subr.bf16.mxu0 0
      %596 = vmatpush1.bf16.msra.mxu0 0
      %597 = vmatprep.subr.bf16.mxu0 0
      %598 = vmatpush1.bf16.msra.mxu0 0
      %599 = vmatprep.subr.bf16.mxu0 0
      %600 = vmatpush1.bf16.msra.mxu0 0
      %601 = vmatprep.subr.bf16.mxu0 0
      %602 = vmatpush1.bf16.msra.mxu0 0
      %603 = vmatprep.subr.bf16.mxu0 0
      %604 = vmatpush1.bf16.msra.mxu0 0
      %605 = vmatprep.mubr.bf16.mxu0 0
      %606 = vmatmul.mubr.bf16.gmra.mrb[0].mxu0 %v412
      %v607 = vpop.f32.mrb[0].mxu0
      %v608 = vadd.f32 0.0, %v607
      %v609 = vpop.f32.mrb[0].mxu0
      %v610 = vadd.f32 0.0, %v609
      %v611 = vpop.f32.mrb[0].mxu0
      %v612 = vpop.f32.mrb[0].mxu0
      %613 = vdwg.mxu0
      %614 = vmatprep.subr.bf16.mxu0 %v512
      %615 = vmatpush1.bf16.msra.mxu0 %v511
      %616 = vmatprep.subr.bf16.mxu0 %v516
      %617 = vmatpush1.bf16.msra.mxu0 %v515
      %618 = vmatprep.subr.bf16.mxu0 %v520
      %619 = vmatpush1.bf16.msra.mxu0 %v519
      %620 = vmatprep.subr.bf16.mxu0 %v524
      %621 = vmatpush1.bf16.msra.mxu0 %v523
      %622 = vmatprep.subr.bf16.mxu0 %v528
      %623 = vmatpush1.bf16.msra.mxu0 %v527
      %624 = vmatprep.subr.bf16.mxu0 %v532
      %625 = vmatpush1.bf16.msra.mxu0 %v531
      %626 = vmatprep.subr.bf16.mxu0 %v536
      %627 = vmatpush1.bf16.msra.mxu0 %v535
      %628 = vmatprep.subr.bf16.mxu0 %v540
      %629 = vmatpush1.bf16.msra.mxu0 %v539
      %630 = vmatprep.subr.bf16.mxu0 0
      %631 = vmatpush1.bf16.msra.mxu0 0
      %632 = vmatprep.subr.bf16.mxu0 0
      %633 = vmatpush1.bf16.msra.mxu0 0
      %634 = vmatprep.subr.bf16.mxu0 0
      %635 = vmatpush1.bf16.msra.mxu0 0
      %636 = vmatprep.subr.bf16.mxu0 0
      %637 = vmatpush1.bf16.msra.mxu0 0
      %638 = vmatprep.subr.bf16.mxu0 0
      %639 = vmatpush1.bf16.msra.mxu0 0
      %640 = vmatprep.subr.bf16.mxu0 0
      %641 = vmatpush1.bf16.msra.mxu0 0
      %642 = vmatprep.subr.bf16.mxu0 0
      %643 = vmatpush1.bf16.msra.mxu0 0
      %644 = vmatprep.subr.bf16.mxu0 0
      %645 = vmatpush1.bf16.msra.mxu0 0
      %646 = vmatprep.mubr.bf16.mxu0 0
      %647 = vmatmul.mubr.bf16.gmra.mrb[0].mxu0 %v412
      %v648 = vpop.f32.mrb[0].mxu0
      %v649 = vadd.f32 0.0, %v648
      %v650 = vpop.f32.mrb[0].mxu0
      %v651 = vadd.f32 0.0, %v650
      %v652 = vpop.f32.mrb[0].mxu0
      %v653 = vpop.f32.mrb[0].mxu0
      %654 = vdwg.mxu0
      %v659 = vcombine.low %v608, %v610
      %v660 = vcombine.low %v649, %v651
      %v662 = vunpack.c.l.s4 1983009808
      %v663 = vunpack.c.0.s8 %v662
      %v664 = vlaneseq
      %v665 = vshrl.u32 %v664, 7
      %v666 = vsub.s32 %v663, %v665
      %v667 = vrot.slane %v659, %v666
      %v669 = vunpack.c.l.s4 1983009808
      %v670 = vunpack.c.0.s8 %v669
      %v671 = vlaneseq
      %v672 = vshrl.u32 %v671, 7
      %v673 = vsub.s32 %v670, %v672
      %v674 = vrot.slane %v660, %v673
      %v675 = vcombine.low %v667, %v674
      %v677 = vadd.f32 %v410, %v675
      %v678 = vxor.u32 %v677, 2147483648
      %v679 = vmul.f32 %v678, 1.442695
      %v680 = vpow.pop %v679
      %v681 = vadd.f32 %v680, 1.0
      %v682 = vrcp.pop %v681
      %v683 = vmul.f32 1.0, %v682
      %v685 = vrot.slane %v677, 2
      %v687 = vxor.u32 %v685, 2147483648
      %v688 = vmul.f32 %v687, 1.442695
      %v689 = vpow.pop %v688
      %v690 = vadd.f32 %v689, 1.0
      %v691 = vrcp.pop %v690
      %v692 = vmul.f32 1.0, %v691
      %v693 = vrot.slane %v677, 4
      %v695 = vtanh.pop %v693
      %v696 = vrot.slane %v677, 6
      %v698 = vxor.u32 %v696, 2147483648
      %v699 = vmul.f32 %v698, 1.442695
      %v700 = vpow.pop %v699
      %v701 = vadd.f32 %v700, 1.0
      %v702 = vrcp.pop %v701
      %v703 = vmul.f32 1.0, %v702
      %v704 = vld [vmem:[#allocation3] sm:$0x3]
      %v705 = vmul.f32 %v692, %v704
      %v706 = vmul.f32 %v683, %v695
      %v707 = vadd.f32 %v705, %v706
      %v708 = vtanh.pop %v707
      %v709 = vmul.f32 %v703, %v708
      %710 = vst [vmem:[#allocation3] sm:$0x3] %v707
      %711 = vst [vmem:[#allocation2] sm:$0x3] %v709
      %712 = vst [vmem:[%s359] sm:$0x3] %v709
      %s713 = scalar_lea.vmem %s336, 8
      %v714 = vld [vmem:[%s713] sm:$0xff]
      %v715 = vld [vmem:[#allocation2] sm:$0x3]
      %v716 = vpack.c.bf16 %v715, %v715
      %717 = vmatprep.subr.bf16.mxu0 %v510
      %718 = vmatpush1.bf16.msra.mxu0 %v509
      %719 = vmatprep.subr.bf16.mxu0 %v514
      %720 = vmatpush1.bf16.msra.mxu0 %v513
      %721 = vmatprep.subr.bf16.mxu0 %v518
      %722 = vmatpush1.bf16.msra.mxu0 %v517
      %723 = vmatprep.subr.bf16.mxu0 %v522
      %724 = vmatpush1.bf16.msra.mxu0 %v521
      %725 = vmatprep.subr.bf16.mxu0 %v526
      %726 = vmatpush1.bf16.msra.mxu0 %v525
      %727 = vmatprep.subr.bf16.mxu0 %v530
      %728 = vmatpush1.bf16.msra.mxu0 %v529
      %729 = vmatprep.subr.bf16.mxu0 %v534
      %730 = vmatpush1.bf16.msra.mxu0 %v533
      %731 = vmatprep.subr.bf16.mxu0 %v538
      %732 = vmatpush1.bf16.msra.mxu0 %v537
      %733 = vmatprep.subr.bf16.mxu0 0
      %734 = vmatpush1.bf16.msra.mxu0 0
      %735 = vmatprep.subr.bf16.mxu0 0
      %736 = vmatpush1.bf16.msra.mxu0 0
      %737 = vmatprep.subr.bf16.mxu0 0
      %738 = vmatpush1.bf16.msra.mxu0 0
      %739 = vmatprep.subr.bf16.mxu0 0
      %740 = vmatpush1.bf16.msra.mxu0 0
      %741 = vmatprep.subr.bf16.mxu0 0
      %742 = vmatpush1.bf16.msra.mxu0 0
      %743 = vmatprep.subr.bf16.mxu0 0
      %744 = vmatpush1.bf16.msra.mxu0 0
      %745 = vmatprep.subr.bf16.mxu0 0
      %746 = vmatpush1.bf16.msra.mxu0 0
      %747 = vmatprep.subr.bf16.mxu0 0
      %748 = vmatpush1.bf16.msra.mxu0 0
      %749 = vmatprep.mubr.bf16.mxu0 0
      %750 = vmatmul.mubr.bf16.gmra.mrb[0].mxu0 %v716
      %v751 = vpop.f32.mrb[0].mxu0
      %v752 = vadd.f32 0.0, %v751
      %v753 = vpop.f32.mrb[0].mxu0
      %v754 = vadd.f32 0.0, %v753
      %v755 = vpop.f32.mrb[0].mxu0
      %v756 = vpop.f32.mrb[0].mxu0
      %757 = vdwg.mxu0
      %758 = vmatprep.subr.bf16.mxu0 %v512
      %759 = vmatpush1.bf16.msra.mxu0 %v511
      %760 = vmatprep.subr.bf16.mxu0 %v516
      %761 = vmatpush1.bf16.msra.mxu0 %v515
      %762 = vmatprep.subr.bf16.mxu0 %v520
      %763 = vmatpush1.bf16.msra.mxu0 %v519
      %764 = vmatprep.subr.bf16.mxu0 %v524
      %765 = vmatpush1.bf16.msra.mxu0 %v523
      %766 = vmatprep.subr.bf16.mxu0 %v528
      %767 = vmatpush1.bf16.msra.mxu0 %v527
      %768 = vmatprep.subr.bf16.mxu0 %v532
      %769 = vmatpush1.bf16.msra.mxu0 %v531
      %770 = vmatprep.subr.bf16.mxu0 %v536
      %771 = vmatpush1.bf16.msra.mxu0 %v535
      %772 = vmatprep.subr.bf16.mxu0 %v540
      %773 = vmatpush1.bf16.msra.mxu0 %v539
      %774 = vmatprep.subr.bf16.mxu0 0
      %775 = vmatpush1.bf16.msra.mxu0 0
      %776 = vmatprep.subr.bf16.mxu0 0
      %777 = vmatpush1.bf16.msra.mxu0 0
      %778 = vmatprep.subr.bf16.mxu0 0
      %779 = vmatpush1.bf16.msra.mxu0 0
      %780 = vmatprep.subr.bf16.mxu0 0
      %781 = vmatpush1.bf16.msra.mxu0 0
      %782 = vmatprep.subr.bf16.mxu0 0
      %783 = vmatpush1.bf16.msra.mxu0 0
      %784 = vmatprep.subr.bf16.mxu0 0
      %785 = vmatpush1.bf16.msra.mxu0 0
      %786 = vmatprep.subr.bf16.mxu0 0
      %787 = vmatpush1.bf16.msra.mxu0 0
      %788 = vmatprep.subr.bf16.mxu0 0
      %789 = vmatpush1.bf16.msra.mxu0 0
      %790 = vmatprep.mubr.bf16.mxu0 0
      %791 = vmatmul.mubr.bf16.gmra.mrb[0].mxu0 %v716
      %v792 = vpop.f32.mrb[0].mxu0
      %v793 = vadd.f32 0.0, %v792
      %v794 = vpop.f32.mrb[0].mxu0
      %v795 = vadd.f32 0.0, %v794
      %v796 = vpop.f32.mrb[0].mxu0
      %v797 = vpop.f32.mrb[0].mxu0
      %798 = vdwg.mxu0
      %v803 = vcombine.low %v752, %v754
      %v804 = vcombine.low %v793, %v795
      %v806 = vunpack.c.l.s4 1983009808
      %v807 = vunpack.c.0.s8 %v806
      %v808 = vlaneseq
      %v809 = vshrl.u32 %v808, 7
      %v810 = vsub.s32 %v807, %v809
      %v811 = vrot.slane %v803, %v810
      %v813 = vunpack.c.l.s4 1983009808
      %v814 = vunpack.c.0.s8 %v813
      %v815 = vlaneseq
      %v816 = vshrl.u32 %v815, 7
      %v817 = vsub.s32 %v814, %v816
      %v818 = vrot.slane %v804, %v817
      %v819 = vcombine.low %v811, %v818
      %v821 = vadd.f32 %v714, %v819
      %v822 = vxor.u32 %v821, 2147483648
      %v823 = vmul.f32 %v822, 1.442695
      %v824 = vpow.pop %v823
      %v825 = vadd.f32 %v824, 1.0
      %v826 = vrcp.pop %v825
      %v827 = vmul.f32 1.0, %v826
      %v829 = vrot.slane %v821, 2
      %v831 = vxor.u32 %v829, 2147483648
      %v832 = vmul.f32 %v831, 1.442695
      %v833 = vpow.pop %v832
      %v834 = vadd.f32 %v833, 1.0
      %v835 = vrcp.pop %v834
      %v836 = vmul.f32 1.0, %v835
      %v837 = vrot.slane %v821, 4
      %v839 = vtanh.pop %v837
      %v840 = vrot.slane %v821, 6
      %v842 = vxor.u32 %v840, 2147483648
      %v843 = vmul.f32 %v842, 1.442695
      %v844 = vpow.pop %v843
      %v845 = vadd.f32 %v844, 1.0
      %v846 = vrcp.pop %v845
      %v847 = vmul.f32 1.0, %v846
      %v848 = vld [vmem:[#allocation3] sm:$0x3]
      %v849 = vmul.f32 %v836, %v848
      %v850 = vmul.f32 %v827, %v839
      %v851 = vadd.f32 %v849, %v850
      %v852 = vtanh.pop %v851
      %v853 = vmul.f32 %v847, %v852
      %854 = vst [vmem:[#allocation3] sm:$0x3] %v851
      %855 = vst [vmem:[#allocation2] sm:$0x3] %v853
      %s856 = scalar_lea.vmem %s359, 2
      %857 = vst [vmem:[%s856] sm:$0x3] %v853
      %s858 = scalar_lea.vmem %s336, 16
      %v859 = vld [vmem:[%s858] sm:$0xff]
      %v860 = vld [vmem:[#allocation2] sm:$0x3]
      %v861 = vpack.c.bf16 %v860, %v860
      %862 = vmatprep.subr.bf16.mxu0 %v510
      %863 = vmatpush1.bf16.msra.mxu0 %v509
      %864 = vmatprep.subr.bf16.mxu0 %v514
      %865 = vmatpush1.bf16.msra.mxu0 %v513
      %866 = vmatprep.subr.bf16.mxu0 %v518
      %867 = vmatpush1.bf16.msra.mxu0 %v517
      %868 = vmatprep.subr.bf16.mxu0 %v522
      %869 = vmatpush1.bf16.msra.mxu0 %v521
      %870 = vmatprep.subr.bf16.mxu0 %v526
      %871 = vmatpush1.bf16.msra.mxu0 %v525
      %872 = vmatprep.subr.bf16.mxu0 %v530
      %873 = vmatpush1.bf16.msra.mxu0 %v529
      %874 = vmatprep.subr.bf16.mxu0 %v534
      %875 = vmatpush1.bf16.msra.mxu0 %v533
      %876 = vmatprep.subr.bf16.mxu0 %v538
      %877 = vmatpush1.bf16.msra.mxu0 %v537
      %878 = vmatprep.subr.bf16.mxu0 0
      %879 = vmatpush1.bf16.msra.mxu0 0
      %880 = vmatprep.subr.bf16.mxu0 0
      %881 = vmatpush1.bf16.msra.mxu0 0
      %882 = vmatprep.subr.bf16.mxu0 0
      %883 = vmatpush1.bf16.msra.mxu0 0
      %884 = vmatprep.subr.bf16.mxu0 0
      %885 = vmatpush1.bf16.msra.mxu0 0
      %886 = vmatprep.subr.bf16.mxu0 0
      %887 = vmatpush1.bf16.msra.mxu0 0
      %888 = vmatprep.subr.bf16.mxu0 0
      %889 = vmatpush1.bf16.msra.mxu0 0
      %890 = vmatprep.subr.bf16.mxu0 0
      %891 = vmatpush1.bf16.msra.mxu0 0
      %892 = vmatprep.subr.bf16.mxu0 0
      %893 = vmatpush1.bf16.msra.mxu0 0
      %894 = vmatprep.mubr.bf16.mxu0 0
      %895 = vmatmul.mubr.bf16.gmra.mrb[0].mxu0 %v861
      %v896 = vpop.f32.mrb[0].mxu0
      %v897 = vadd.f32 0.0, %v896
      %v898 = vpop.f32.mrb[0].mxu0
      %v899 = vadd.f32 0.0, %v898
      %v900 = vpop.f32.mrb[0].mxu0
      %v901 = vpop.f32.mrb[0].mxu0
      %902 = vdwg.mxu0
      %903 = vmatprep.subr.bf16.mxu0 %v512
      %904 = vmatpush1.bf16.msra.mxu0 %v511
      %905 = vmatprep.subr.bf16.mxu0 %v516
      %906 = vmatpush1.bf16.msra.mxu0 %v515
      %907 = vmatprep.subr.bf16.mxu0 %v520
      %908 = vmatpush1.bf16.msra.mxu0 %v519
      %909 = vmatprep.subr.bf16.mxu0 %v524
      %910 = vmatpush1.bf16.msra.mxu0 %v523
      %911 = vmatprep.subr.bf16.mxu0 %v528
      %912 = vmatpush1.bf16.msra.mxu0 %v527
      %913 = vmatprep.subr.bf16.mxu0 %v532
      %914 = vmatpush1.bf16.msra.mxu0 %v531
      %915 = vmatprep.subr.bf16.mxu0 %v536
      %916 = vmatpush1.bf16.msra.mxu0 %v535
      %917 = vmatprep.subr.bf16.mxu0 %v540
      %918 = vmatpush1.bf16.msra.mxu0 %v539
      %919 = vmatprep.subr.bf16.mxu0 0
      %920 = vmatpush1.bf16.msra.mxu0 0
      %921 = vmatprep.subr.bf16.mxu0 0
      %922 = vmatpush1.bf16.msra.mxu0 0
      %923 = vmatprep.subr.bf16.mxu0 0
      %924 = vmatpush1.bf16.msra.mxu0 0
      %925 = vmatprep.subr.bf16.mxu0 0
      %926 = vmatpush1.bf16.msra.mxu0 0
      %927 = vmatprep.subr.bf16.mxu0 0
      %928 = vmatpush1.bf16.msra.mxu0 0
      %929 = vmatprep.subr.bf16.mxu0 0
      %930 = vmatpush1.bf16.msra.mxu0 0
      %931 = vmatprep.subr.bf16.mxu0 0
      %932 = vmatpush1.bf16.msra.mxu0 0
      %933 = vmatprep.subr.bf16.mxu0 0
      %934 = vmatpush1.bf16.msra.mxu0 0
      %935 = vmatprep.mubr.bf16.mxu0 0
      %936 = vmatmul.mubr.bf16.gmra.mrb[0].mxu0 %v861
      %v937 = vpop.f32.mrb[0].mxu0
      %v938 = vadd.f32 0.0, %v937
      %v939 = vpop.f32.mrb[0].mxu0
      %v940 = vadd.f32 0.0, %v939
      %v941 = vpop.f32.mrb[0].mxu0
      %v942 = vpop.f32.mrb[0].mxu0
      %943 = vdwg.mxu0
      %v948 = vcombine.low %v897, %v899
      %v949 = vcombine.low %v938, %v940
      %v951 = vunpack.c.l.s4 1983009808
      %v952 = vunpack.c.0.s8 %v951
      %v953 = vlaneseq
      %v954 = vshrl.u32 %v953, 7
      %v955 = vsub.s32 %v952, %v954
      %v956 = vrot.slane %v948, %v955
      %v958 = vunpack.c.l.s4 1983009808
      %v959 = vunpack.c.0.s8 %v958
      %v960 = vlaneseq
      %v961 = vshrl.u32 %v960, 7
      %v962 = vsub.s32 %v959, %v961
      %v963 = vrot.slane %v949, %v962
      %v964 = vcombine.low %v956, %v963
      %v966 = vadd.f32 %v859, %v964
      %v967 = vxor.u32 %v966, 2147483648
      %v968 = vmul.f32 %v967, 1.442695
      %v969 = vpow.pop %v968
      %v970 = vadd.f32 %v969, 1.0
      %v971 = vrcp.pop %v970
      %v972 = vmul.f32 1.0, %v971
      %v974 = vrot.slane %v966, 2
      %v976 = vxor.u32 %v974, 2147483648
      %v977 = vmul.f32 %v976, 1.442695
      %v978 = vpow.pop %v977
      %v979 = vadd.f32 %v978, 1.0
      %v980 = vrcp.pop %v979
      %v981 = vmul.f32 1.0, %v980
      %v982 = vrot.slane %v966, 4
      %v984 = vtanh.pop %v982
      %v985 = vrot.slane %v966, 6
      %v987 = vxor.u32 %v985, 2147483648
      %v988 = vmul.f32 %v987, 1.442695
      %v989 = vpow.pop %v988
      %v990 = vadd.f32 %v989, 1.0
      %v991 = vrcp.pop %v990
      %v992 = vmul.f32 1.0, %v991
      %v993 = vld [vmem:[#allocation3] sm:$0x3]
      %v994 = vmul.f32 %v981, %v993
      %v995 = vmul.f32 %v972, %v984
      %v996 = vadd.f32 %v994, %v995
      %v997 = vtanh.pop %v996
      %v998 = vmul.f32 %v992, %v997
      %999 = vst [vmem:[#allocation3] sm:$0x3] %v996
      %1000 = vst [vmem:[#allocation2] sm:$0x3] %v998
      %s1001 = scalar_lea.vmem %s359, 4
      %1002 = vst [vmem:[%s1001] sm:$0x3] %v998
      %s1003 = scalar_lea.vmem %s336, 24
      %v1004 = vld [vmem:[%s1003] sm:$0xff]
      %v1005 = vld [vmem:[#allocation2] sm:$0x3]
      %v1006 = vpack.c.bf16 %v1005, %v1005
      %1007 = vmatprep.subr.bf16.mxu0 %v510
      %1008 = vmatpush1.bf16.msra.mxu0 %v509
      %1009 = vmatprep.subr.bf16.mxu0 %v514
      %1010 = vmatpush1.bf16.msra.mxu0 %v513
      %1011 = vmatprep.subr.bf16.mxu0 %v518
      %1012 = vmatpush1.bf16.msra.mxu0 %v517
      %1013 = vmatprep.subr.bf16.mxu0 %v522
      %1014 = vmatpush1.bf16.msra.mxu0 %v521
      %1015 = vmatprep.subr.bf16.mxu0 %v526
      %1016 = vmatpush1.bf16.msra.mxu0 %v525
      %1017 = vmatprep.subr.bf16.mxu0 %v530
      %1018 = vmatpush1.bf16.msra.mxu0 %v529
      %1019 = vmatprep.subr.bf16.mxu0 %v534
      %1020 = vmatpush1.bf16.msra.mxu0 %v533
      %1021 = vmatprep.subr.bf16.mxu0 %v538
      %1022 = vmatpush1.bf16.msra.mxu0 %v537
      %1023 = vmatprep.subr.bf16.mxu0 0
      %1024 = vmatpush1.bf16.msra.mxu0 0
      %1025 = vmatprep.subr.bf16.mxu0 0
      %1026 = vmatpush1.bf16.msra.mxu0 0
      %1027 = vmatprep.subr.bf16.mxu0 0
      %1028 = vmatpush1.bf16.msra.mxu0 0
      %1029 = vmatprep.subr.bf16.mxu0 0
      %1030 = vmatpush1.bf16.msra.mxu0 0
      %1031 = vmatprep.subr.bf16.mxu0 0
      %1032 = vmatpush1.bf16.msra.mxu0 0
      %1033 = vmatprep.subr.bf16.mxu0 0
      %1034 = vmatpush1.bf16.msra.mxu0 0
      %1035 = vmatprep.subr.bf16.mxu0 0
      %1036 = vmatpush1.bf16.msra.mxu0 0
      %1037 = vmatprep.subr.bf16.mxu0 0
      %1038 = vmatpush1.bf16.msra.mxu0 0
      %1039 = vmatprep.mubr.bf16.mxu0 0
      %1040 = vmatmul.mubr.bf16.gmra.mrb[0].mxu0 %v1006
      %v1041 = vpop.f32.mrb[0].mxu0
      %v1042 = vadd.f32 0.0, %v1041
      %v1043 = vpop.f32.mrb[0].mxu0
      %v1044 = vadd.f32 0.0, %v1043
      %v1045 = vpop.f32.mrb[0].mxu0
      %v1046 = vpop.f32.mrb[0].mxu0
      %1047 = vdwg.mxu0
      %1048 = vmatprep.subr.bf16.mxu0 %v512
      %1049 = vmatpush1.bf16.msra.mxu0 %v511
      %1050 = vmatprep.subr.bf16.mxu0 %v516
      %1051 = vmatpush1.bf16.msra.mxu0 %v515
      %1052 = vmatprep.subr.bf16.mxu0 %v520
      %1053 = vmatpush1.bf16.msra.mxu0 %v519
      %1054 = vmatprep.subr.bf16.mxu0 %v524
      %1055 = vmatpush1.bf16.msra.mxu0 %v523
      %1056 = vmatprep.subr.bf16.mxu0 %v528
      %1057 = vmatpush1.bf16.msra.mxu0 %v527
      %1058 = vmatprep.subr.bf16.mxu0 %v532
      %1059 = vmatpush1.bf16.msra.mxu0 %v531
      %1060 = vmatprep.subr.bf16.mxu0 %v536
      %1061 = vmatpush1.bf16.msra.mxu0 %v535
      %1062 = vmatprep.subr.bf16.mxu0 %v540
      %1063 = vmatpush1.bf16.msra.mxu0 %v539
      %1064 = vmatprep.subr.bf16.mxu0 0
      %1065 = vmatpush1.bf16.msra.mxu0 0
      %1066 = vmatprep.subr.bf16.mxu0 0
      %1067 = vmatpush1.bf16.msra.mxu0 0
      %1068 = vmatprep.subr.bf16.mxu0 0
      %1069 = vmatpush1.bf16.msra.mxu0 0
      %1070 = vmatprep.subr.bf16.mxu0 0
      %1071 = vmatpush1.bf16.msra.mxu0 0
      %1072 = vmatprep.subr.bf16.mxu0 0
      %1073 = vmatpush1.bf16.msra.mxu0 0
      %1074 = vmatprep.subr.bf16.mxu0 0
      %1075 = vmatpush1.bf16.msra.mxu0 0
      %1076 = vmatprep.subr.bf16.mxu0 0
      %1077 = vmatpush1.bf16.msra.mxu0 0
      %1078 = vmatprep.subr.bf16.mxu0 0
      %1079 = vmatpush1.bf16.msra.mxu0 0
      %1080 = vmatprep.mubr.bf16.mxu0 0
      %1081 = vmatmul.mubr.bf16.gmra.mrb[0].mxu0 %v1006
      %v1082 = vpop.f32.mrb[0].mxu0
      %v1083 = vadd.f32 0.0, %v1082
      %v1084 = vpop.f32.mrb[0].mxu0
      %v1085 = vadd.f32 0.0, %v1084
      %v1086 = vpop.f32.mrb[0].mxu0
      %v1087 = vpop.f32.mrb[0].mxu0
      %1088 = vdwg.mxu0
      %v1093 = vcombine.low %v1042, %v1044
      %v1094 = vcombine.low %v1083, %v1085
      %v1096 = vunpack.c.l.s4 1983009808
      %v1097 = vunpack.c.0.s8 %v1096
      %v1098 = vlaneseq
      %v1099 = vshrl.u32 %v1098, 7
      %v1100 = vsub.s32 %v1097, %v1099
      %v1101 = vrot.slane %v1093, %v1100
      %v1103 = vunpack.c.l.s4 1983009808
      %v1104 = vunpack.c.0.s8 %v1103
      %v1105 = vlaneseq
      %v1106 = vshrl.u32 %v1105, 7
      %v1107 = vsub.s32 %v1104, %v1106
      %v1108 = vrot.slane %v1094, %v1107
      %v1109 = vcombine.low %v1101, %v1108
      %v1111 = vadd.f32 %v1004, %v1109
      %v1112 = vxor.u32 %v1111, 2147483648
      %v1113 = vmul.f32 %v1112, 1.442695
      %v1114 = vpow.pop %v1113
      %v1115 = vadd.f32 %v1114, 1.0
      %v1116 = vrcp.pop %v1115
      %v1117 = vmul.f32 1.0, %v1116
      %v1119 = vrot.slane %v1111, 2
      %v1121 = vxor.u32 %v1119, 2147483648
      %v1122 = vmul.f32 %v1121, 1.442695
      %v1123 = vpow.pop %v1122
      %v1124 = vadd.f32 %v1123, 1.0
      %v1125 = vrcp.pop %v1124
      %v1126 = vmul.f32 1.0, %v1125
      %v1127 = vrot.slane %v1111, 4
      %v1129 = vtanh.pop %v1127
      %v1130 = vrot.slane %v1111, 6
      %v1132 = vxor.u32 %v1130, 2147483648
      %v1133 = vmul.f32 %v1132, 1.442695
      %v1134 = vpow.pop %v1133
      %v1135 = vadd.f32 %v1134, 1.0
      %v1136 = vrcp.pop %v1135
      %v1137 = vmul.f32 1.0, %v1136
      %v1138 = vld [vmem:[#allocation3] sm:$0x3]
      %v1139 = vmul.f32 %v1126, %v1138
      %v1140 = vmul.f32 %v1117, %v1129
      %v1141 = vadd.f32 %v1139, %v1140
      %v1142 = vtanh.pop %v1141
      %v1143 = vmul.f32 %v1137, %v1142
      %1144 = vst [vmem:[#allocation3] sm:$0x3] %v1141
      %1145 = vst [vmem:[#allocation2] sm:$0x3] %v1143
      %s1146 = scalar_lea.vmem %s359, 6
      %1147 = vst [vmem:[%s1146] sm:$0x3] %v1143
      %s1148 = scalar_lea.vmem %s336, 32
      %v1149 = vld [vmem:[%s1148] sm:$0xff]
      %v1150 = vld [vmem:[#allocation2] sm:$0x3]
      %v1151 = vpack.c.bf16 %v1150, %v1150
      %1152 = vmatprep.subr.bf16.mxu0 %v510
      %1153 = vmatpush1.bf16.msra.mxu0 %v509
      %1154 = vmatprep.subr.bf16.mxu0 %v514
      %1155 = vmatpush1.bf16.msra.mxu0 %v513
      %1156 = vmatprep.subr.bf16.mxu0 %v518
      %1157 = vmatpush1.bf16.msra.mxu0 %v517
      %1158 = vmatprep.subr.bf16.mxu0 %v522
      %1159 = vmatpush1.bf16.msra.mxu0 %v521
      %1160 = vmatprep.subr.bf16.mxu0 %v526
      %1161 = vmatpush1.bf16.msra.mxu0 %v525
      %1162 = vmatprep.subr.bf16.mxu0 %v530
      %1163 = vmatpush1.bf16.msra.mxu0 %v529
      %1164 = vmatprep.subr.bf16.mxu0 %v534
      %1165 = vmatpush1.bf16.msra.mxu0 %v533
      %1166 = vmatprep.subr.bf16.mxu0 %v538
      %1167 = vmatpush1.bf16.msra.mxu0 %v537
      %1168 = vmatprep.subr.bf16.mxu0 0
      %1169 = vmatpush1.bf16.msra.mxu0 0
      %1170 = vmatprep.subr.bf16.mxu0 0
      %1171 = vmatpush1.bf16.msra.mxu0 0
      %1172 = vmatprep.subr.bf16.mxu0 0
      %1173 = vmatpush1.bf16.msra.mxu0 0
      %1174 = vmatprep.subr.bf16.mxu0 0
      %1175 = vmatpush1.bf16.msra.mxu0 0
      %1176 = vmatprep.subr.bf16.mxu0 0
      %1177 = vmatpush1.bf16.msra.mxu0 0
      %1178 = vmatprep.subr.bf16.mxu0 0
      %1179 = vmatpush1.bf16.msra.mxu0 0
      %1180 = vmatprep.subr.bf16.mxu0 0
      %1181 = vmatpush1.bf16.msra.mxu0 0
      %1182 = vmatprep.subr.bf16.mxu0 0
      %1183 = vmatpush1.bf16.msra.mxu0 0
      %1184 = vmatprep.mubr.bf16.mxu0 0
      %1185 = vmatmul.mubr.bf16.gmra.mrb[0].mxu0 %v1151
      %v1186 = vpop.f32.mrb[0].mxu0
      %v1187 = vadd.f32 0.0, %v1186
      %v1188 = vpop.f32.mrb[0].mxu0
      %v1189 = vadd.f32 0.0, %v1188
      %v1190 = vpop.f32.mrb[0].mxu0
      %v1191 = vpop.f32.mrb[0].mxu0
      %1192 = vdwg.mxu0
      %1193 = vmatprep.subr.bf16.mxu0 %v512
      %1194 = vmatpush1.bf16.msra.mxu0 %v511
      %1195 = vmatprep.subr.bf16.mxu0 %v516
      %1196 = vmatpush1.bf16.msra.mxu0 %v515
      %1197 = vmatprep.subr.bf16.mxu0 %v520
      %1198 = vmatpush1.bf16.msra.mxu0 %v519
      %1199 = vmatprep.subr.bf16.mxu0 %v524
      %1200 = vmatpush1.bf16.msra.mxu0 %v523
      %1201 = vmatprep.subr.bf16.mxu0 %v528
      %1202 = vmatpush1.bf16.msra.mxu0 %v527
      %1203 = vmatprep.subr.bf16.mxu0 %v532
      %1204 = vmatpush1.bf16.msra.mxu0 %v531
      %1205 = vmatprep.subr.bf16.mxu0 %v536
      %1206 = vmatpush1.bf16.msra.mxu0 %v535
      %1207 = vmatprep.subr.bf16.mxu0 %v540
      %1208 = vmatpush1.bf16.msra.mxu0 %v539
      %1209 = vmatprep.subr.bf16.mxu0 0
      %1210 = vmatpush1.bf16.msra.mxu0 0
      %1211 = vmatprep.subr.bf16.mxu0 0
      %1212 = vmatpush1.bf16.msra.mxu0 0
      %1213 = vmatprep.subr.bf16.mxu0 0
      %1214 = vmatpush1.bf16.msra.mxu0 0
      %1215 = vmatprep.subr.bf16.mxu0 0
      %1216 = vmatpush1.bf16.msra.mxu0 0
      %1217 = vmatprep.subr.bf16.mxu0 0
      %1218 = vmatpush1.bf16.msra.mxu0 0
      %1219 = vmatprep.subr.bf16.mxu0 0
      %1220 = vmatpush1.bf16.msra.mxu0 0
      %1221 = vmatprep.subr.bf16.mxu0 0
      %1222 = vmatpush1.bf16.msra.mxu0 0
      %1223 = vmatprep.subr.bf16.mxu0 0
      %1224 = vmatpush1.bf16.msra.mxu0 0
      %1225 = vmatprep.mubr.bf16.mxu0 0
      %1226 = vmatmul.mubr.bf16.gmra.mrb[0].mxu0 %v1151
      %v1227 = vpop.f32.mrb[0].mxu0
      %v1228 = vadd.f32 0.0, %v1227
      %v1229 = vpop.f32.mrb[0].mxu0
      %v1230 = vadd.f32 0.0, %v1229
      %v1231 = vpop.f32.mrb[0].mxu0
      %v1232 = vpop.f32.mrb[0].mxu0
      %1233 = vdwg.mxu0
      %v1238 = vcombine.low %v1187, %v1189
      %v1239 = vcombine.low %v1228, %v1230
      %v1241 = vunpack.c.l.s4 1983009808
      %v1242 = vunpack.c.0.s8 %v1241
      %v1243 = vlaneseq
      %v1244 = vshrl.u32 %v1243, 7
      %v1245 = vsub.s32 %v1242, %v1244
      %v1246 = vrot.slane %v1238, %v1245
      %v1248 = vunpack.c.l.s4 1983009808
      %v1249 = vunpack.c.0.s8 %v1248
      %v1250 = vlaneseq
      %v1251 = vshrl.u32 %v1250, 7
      %v1252 = vsub.s32 %v1249, %v1251
      %v1253 = vrot.slane %v1239, %v1252
      %v1254 = vcombine.low %v1246, %v1253
      %v1256 = vadd.f32 %v1149, %v1254
      %v1257 = vxor.u32 %v1256, 2147483648
      %v1258 = vmul.f32 %v1257, 1.442695
      %v1259 = vpow.pop %v1258
      %v1260 = vadd.f32 %v1259, 1.0
      %v1261 = vrcp.pop %v1260
      %v1262 = vmul.f32 1.0, %v1261
      %v1264 = vrot.slane %v1256, 2
      %v1266 = vxor.u32 %v1264, 2147483648
      %v1267 = vmul.f32 %v1266, 1.442695
      %v1268 = vpow.pop %v1267
      %v1269 = vadd.f32 %v1268, 1.0
      %v1270 = vrcp.pop %v1269
      %v1271 = vmul.f32 1.0, %v1270
      %v1272 = vrot.slane %v1256, 4
      %v1274 = vtanh.pop %v1272
      %v1275 = vrot.slane %v1256, 6
      %v1277 = vxor.u32 %v1275, 2147483648
      %v1278 = vmul.f32 %v1277, 1.442695
      %v1279 = vpow.pop %v1278
      %v1280 = vadd.f32 %v1279, 1.0
      %v1281 = vrcp.pop %v1280
      %v1282 = vmul.f32 1.0, %v1281
      %v1283 = vld [vmem:[#allocation3] sm:$0x3]
      %v1284 = vmul.f32 %v1271, %v1283
      %v1285 = vmul.f32 %v1262, %v1274
      %v1286 = vadd.f32 %v1284, %v1285
      %v1287 = vtanh.pop %v1286
      %v1288 = vmul.f32 %v1282, %v1287
      %1289 = vst [vmem:[#allocation3] sm:$0x3] %v1286
      %1290 = vst [vmem:[#allocation2] sm:$0x3] %v1288
      %s1291 = scalar_lea.vmem %s359, 8
      %1292 = vst [vmem:[%s1291] sm:$0x3] %v1288
      %s1293 = scalar_lea.vmem %s336, 40
      %v1294 = vld [vmem:[%s1293] sm:$0xff]
      %v1295 = vld [vmem:[#allocation2] sm:$0x3]
      %v1296 = vpack.c.bf16 %v1295, %v1295
      %1297 = vmatprep.subr.bf16.mxu0 %v510
      %1298 = vmatpush1.bf16.msra.mxu0 %v509
      %1299 = vmatprep.subr.bf16.mxu0 %v514
      %1300 = vmatpush1.bf16.msra.mxu0 %v513
      %1301 = vmatprep.subr.bf16.mxu0 %v518
      %1302 = vmatpush1.bf16.msra.mxu0 %v517
      %1303 = vmatprep.subr.bf16.mxu0 %v522
      %1304 = vmatpush1.bf16.msra.mxu0 %v521
      %1305 = vmatprep.subr.bf16.mxu0 %v526
      %1306 = vmatpush1.bf16.msra.mxu0 %v525
      %1307 = vmatprep.subr.bf16.mxu0 %v530
      %1308 = vmatpush1.bf16.msra.mxu0 %v529
      %1309 = vmatprep.subr.bf16.mxu0 %v534
      %1310 = vmatpush1.bf16.msra.mxu0 %v533
      %1311 = vmatprep.subr.bf16.mxu0 %v538
      %1312 = vmatpush1.bf16.msra.mxu0 %v537
      %1313 = vmatprep.subr.bf16.mxu0 0
      %1314 = vmatpush1.bf16.msra.mxu0 0
      %1315 = vmatprep.subr.bf16.mxu0 0
      %1316 = vmatpush1.bf16.msra.mxu0 0
      %1317 = vmatprep.subr.bf16.mxu0 0
      %1318 = vmatpush1.bf16.msra.mxu0 0
      %1319 = vmatprep.subr.bf16.mxu0 0
      %1320 = vmatpush1.bf16.msra.mxu0 0
      %1321 = vmatprep.subr.bf16.mxu0 0
      %1322 = vmatpush1.bf16.msra.mxu0 0
      %1323 = vmatprep.subr.bf16.mxu0 0
      %1324 = vmatpush1.bf16.msra.mxu0 0
      %1325 = vmatprep.subr.bf16.mxu0 0
      %1326 = vmatpush1.bf16.msra.mxu0 0
      %1327 = vmatprep.subr.bf16.mxu0 0
      %1328 = vmatpush1.bf16.msra.mxu0 0
      %1329 = vmatprep.mubr.bf16.mxu0 0
      %1330 = vmatmul.mubr.bf16.gmra.mrb[0].mxu0 %v1296
      %v1331 = vpop.f32.mrb[0].mxu0
      %v1332 = vadd.f32 0.0, %v1331
      %v1333 = vpop.f32.mrb[0].mxu0
      %v1334 = vadd.f32 0.0, %v1333
      %v1335 = vpop.f32.mrb[0].mxu0
      %v1336 = vpop.f32.mrb[0].mxu0
      %1337 = vdwg.mxu0
      %1338 = vmatprep.subr.bf16.mxu0 %v512
      %1339 = vmatpush1.bf16.msra.mxu0 %v511
      %1340 = vmatprep.subr.bf16.mxu0 %v516
      %1341 = vmatpush1.bf16.msra.mxu0 %v515
      %1342 = vmatprep.subr.bf16.mxu0 %v520
      %1343 = vmatpush1.bf16.msra.mxu0 %v519
      %1344 = vmatprep.subr.bf16.mxu0 %v524
      %1345 = vmatpush1.bf16.msra.mxu0 %v523
      %1346 = vmatprep.subr.bf16.mxu0 %v528
      %1347 = vmatpush1.bf16.msra.mxu0 %v527
      %1348 = vmatprep.subr.bf16.mxu0 %v532
      %1349 = vmatpush1.bf16.msra.mxu0 %v531
      %1350 = vmatprep.subr.bf16.mxu0 %v536
      %1351 = vmatpush1.bf16.msra.mxu0 %v535
      %1352 = vmatprep.subr.bf16.mxu0 %v540
      %1353 = vmatpush1.bf16.msra.mxu0 %v539
      %1354 = vmatprep.subr.bf16.mxu0 0
      %1355 = vmatpush1.bf16.msra.mxu0 0
      %1356 = vmatprep.subr.bf16.mxu0 0
      %1357 = vmatpush1.bf16.msra.mxu0 0
      %1358 = vmatprep.subr.bf16.mxu0 0
      %1359 = vmatpush1.bf16.msra.mxu0 0
      %1360 = vmatprep.subr.bf16.mxu0 0
      %1361 = vmatpush1.bf16.msra.mxu0 0
      %1362 = vmatprep.subr.bf16.mxu0 0
      %1363 = vmatpush1.bf16.msra.mxu0 0
      %1364 = vmatprep.subr.bf16.mxu0 0
      %1365 = vmatpush1.bf16.msra.mxu0 0
      %1366 = vmatprep.subr.bf16.mxu0 0
      %1367 = vmatpush1.bf16.msra.mxu0 0
      %1368 = vmatprep.subr.bf16.mxu0 0
      %1369 = vmatpush1.bf16.msra.mxu0 0
      %1370 = vmatprep.mubr.bf16.mxu0 0
      %1371 = vmatmul.mubr.bf16.gmra.mrb[0].mxu0 %v1296
      %v1372 = vpop.f32.mrb[0].mxu0
      %v1373 = vadd.f32 0.0, %v1372
      %v1374 = vpop.f32.mrb[0].mxu0
      %v1375 = vadd.f32 0.0, %v1374
      %v1376 = vpop.f32.mrb[0].mxu0
      %v1377 = vpop.f32.mrb[0].mxu0
      %1378 = vdwg.mxu0
      %v1383 = vcombine.low %v1332, %v1334
      %v1384 = vcombine.low %v1373, %v1375
      %v1386 = vunpack.c.l.s4 1983009808
      %v1387 = vunpack.c.0.s8 %v1386
      %v1388 = vlaneseq
      %v1389 = vshrl.u32 %v1388, 7
      %v1390 = vsub.s32 %v1387, %v1389
      %v1391 = vrot.slane %v1383, %v1390
      %v1393 = vunpack.c.l.s4 1983009808
      %v1394 = vunpack.c.0.s8 %v1393
      %v1395 = vlaneseq
      %v1396 = vshrl.u32 %v1395, 7
      %v1397 = vsub.s32 %v1394, %v1396
      %v1398 = vrot.slane %v1384, %v1397
      %v1399 = vcombine.low %v1391, %v1398
      %v1401 = vadd.f32 %v1294, %v1399
      %v1402 = vxor.u32 %v1401, 2147483648
      %v1403 = vmul.f32 %v1402, 1.442695
      %v1404 = vpow.pop %v1403
      %v1405 = vadd.f32 %v1404, 1.0
      %v1406 = vrcp.pop %v1405
      %v1407 = vmul.f32 1.0, %v1406
      %v1409 = vrot.slane %v1401, 2
      %v1411 = vxor.u32 %v1409, 2147483648
      %v1412 = vmul.f32 %v1411, 1.442695
      %v1413 = vpow.pop %v1412
      %v1414 = vadd.f32 %v1413, 1.0
      %v1415 = vrcp.pop %v1414
      %v1416 = vmul.f32 1.0, %v1415
      %v1417 = vrot.slane %v1401, 4
      %v1419 = vtanh.pop %v1417
      %v1420 = vrot.slane %v1401, 6
      %v1422 = vxor.u32 %v1420, 2147483648
      %v1423 = vmul.f32 %v1422, 1.442695
      %v1424 = vpow.pop %v1423
      %v1425 = vadd.f32 %v1424, 1.0
      %v1426 = vrcp.pop %v1425
      %v1427 = vmul.f32 1.0, %v1426
      %v1428 = vld [vmem:[#allocation3] sm:$0x3]
      %v1429 = vmul.f32 %v1416, %v1428
      %v1430 = vmul.f32 %v1407, %v1419
      %v1431 = vadd.f32 %v1429, %v1430
      %v1432 = vtanh.pop %v1431
      %v1433 = vmul.f32 %v1427, %v1432
      %1434 = vst [vmem:[#allocation3] sm:$0x3] %v1431
      %1435 = vst [vmem:[#allocation2] sm:$0x3] %v1433
      %s1436 = scalar_lea.vmem %s359, 10
      %1437 = vst [vmem:[%s1436] sm:$0x3] %v1433
      %s1438 = scalar_lea.vmem %s336, 48
      %v1439 = vld [vmem:[%s1438] sm:$0xff]
      %v1440 = vld [vmem:[#allocation2] sm:$0x3]
      %v1441 = vpack.c.bf16 %v1440, %v1440
      %1442 = vmatprep.subr.bf16.mxu0 %v510
      %1443 = vmatpush1.bf16.msra.mxu0 %v509
      %1444 = vmatprep.subr.bf16.mxu0 %v514
      %1445 = vmatpush1.bf16.msra.mxu0 %v513
      %1446 = vmatprep.subr.bf16.mxu0 %v518
      %1447 = vmatpush1.bf16.msra.mxu0 %v517
      %1448 = vmatprep.subr.bf16.mxu0 %v522
      %1449 = vmatpush1.bf16.msra.mxu0 %v521
      %1450 = vmatprep.subr.bf16.mxu0 %v526
      %1451 = vmatpush1.bf16.msra.mxu0 %v525
      %1452 = vmatprep.subr.bf16.mxu0 %v530
      %1453 = vmatpush1.bf16.msra.mxu0 %v529
      %1454 = vmatprep.subr.bf16.mxu0 %v534
      %1455 = vmatpush1.bf16.msra.mxu0 %v533
      %1456 = vmatprep.subr.bf16.mxu0 %v538
      %1457 = vmatpush1.bf16.msra.mxu0 %v537
      %1458 = vmatprep.subr.bf16.mxu0 0
      %1459 = vmatpush1.bf16.msra.mxu0 0
      %1460 = vmatprep.subr.bf16.mxu0 0
      %1461 = vmatpush1.bf16.msra.mxu0 0
      %1462 = vmatprep.subr.bf16.mxu0 0
      %1463 = vmatpush1.bf16.msra.mxu0 0
      %1464 = vmatprep.subr.bf16.mxu0 0
      %1465 = vmatpush1.bf16.msra.mxu0 0
      %1466 = vmatprep.subr.bf16.mxu0 0
      %1467 = vmatpush1.bf16.msra.mxu0 0
      %1468 = vmatprep.subr.bf16.mxu0 0
      %1469 = vmatpush1.bf16.msra.mxu0 0
      %1470 = vmatprep.subr.bf16.mxu0 0
      %1471 = vmatpush1.bf16.msra.mxu0 0
      %1472 = vmatprep.subr.bf16.mxu0 0
      %1473 = vmatpush1.bf16.msra.mxu0 0
      %1474 = vmatprep.mubr.bf16.mxu0 0
      %1475 = vmatmul.mubr.bf16.gmra.mrb[0].mxu0 %v1441
      %v1476 = vpop.f32.mrb[0].mxu0
      %v1477 = vadd.f32 0.0, %v1476
      %v1478 = vpop.f32.mrb[0].mxu0
      %v1479 = vadd.f32 0.0, %v1478
      %v1480 = vpop.f32.mrb[0].mxu0
      %v1481 = vpop.f32.mrb[0].mxu0
      %1482 = vdwg.mxu0
      %1483 = vmatprep.subr.bf16.mxu0 %v512
      %1484 = vmatpush1.bf16.msra.mxu0 %v511
      %1485 = vmatprep.subr.bf16.mxu0 %v516
      %1486 = vmatpush1.bf16.msra.mxu0 %v515
      %1487 = vmatprep.subr.bf16.mxu0 %v520
      %1488 = vmatpush1.bf16.msra.mxu0 %v519
      %1489 = vmatprep.subr.bf16.mxu0 %v524
      %1490 = vmatpush1.bf16.msra.mxu0 %v523
      %1491 = vmatprep.subr.bf16.mxu0 %v528
      %1492 = vmatpush1.bf16.msra.mxu0 %v527
      %1493 = vmatprep.subr.bf16.mxu0 %v532
      %1494 = vmatpush1.bf16.msra.mxu0 %v531
      %1495 = vmatprep.subr.bf16.mxu0 %v536
      %1496 = vmatpush1.bf16.msra.mxu0 %v535
      %1497 = vmatprep.subr.bf16.mxu0 %v540
      %1498 = vmatpush1.bf16.msra.mxu0 %v539
      %1499 = vmatprep.subr.bf16.mxu0 0
      %1500 = vmatpush1.bf16.msra.mxu0 0
      %1501 = vmatprep.subr.bf16.mxu0 0
      %1502 = vmatpush1.bf16.msra.mxu0 0
      %1503 = vmatprep.subr.bf16.mxu0 0
      %1504 = vmatpush1.bf16.msra.mxu0 0
      %1505 = vmatprep.subr.bf16.mxu0 0
      %1506 = vmatpush1.bf16.msra.mxu0 0
      %1507 = vmatprep.subr.bf16.mxu0 0
      %1508 = vmatpush1.bf16.msra.mxu0 0
      %1509 = vmatprep.subr.bf16.mxu0 0
      %1510 = vmatpush1.bf16.msra.mxu0 0
      %1511 = vmatprep.subr.bf16.mxu0 0
      %1512 = vmatpush1.bf16.msra.mxu0 0
      %1513 = vmatprep.subr.bf16.mxu0 0
      %1514 = vmatpush1.bf16.msra.mxu0 0
      %1515 = vmatprep.mubr.bf16.mxu0 0
      %1516 = vmatmul.mubr.bf16.gmra.mrb[0].mxu0 %v1441
      %v1517 = vpop.f32.mrb[0].mxu0
      %v1518 = vadd.f32 0.0, %v1517
      %v1519 = vpop.f32.mrb[0].mxu0
      %v1520 = vadd.f32 0.0, %v1519
      %v1521 = vpop.f32.mrb[0].mxu0
      %v1522 = vpop.f32.mrb[0].mxu0
      %1523 = vdwg.mxu0
      %v1528 = vcombine.low %v1477, %v1479
      %v1529 = vcombine.low %v1518, %v1520
      %v1531 = vunpack.c.l.s4 1983009808
      %v1532 = vunpack.c.0.s8 %v1531
      %v1533 = vlaneseq
      %v1534 = vshrl.u32 %v1533, 7
      %v1535 = vsub.s32 %v1532, %v1534
      %v1536 = vrot.slane %v1528, %v1535
      %v1538 = vunpack.c.l.s4 1983009808
      %v1539 = vunpack.c.0.s8 %v1538
      %v1540 = vlaneseq
      %v1541 = vshrl.u32 %v1540, 7
      %v1542 = vsub.s32 %v1539, %v1541
      %v1543 = vrot.slane %v1529, %v1542
      %v1544 = vcombine.low %v1536, %v1543
      %v1546 = vadd.f32 %v1439, %v1544
      %v1547 = vxor.u32 %v1546, 2147483648
      %v1548 = vmul.f32 %v1547, 1.442695
      %v1549 = vpow.pop %v1548
      %v1550 = vadd.f32 %v1549, 1.0
      %v1551 = vrcp.pop %v1550
      %v1552 = vmul.f32 1.0, %v1551
      %v1554 = vrot.slane %v1546, 2
      %v1556 = vxor.u32 %v1554, 2147483648
      %v1557 = vmul.f32 %v1556, 1.442695
      %v1558 = vpow.pop %v1557
      %v1559 = vadd.f32 %v1558, 1.0
      %v1560 = vrcp.pop %v1559
      %v1561 = vmul.f32 1.0, %v1560
      %v1562 = vrot.slane %v1546, 4
      %v1564 = vtanh.pop %v1562
      %v1565 = vrot.slane %v1546, 6
      %v1567 = vxor.u32 %v1565, 2147483648
      %v1568 = vmul.f32 %v1567, 1.442695
      %v1569 = vpow.pop %v1568
      %v1570 = vadd.f32 %v1569, 1.0
      %v1571 = vrcp.pop %v1570
      %v1572 = vmul.f32 1.0, %v1571
      %v1573 = vld [vmem:[#allocation3] sm:$0x3]
      %v1574 = vmul.f32 %v1561, %v1573
      %v1575 = vmul.f32 %v1552, %v1564
      %v1576 = vadd.f32 %v1574, %v1575
      %v1577 = vtanh.pop %v1576
      %v1578 = vmul.f32 %v1572, %v1577
      %1579 = vst [vmem:[#allocation3] sm:$0x3] %v1576
      %1580 = vst [vmem:[#allocation2] sm:$0x3] %v1578
      %s1581 = scalar_lea.vmem %s359, 12
      %1582 = vst [vmem:[%s1581] sm:$0x3] %v1578
      %s1583 = scalar_lea.vmem %s336, 56
      %v1584 = vld [vmem:[%s1583] sm:$0xff]
      %v1585 = vld [vmem:[#allocation2] sm:$0x3]
      %v1586 = vpack.c.bf16 %v1585, %v1585
      %1587 = vmatprep.subr.bf16.mxu0 %v510
      %1588 = vmatpush1.bf16.msra.mxu0 %v509
      %1589 = vmatprep.subr.bf16.mxu0 %v514
      %1590 = vmatpush1.bf16.msra.mxu0 %v513
      %1591 = vmatprep.subr.bf16.mxu0 %v518
      %1592 = vmatpush1.bf16.msra.mxu0 %v517
      %1593 = vmatprep.subr.bf16.mxu0 %v522
      %1594 = vmatpush1.bf16.msra.mxu0 %v521
      %1595 = vmatprep.subr.bf16.mxu0 %v526
      %1596 = vmatpush1.bf16.msra.mxu0 %v525
      %1597 = vmatprep.subr.bf16.mxu0 %v530
      %1598 = vmatpush1.bf16.msra.mxu0 %v529
      %1599 = vmatprep.subr.bf16.mxu0 %v534
      %1600 = vmatpush1.bf16.msra.mxu0 %v533
      %1601 = vmatprep.subr.bf16.mxu0 %v538
      %1602 = vmatpush1.bf16.msra.mxu0 %v537
      %1603 = vmatprep.subr.bf16.mxu0 0
      %1604 = vmatpush1.bf16.msra.mxu0 0
      %1605 = vmatprep.subr.bf16.mxu0 0
      %1606 = vmatpush1.bf16.msra.mxu0 0
      %1607 = vmatprep.subr.bf16.mxu0 0
      %1608 = vmatpush1.bf16.msra.mxu0 0
      %1609 = vmatprep.subr.bf16.mxu0 0
      %1610 = vmatpush1.bf16.msra.mxu0 0
      %1611 = vmatprep.subr.bf16.mxu0 0
      %1612 = vmatpush1.bf16.msra.mxu0 0
      %1613 = vmatprep.subr.bf16.mxu0 0
      %1614 = vmatpush1.bf16.msra.mxu0 0
      %1615 = vmatprep.subr.bf16.mxu0 0
      %1616 = vmatpush1.bf16.msra.mxu0 0
      %1617 = vmatprep.subr.bf16.mxu0 0
      %1618 = vmatpush1.bf16.msra.mxu0 0
      %1619 = vmatprep.mubr.bf16.mxu0 0
      %1620 = vmatmul.mubr.bf16.gmra.mrb[0].mxu0 %v1586
      %v1621 = vpop.f32.mrb[0].mxu0
      %v1622 = vadd.f32 0.0, %v1621
      %v1623 = vpop.f32.mrb[0].mxu0
      %v1624 = vadd.f32 0.0, %v1623
      %v1625 = vpop.f32.mrb[0].mxu0
      %v1626 = vpop.f32.mrb[0].mxu0
      %1627 = vdwg.mxu0
      %1628 = vmatprep.subr.bf16.mxu0 %v512
      %1629 = vmatpush1.bf16.msra.mxu0 %v511
      %1630 = vmatprep.subr.bf16.mxu0 %v516
      %1631 = vmatpush1.bf16.msra.mxu0 %v515
      %1632 = vmatprep.subr.bf16.mxu0 %v520
      %1633 = vmatpush1.bf16.msra.mxu0 %v519
      %1634 = vmatprep.subr.bf16.mxu0 %v524
      %1635 = vmatpush1.bf16.msra.mxu0 %v523
      %1636 = vmatprep.subr.bf16.mxu0 %v528
      %1637 = vmatpush1.bf16.msra.mxu0 %v527
      %1638 = vmatprep.subr.bf16.mxu0 %v532
      %1639 = vmatpush1.bf16.msra.mxu0 %v531
      %1640 = vmatprep.subr.bf16.mxu0 %v536
      %1641 = vmatpush1.bf16.msra.mxu0 %v535
      %1642 = vmatprep.subr.bf16.mxu0 %v540
      %1643 = vmatpush1.bf16.msra.mxu0 %v539
      %1644 = vmatprep.subr.bf16.mxu0 0
      %1645 = vmatpush1.bf16.msra.mxu0 0
      %1646 = vmatprep.subr.bf16.mxu0 0
      %1647 = vmatpush1.bf16.msra.mxu0 0
      %1648 = vmatprep.subr.bf16.mxu0 0
      %1649 = vmatpush1.bf16.msra.mxu0 0
      %1650 = vmatprep.subr.bf16.mxu0 0
      %1651 = vmatpush1.bf16.msra.mxu0 0
      %1652 = vmatprep.subr.bf16.mxu0 0
      %1653 = vmatpush1.bf16.msra.mxu0 0
      %1654 = vmatprep.subr.bf16.mxu0 0
      %1655 = vmatpush1.bf16.msra.mxu0 0
      %1656 = vmatprep.subr.bf16.mxu0 0
      %1657 = vmatpush1.bf16.msra.mxu0 0
      %1658 = vmatprep.subr.bf16.mxu0 0
      %1659 = vmatpush1.bf16.msra.mxu0 0
      %1660 = vmatprep.mubr.bf16.mxu0 0
      %1661 = vmatmul.mubr.bf16.gmra.mrb[0].mxu0 %v1586
      %v1662 = vpop.f32.mrb[0].mxu0
      %v1663 = vadd.f32 0.0, %v1662
      %v1664 = vpop.f32.mrb[0].mxu0
      %v1665 = vadd.f32 0.0, %v1664
      %v1666 = vpop.f32.mrb[0].mxu0
      %v1667 = vpop.f32.mrb[0].mxu0
      %1668 = vdwg.mxu0
      %v1673 = vcombine.low %v1622, %v1624
      %v1674 = vcombine.low %v1663, %v1665
      %v1676 = vunpack.c.l.s4 1983009808
      %v1677 = vunpack.c.0.s8 %v1676
      %v1678 = vlaneseq
      %v1679 = vshrl.u32 %v1678, 7
      %v1680 = vsub.s32 %v1677, %v1679
      %v1681 = vrot.slane %v1673, %v1680
      %v1683 = vunpack.c.l.s4 1983009808
      %v1684 = vunpack.c.0.s8 %v1683
      %v1685 = vlaneseq
      %v1686 = vshrl.u32 %v1685, 7
      %v1687 = vsub.s32 %v1684, %v1686
      %v1688 = vrot.slane %v1674, %v1687
      %v1689 = vcombine.low %v1681, %v1688
      %v1691 = vadd.f32 %v1584, %v1689
      %v1692 = vxor.u32 %v1691, 2147483648
      %v1693 = vmul.f32 %v1692, 1.442695
      %v1694 = vpow.pop %v1693
      %v1695 = vadd.f32 %v1694, 1.0
      %v1696 = vrcp.pop %v1695
      %v1697 = vmul.f32 1.0, %v1696
      %v1699 = vrot.slane %v1691, 2
      %v1701 = vxor.u32 %v1699, 2147483648
      %v1702 = vmul.f32 %v1701, 1.442695
      %v1703 = vpow.pop %v1702
      %v1704 = vadd.f32 %v1703, 1.0
      %v1705 = vrcp.pop %v1704
      %v1706 = vmul.f32 1.0, %v1705
      %v1707 = vrot.slane %v1691, 4
      %v1709 = vtanh.pop %v1707
      %v1710 = vrot.slane %v1691, 6
      %v1712 = vxor.u32 %v1710, 2147483648
      %v1713 = vmul.f32 %v1712, 1.442695
      %v1714 = vpow.pop %v1713
      %v1715 = vadd.f32 %v1714, 1.0
      %v1716 = vrcp.pop %v1715
      %v1717 = vmul.f32 1.0, %v1716
      %v1718 = vld [vmem:[#allocation3] sm:$0x3]
      %v1719 = vmul.f32 %v1706, %v1718
      %v1720 = vmul.f32 %v1697, %v1709
      %v1721 = vadd.f32 %v1719, %v1720
      %v1722 = vtanh.pop %v1721
      %v1723 = vmul.f32 %v1717, %v1722
      %1724 = vst [vmem:[#allocation3] sm:$0x3] %v1721
      %1725 = vst [vmem:[#allocation2] sm:$0x3] %v1723
      %s1726 = scalar_lea.vmem %s359, 14
      %1727 = vst [vmem:[%s1726] sm:$0x3] %v1723
      // Predicated region
      $region41: #{bilm_forward.7} parent=35 // pred_check
        %p1728 = pneg %p370
      $region42: #{bilm_forward.7} parent=35 // pred_check_branch
        %1730 = sbr.rel (%p1728) target = $region44
      $region43: #{bilm_forward.7} parent=35 // pred_region
        %v1731 = vld [vmem:[#allocation2] sm:$0x3]
        %1732 = vst [vmem:[%s364] sm:$0x3] %v1731
        %v1733 = vld [vmem:[#allocation3] sm:$0x3]
        %1734 = vst [vmem:[%s368] sm:$0x3] %v1733
      $region44: #{bilm_forward.7} parent=35 // pred_fallthru
        _
      %s1735 = smul.u32 8, %s23
      %p1736 = scmp.lt.s32.totalorder %s22, 1
      %s1737 = scalar_select %p1736, %s22, 1
      %p1738 = scmp.lt.s32.totalorder %s1735, 7
      %s1739 = scalar_select %p1738, %s1735, 7
      %s1740 = smul.addr %s1737, 8
      %s1741 = sadd.s32 %s1739, %s1740
      %s1742 = smul.addr %s1741, 2
      %s1743 = scalar_lea.vmem %s4, %s1742
      %p1744 = scmp.lt.s32.totalorder %s22, 1
      %s1745 = scalar_select %p1744, %s22, 1
      %s1746 = smul.addr %s1745, 2
      %s1747 = scalar_lea.vmem %s5, %s1746
      %p1748 = scmp.lt.s32.totalorder %s22, 1
      %s1749 = scalar_select %p1748, %s22, 1
      %s1750 = smul.addr %s1749, 2
      %s1751 = scalar_lea.vmem %s6, %s1750
      // Predicated region
      $region45: #{bilm_forward.7} parent=35 // pred_check
        %p1752 = pneg %p156
      $region46: #{bilm_forward.7} parent=35 // pred_check_branch
        %1754 = sbr.rel (%p1752) target = $region48
      $region47: #{bilm_forward.7} parent=35 // pred_region
        %s1755 = smul.u32 8, %s23
      $region48: #{bilm_forward.7} parent=35 // pred_fallthru
        _
      // Predicated region
      $region49: #{bilm_forward.7} parent=35 // pred_check
        %p1756 = pneg %p182
      $region50: #{bilm_forward.7} parent=35 // pred_check_branch
        %1758 = sbr.rel (%p1756) target = $region52
      $region51: #{bilm_forward.7} parent=35 // pred_region
        _
      $region52: #{bilm_forward.7} parent=35 // pred_fallthru
        _
      // Predicated region
      $region53: #{bilm_forward.7} parent=35 // pred_check
        %p1759 = pneg %p208
      $region54: #{bilm_forward.7} parent=35 // pred_check_branch
        %1761 = sbr.rel (%p1759) target = $region56
      $region55: #{bilm_forward.7} parent=35 // pred_region
        _
      $region56: #{bilm_forward.7} parent=35 // pred_fallthru
        _
    $region36: #{bilm_forward.7} parent=5 // pred_fallthru
      _
    %p1762 = scmp.le.s32.totalorder 2, %s13
    // Predicated region
    $region57: #{bilm_forward.7} parent=5 // pred_check
      %p1763 = pneg %p1762
    $region58: #{bilm_forward.7} parent=5 // pred_check_branch
      %1765 = sbr.rel (%p1763) target = $region60
    $region59: #{bilm_forward.7} parent=5 // pred_region
      %s1766 = ssub.s32 %s13, 2
      // Predicated region
      $region61: #{bilm_forward.7} parent=59 // pred_check
        %p1767 = pneg %p162
      $region62: #{bilm_forward.7} parent=59 // pred_check_branch
        %1769 = sbr.rel (%p1767) target = $region64
      $region63: #{bilm_forward.7} parent=59 // pred_region
        %s1770 = smul.u32 8, %s25
        %p1771 = scmp.lt.s32.totalorder %s24, 1
        %s1772 = scalar_select %p1771, %s24, 1
        %p1773 = scmp.lt.s32.totalorder %s1770, 7
        %s1774 = scalar_select %p1773, %s1770, 7
        %s1775 = smul.addr %s1772, 8
        %s1776 = sadd.s32 %s1774, %s1775
        %s1777 = smul.addr %s1776, 2
        %s1778 = scalar_lea.vmem %s4, %s1777
      $region64: #{bilm_forward.7} parent=59 // pred_fallthru
        _
      // Predicated region
      $region65: #{bilm_forward.7} parent=59 // pred_check
        %p1779 = pneg %p188
      $region66: #{bilm_forward.7} parent=59 // pred_check_branch
        %1781 = sbr.rel (%p1779) target = $region68
      $region67: #{bilm_forward.7} parent=59 // pred_region
        %p1782 = scmp.lt.s32.totalorder %s24, 1
        %s1783 = scalar_select %p1782, %s24, 1
        %s1784 = smul.addr %s1783, 2
        %s1785 = scalar_lea.vmem %s5, %s1784
      $region68: #{bilm_forward.7} parent=59 // pred_fallthru
        _
      // Predicated region
      $region69: #{bilm_forward.7} parent=59 // pred_check
        %p1786 = pneg %p214
      $region70: #{bilm_forward.7} parent=59 // pred_check_branch
        %1788 = sbr.rel (%p1786) target = $region72
      $region71: #{bilm_forward.7} parent=59 // pred_region
        %p1789 = scmp.lt.s32.totalorder %s24, 1
        %s1790 = scalar_select %p1789, %s24, 1
        %s1791 = smul.addr %s1790, 2
        %s1792 = scalar_lea.vmem %s6, %s1791
      $region72: #{bilm_forward.7} parent=59 // pred_fallthru
        _
    $region60: #{bilm_forward.7} parent=5 // pred_fallthru
      _
  $region6: #{bilm_forward.7} parent=0 // loop_footer
    %s17 = sadd.s32 1, %s13
  $region7: #{bilm_forward.7} parent=0 // loop_footer_branch
    %12 = sbr.rel target = $region3
  $region8: #{bilm_forward.7} parent=0 // loop_exit
    _

// kernel: bilm_forward.11
$region0: #{bilm_forward.11}
  #allocation0 [shape = 'u32[]', space=smem, size = 0x4, offset = 0x4, fixed_abs, tag = 'smem constant byte address 0x4 - core index']
  #allocation1 [shape = 'u32[144,128]{1,0:T(1,128)}', space=vmem, size = 0x12000, scoped, tag = 'internal scratch']
  #allocation2 [shape = 'f32[16,128]{1,0:T(8,128)}', space=vmem, size = 0x2000, scoped, tag = 'scratch operand']
  %s0 = inlined_call_operand.vmem [shape: f32[16,128], index: 0, kind: input, shape index: {}]
  %s1 = inlined_call_operand.vmem [shape: f32[128,128], index: 1, kind: input, shape index: {}]
  %s2 = inlined_call_operand.vmem [shape: f32[1,128], index: 2, kind: input, shape index: {}]
  %s3 = inlined_call_operand.hbm [shape: f32[16,128], index: 3, kind: output, shape index: {}]
  %s4 = sld [smem:[#allocation0]]
  $region30: #{bilm_forward.11} parent=0
    _
  %s6 = ssub.s32 1, %s4
  %s7 = scalar_select 0, %s6, %s4
  $region1: #{bilm_forward.11} parent=0
    #allocation3 [shape = 'u8[8192]{0}', space=vmem, size = 0x2000, scoped, tag = 'output window, operand 0, single buffered']
    #allocation4 [shape = 's32[1]{0}', space=sflag, size = 0x4, scoped, tag = 'scoped memory for bilm_forward.11']
    %8 = vsyncpa [#allocation4], 0
    // Predicated region
    $region2: #{bilm_forward.11} parent=1 // pred_check
      _
    $region3: #{bilm_forward.11} parent=1 // pred_check_branch
      %10 = sbr.rel (0) target = $region5
    $region4: #{bilm_forward.11} parent=1 // pred_region
      _
    $region5: #{bilm_forward.11} parent=1 // pred_fallthru
      _
    // Predicated region
    $region6: #{bilm_forward.11} parent=1 // pred_check
      _
    $region7: #{bilm_forward.11} parent=1 // pred_check_branch
      %12 = sbr.rel (0) target = $region9
    $region8: #{bilm_forward.11} parent=1 // pred_region
      _
    $region9: #{bilm_forward.11} parent=1 // pred_fallthru
      _
    // Predicated region
    $region10: #{bilm_forward.11} parent=1 // pred_check
      _
    $region11: #{bilm_forward.11} parent=1 // pred_check_branch
      %14 = sbr.rel (0) target = $region13
    $region12: #{bilm_forward.11} parent=1 // pred_region
      _
    $region13: #{bilm_forward.11} parent=1 // pred_fallthru
      _
    %p16 = scmp.eq.s32.totalorder 0, 0
    // Predicated region
    $region14: #{bilm_forward.11} parent=1 // pred_check
      %p17 = pneg %p16
    $region15: #{bilm_forward.11} parent=1 // pred_check_branch
      %19 = sbr.rel (%p17) target = $region17
    $region16: #{bilm_forward.11} parent=1 // pred_region
      %20 = vst [vmem:[#allocation2] sm:$0xff] 0.0
      %21 = vst [vmem:[#allocation2 + $0x8] sm:$0xff] 0.0
    $region17: #{bilm_forward.11} parent=1 // pred_fallthru
      _
    %v22 = vld [vmem:[#allocation2] sm:$0xff]
    %v23 = vld [vmem:[#allocation2 + $0x8] sm:$0xff]
    %v24 = vld [vmem:[%s0] sm:$0xff]
    %v25 = vld [vmem:[%s0 + $0x8] sm:$0xff]
    %v26 = vpack.c.bf16 %v25, %v24
    %v27 = vld [vmem:[%s1] sm:$0xff]
    %v28 = vld [vmem:[%s1 + $0x8] sm:$0xff]
    %v29 = vld [vmem:[%s1 + $0x10] sm:$0xff]
    %v30 = vld [vmem:[%s1 + $0x18] sm:$0xff]
    %v31 = vld [vmem:[%s1 + $0x20] sm:$0xff]
    %v32 = vld [vmem:[%s1 + $0x28] sm:$0xff]
    %v33 = vld [vmem:[%s1 + $0x30] sm:$0xff]
    %v34 = vld [vmem:[%s1 + $0x38] sm:$0xff]
    %v35 = vld [vmem:[%s1 + $0x40] sm:$0xff]
    %v36 = vld [vmem:[%s1 + $0x48] sm:$0xff]
    %v37 = vld [vmem:[%s1 + $0x50] sm:$0xff]
    %v38 = vld [vmem:[%s1 + $0x58] sm:$0xff]
    %v39 = vld [vmem:[%s1 + $0x60] sm:$0xff]
    %v40 = vld [vmem:[%s1 + $0x68] sm:$0xff]
    %v41 = vld [vmem:[%s1 + $0x70] sm:$0xff]
    %v42 = vld [vmem:[%s1 + $0x78] sm:$0xff]
    %v43 = vpack.c.bf16 %v28, %v27
    %v44 = vpack.c.bf16 %v30, %v29
    %v45 = vpack.c.bf16 %v32, %v31
    %v46 = vpack.c.bf16 %v34, %v33
    %v47 = vpack.c.bf16 %v36, %v35
    %v48 = vpack.c.bf16 %v38, %v37
    %v49 = vpack.c.bf16 %v40, %v39
    %v50 = vpack.c.bf16 %v42, %v41
    %51 = vmatprep.subr.bf16.mxu0 0
    %52 = vmatpush1.bf16.msra.mxu0 %v43
    %53 = vmatprep.subr.bf16.mxu0 0
    %54 = vmatpush1.bf16.msra.mxu0 %v44
    %55 = vmatprep.subr.bf16.mxu0 0
    %56 = vmatpush1.bf16.msra.mxu0 %v45
    %57 = vmatprep.subr.bf16.mxu0 0
    %58 = vmatpush1.bf16.msra.mxu0 %v46
    %59 = vmatprep.subr.bf16.mxu0 0
    %60 = vmatpush1.bf16.msra.mxu0 %v47
    %61 = vmatprep.subr.bf16.mxu0 0
    %62 = vmatpush1.bf16.msra.mxu0 %v48
    %63 = vmatprep.subr.bf16.mxu0 0
    %64 = vmatpush1.bf16.msra.mxu0 %v49
    %65 = vmatprep.subr.bf16.mxu0 0
    %66 = vmatpush1.bf16.msra.mxu0 %v50
    %67 = vmatprep.subr.bf16.mxu0 0
    %68 = vmatpush1.bf16.msra.mxu0 0
    %69 = vmatprep.subr.bf16.mxu0 0
    %70 = vmatpush1.bf16.msra.mxu0 0
    %71 = vmatprep.subr.bf16.mxu0 0
    %72 = vmatpush1.bf16.msra.mxu0 0
    %73 = vmatprep.subr.bf16.mxu0 0
    %74 = vmatpush1.bf16.msra.mxu0 0
    %75 = vmatprep.subr.bf16.mxu0 0
    %76 = vmatpush1.bf16.msra.mxu0 0
    %77 = vmatprep.subr.bf16.mxu0 0
    %78 = vmatpush1.bf16.msra.mxu0 0
    %79 = vmatprep.subr.bf16.mxu0 0
    %80 = vmatpush1.bf16.msra.mxu0 0
    %81 = vmatprep.subr.bf16.mxu0 0
    %82 = vmatpush1.bf16.msra.mxu0 0
    %83 = vmatprep.mubr.bf16.mxu0 0
    %84 = vmatmul.mubr.bf16.gmra.mrb[0].mxu0 %v26
    %v85 = vpop.f32.mrb[0].mxu0
    %v86 = vadd.f32 0.0, %v85
    %v87 = vpop.f32.mrb[0].mxu0
    %v88 = vpop.f32.mrb[0].mxu0
    %v89 = vadd.f32 0.0, %v88
    %v90 = vpop.f32.mrb[0].mxu0
    %91 = vdwg.mxu0
    %v92 = vadd.f32 %v22, %v86
    %v93 = vadd.f32 %v23, %v89
    %94 = vst [vmem:[#allocation2] sm:$0xff] %v92
    %95 = vst [vmem:[#allocation2 + $0x8] sm:$0xff] %v93
    // Predicated region
    $region18: #{bilm_forward.11} parent=1 // pred_check
      %p96 = pneg %p16
    $region19: #{bilm_forward.11} parent=1 // pred_check_branch
      %98 = sbr.rel (%p96) target = $region21
    $region20: #{bilm_forward.11} parent=1 // pred_region
      %v99 = vld [vmem:[#allocation2] sm:$0xff]
      %v100 = vld [vmem:[#allocation2 + $0x8] sm:$0xff]
      %v101 = vld [vmem:[%s2] sm:$0x1]
      %v103 = vlaneseq
      %v104 = vshrl.u32 %v103, 7
      %v105 = vsub.s32 0, %v104
      %v106 = vrot.slane %v101, %v105
      %v108 = vadd.f32 %v99, %v106
      %v109 = vadd.f32 %v100, %v106
      %110 = vst [vmem:[#allocation3] sm:$0xff] %v108
      %111 = vst [vmem:[#allocation3 + $0x8] sm:$0xff] %v109
    $region21: #{bilm_forward.11} parent=1 // pred_fallthru
      _
    // Predicated region
    $region22: #{bilm_forward.11} parent=1 // pred_check
      _
    $region23: #{bilm_forward.11} parent=1 // pred_check_branch
      %113 = sbr.rel (0) target = $region25
    $region24: #{bilm_forward.11} parent=1 // pred_region
      %s115 = ssub.s32 256, 256
      %116 = vsyncadd [#allocation4], %s115
      %s117 = sshll.u32 [#allocation3], 4
      %s118 = int_to_ptr.vmem [resolvable:$true] %s117
      %123 = dma.vmem_to_hbm [thread:$0]  %s118, 256, %s3, [#allocation4], 128, 128, 8
    $region25: #{bilm_forward.11} parent=1 // pred_fallthru
      _
    // Predicated region
    $region26: #{bilm_forward.11} parent=1 // pred_check
      _
    $region27: #{bilm_forward.11} parent=1 // pred_check_branch
      %125 = sbr.rel (0) target = $region29
    $region28: #{bilm_forward.11} parent=1 // pred_region
      %126 = dma.done [#allocation4], 256
    $region29: #{bilm_forward.11} parent=1 // pred_fallthru
      _
    %127 = vsyncpa [#allocation4], 1

</llo_original>
